<compile_context>
chip_gen: v5e
topology: v5e:2x2
jax: 0.10.0
libtpu: 0.0.40
codegen_flags: <defaults>
</compile_context>

<pallas_src>
import functools

import jax
import jax.numpy as jnp
from jax.experimental import pallas as pl
from jax.experimental.pallas import tpu as pltpu

_PAD = 8  # left zero-pad columns in the slab; keeps the big copy sublane-aligned.


def decoder_kernel(x_mid_ref, x_top_ref, x_bot_ref, w_ref, scale_ref, shift_ref,
                   o_ref, xslab_ref, *, h_axis):
    # x_mid_ref : (1, TH, W, Cin)        tile_h rows of the original-resolution input
    # x_top_ref : (1, 1,  W, Cin)        row above the tile (clamped; zeroed at h==0)
    # x_bot_ref : (1, 1,  W, Cin)        row below the tile (clamped; zeroed at h==last)
    # w_ref     : (16, Cin, Cout)        combined sub-pixel weights, t = 4*(2a+b)+2r+c
    # scale_ref, shift_ref : (1, Cout)   folded BN scale / (BN shift + conv bias), f32
    # o_ref     : (1, TH, 2, W, 2*Cout)  phase (a,b) at [0, :, a, :, b*Cout:(b+1)*Cout]
    # xslab_ref : (TH+3, Wp, Cin)        VMEM scratch: zero-padded input slab,
    #                                    image data at columns [P, P+W)
    TH = x_mid_ref.shape[1]
    W = x_mid_ref.shape[2]
    Cin = x_mid_ref.shape[3]
    Cout = w_ref.shape[2]
    Wp = xslab_ref.shape[1]
    P = _PAD
    cdt = xslab_ref.dtype

    h = pl.program_id(h_axis)
    last = pl.num_programs(h_axis) - 1

    # ---- assemble the zero-padded input slab (sublane-aligned main copy) ----
    # slab[k, P + j, :] = x[h*TH + k - 1, j, :].
    # Invariants required by the flat-shift trick: columns P-1 and P+W (and the
    # halo/pad rows actually read) must stay zero; Wp >= W + P + 1.
    xslab_ref[:, 0:P, :] = jnp.zeros((TH + 3, P, Cin), cdt)
    xslab_ref[:, P + W:, :] = jnp.zeros((TH + 3, Wp - W - P, Cin), cdt)
    xslab_ref[TH + 2:TH + 3, P:P + W, :] = jnp.zeros((1, W, Cin), cdt)
    xslab_ref[1:TH + 1, P:P + W, :] = x_mid_ref[0]

    @pl.when(h == 0)
    def _top_pad():
        xslab_ref[0:1, P:P + W, :] = jnp.zeros((1, W, Cin), cdt)

    @pl.when(h > 0)
    def _top_halo():
        xslab_ref[0:1, P:P + W, :] = x_top_ref[0]

    @pl.when(h == last)
    def _bot_pad():
        xslab_ref[TH + 1:TH + 2, P:P + W, :] = jnp.zeros((1, W, Cin), cdt)

    @pl.when(h < last)
    def _bot_halo():
        xslab_ref[TH + 1:TH + 2, P:P + W, :] = x_bot_ref[0]

    # ---- 4 phases x 4 taps; shifts applied to the bf16 input, jnp accumulation ----
    x2 = xslab_ref[...].reshape((TH + 3) * Wp, Cin)
    m = TH * Wp
    scale = scale_ref[...]
    shift = shift_ref[...]

    for a in range(2):
        halves = []
        for b in range(2):
            p = 2 * a + b
            y = None
            for r in range(2):
                for c in range(2):
                    t = 4 * p + 2 * r + c
                    d = (r + a) * Wp + (c + b) + (P - 1)   # flat shift of this tap
                    contrib = jnp.dot(x2[d:d + m, :], w_ref[t],
                                      preferred_element_type=jnp.float32)
                    y = contrib if y is None else y + contrib
            # fused (inference) BN affine + ReLU epilogue for this phase
            yv = y.reshape(TH, Wp, Cout)[:, :W, :]
            yv = jnp.maximum(yv * scale + shift, 0.0)
            halves.append(yv.astype(o_ref.dtype))
        # one lane-dense (2*Cout wide) store per row-phase
        o_ref[0, :, a, :, :] = jnp.concatenate(halves, axis=-1)


def _round_up(v, mult):
    return ((v + mult - 1) // mult) * mult


def _vmem_capacity_bytes():
    try:
        return int(pltpu.get_tpu_info().vmem_capacity_bytes)
    except Exception:
        return 64 * 1024 * 1024   # conservative fallback (v7x-sized)


def _vmem_limit_bytes(vmem_cap):
    return int(max(32 << 20, min(int(0.75 * vmem_cap), 112 << 20)))


def _estimate_vmem_bytes(TH, W, Wp, Cin, Cout, in_b, out_b):
    """Rough per-step live VMEM (with lane/sublane padding)."""
    lane_in = _round_up(Cin, 128)
    lane_co = _round_up(Cout, 128)
    lane_o2 = _round_up(2 * Cout, 128)
    w8 = _round_up(W, 8)
    inp = 2 * (TH * w8 * lane_in + 2 * 8 * lane_in) * in_b          # input band + halos (x2 buf)
    outp = 2 * (TH * 2 * w8 * lane_o2) * out_b                      # output block (x2 buf)
    slab = (TH + 3) * Wp * lane_in * in_b                           # scratch slab
    wts = 2 * 16 * _round_up(Cin, 8) * lane_co * in_b + 4 * 128 * 4 # weights + scale/shift
    tmps = 3 * TH * Wp * lane_co * 4                                # f32 matmul/accum temps
    return inp + outp + slab + wts + tmps


def _pick_tile_h(H, W, Wp, Cin, Cout, in_b, out_b, vmem_cap):
    """Largest divisor of H whose per-step footprint fits the VMEM budget."""
    budget = int(vmem_cap * 0.55)
    for th in range(H, 0, -1):
        if H % th == 0 and _estimate_vmem_bytes(th, W, Wp, Cin, Cout,
                                                in_b, out_b) <= budget:
            return th
    return 1


def _subpixel_weights(weight_hwio):
    """Combine the 3x3 kernel into 16 (Cin, Cout) sub-filters.

    Output phase (a, b) of "2x nearest upsample then 3x3 conv (pad=1)" is a 2x2
    conv at the original resolution; tap (r, c) sums the kernel rows/cols listed
    in groups[a][r] / groups[b][c].  Tap order: t = 4*(2a+b) + 2r + c.
    """
    groups = (((0,), (1, 2)), ((0, 1), (2,)))
    taps = []
    for a in range(2):
        for b in range(2):
            for r in range(2):
                for c in range(2):
                    wt = None
                    for kh in groups[a][r]:
                        for kw in groups[b][c]:
                            wkk = weight_hwio[kh, kw]
                            wt = wkk if wt is None else wt + wkk
                    taps.append(wt)
    return jnp.stack(taps, axis=0)            # (16, Cin, Cout)


def unet_bn_decoder_block(x_nchw, weight_hwio, conv_bias, bn_gamma, bn_beta,
                          bn_mean, bn_var, eps=1e-5, tile_h=None,
                          compute_dtype=jnp.bfloat16, out_dtype=None):
    """x_nchw: (N, Cin, H, W) f32.  Returns (N, Cout, 2H, 2W) f32."""
    N, Cin, H, W = x_nchw.shape
    Cout = weight_hwio.shape[-1]
    if out_dtype is None:
        out_dtype = compute_dtype          # bf16 output stream by default
    P = _PAD
    Wp = _round_up(W + P + 1, 8)
    assert Wp >= W + P + 1 and Wp % 8 == 0
    in_b = jnp.dtype(compute_dtype).itemsize
    out_b = jnp.dtype(out_dtype).itemsize

    vmem_cap = _vmem_capacity_bytes()
    if tile_h is None:
        tile_h = _pick_tile_h(H, W, Wp, Cin, Cout, in_b, out_b, vmem_cap)
    if H % tile_h != 0:
        raise ValueError(f"tile_h={tile_h} must divide H={H}")
    TH = tile_h
    nh = H // TH

    # Boundary layout glue: NCHW -> NHWC + compute-dtype cast (one fused XLA op).
    x = jnp.transpose(x_nchw, (0, 2, 3, 1)).astype(compute_dtype)

    # Sub-pixel weight combination + folded inference-mode BN affine.
    wsub = _subpixel_weights(weight_hwio.astype(jnp.float32)).astype(compute_dtype)
    scale = (bn_gamma / jnp.sqrt(bn_var + eps)).astype(jnp.float32)
    shift = (bn_beta + (conv_bias - bn_mean) * scale).astype(jnp.float32)
    scale2 = scale.reshape(1, Cout)
    shift2 = shift.reshape(1, Cout)

    # Put the longer parallel axis first so the megacore split stays balanced.
    if nh >= N:
        grid = (nh, N)
        h_axis = 0
        def hn(i0, i1):       # -> (h, n)
            return i0, i1
    else:
        grid = (N, nh)
        h_axis = 1
        def hn(i0, i1):
            return i1, i0

    kern = functools.partial(decoder_kernel, h_axis=h_axis)

    in_specs = [
        # tile_h-row band of x at original resolution
        pl.BlockSpec((1, TH, W, Cin),
                     lambda i0, i1: (hn(i0, i1)[1], hn(i0, i1)[0], 0, 0)),
        # 1-row halos above / below (clamped at the image edges)
        pl.BlockSpec((1, 1, W, Cin),
                     lambda i0, i1: (hn(i0, i1)[1],
                                     jnp.maximum(hn(i0, i1)[0] * TH - 1, 0), 0, 0)),
        pl.BlockSpec((1, 1, W, Cin),
                     lambda i0, i1: (hn(i0, i1)[1],
                                     jnp.minimum(hn(i0, i1)[0] * TH + TH, H - 1), 0, 0)),
        pl.BlockSpec((16, Cin, Cout), lambda i0, i1: (0, 0, 0)),
        pl.BlockSpec((1, Cout), lambda i0, i1: (0, 0)),
        pl.BlockSpec((1, Cout), lambda i0, i1: (0, 0)),
    ]
    out_spec = pl.BlockSpec((1, TH, 2, W, 2 * Cout),
                            lambda i0, i1: (hn(i0, i1)[1], hn(i0, i1)[0], 0, 0, 0))

    out = pl.pallas_call(
        kern,
        out_shape=jax.ShapeDtypeStruct((N, H, 2, W, 2 * Cout), out_dtype),
        grid_spec=pltpu.PrefetchScalarGridSpec(
            num_scalar_prefetch=0,
            grid=grid,
            in_specs=in_specs,
            out_specs=out_spec,
            scratch_shapes=[pltpu.VMEM((TH + 3, Wp, Cin), compute_dtype)],
        ),
        compiler_params=pltpu.CompilerParams(
            dimension_semantics=("parallel", "parallel"),
            vmem_limit_bytes=_vmem_limit_bytes(vmem_cap),
        ),
    )(x, x, x, wsub, scale2, shift2)

    # Free reshape interleaves the sub-pixel phases; only the mandatory
    # NHWC->NCHW boundary transpose (+ f32 cast) remains.
    out = out.reshape(N, 2 * H, 2 * W, Cout)
    return jnp.transpose(out, (0, 3, 1, 2)).astype(jnp.float32)


def reference(x_nchw, weight_hwio, conv_bias, bn_gamma, bn_beta, bn_mean,
              bn_var, eps=1e-5):
    x = jnp.transpose(x_nchw, (0, 2, 3, 1))
    x = jnp.repeat(jnp.repeat(x, 2, axis=1), 2, axis=2)
    y = jax.lax.conv_general_dilated(
        x, weight_hwio, window_strides=(1, 1), padding="SAME",
        dimension_numbers=("NHWC", "HWIO", "NHWC"))
    y = y + conv_bias
    y = (y - bn_mean) / jnp.sqrt(bn_var + eps) * bn_gamma + bn_beta
    y = jnp.maximum(y, 0.0)
    return jnp.transpose(y, (0, 3, 1, 2))


if __name__ == "__main__":
    key = jax.random.PRNGKey(0)
    N, Cin, Cout, H, W = 2, 4, 8, 16, 16

    k_x, k_w, k_b, k_g, k_be, k_m, k_v = jax.random.split(key, 7)
    x = jax.random.normal(k_x, (N, Cin, H, W), jnp.float32)

    fan_in = Cin * 3 * 3
    weight = jax.random.normal(k_w, (3, 3, Cin, Cout), jnp.float32) / jnp.sqrt(fan_in)
    conv_bias = 0.1 * jax.random.normal(k_b, (Cout,), jnp.float32)
    bn_gamma = 1.0 + 0.1 * jax.random.normal(k_g, (Cout,), jnp.float32)
    bn_beta = 0.1 * jax.random.normal(k_be, (Cout,), jnp.float32)
    bn_mean = 0.1 * jax.random.normal(k_m, (Cout,), jnp.float32)
    bn_var = 1.0 + 0.1 * jax.nn.softplus(jax.random.normal(k_v, (Cout,), jnp.float32))

    ref = reference(x, weight, conv_bias, bn_gamma, bn_beta, bn_mean, bn_var)

    # f32 compute path, explicit multi-tile: tight parity check of the sub-pixel /
    # halo / aligned-slab index algebra (exercises h>0 and h<last paths).
    out_f32 = unet_bn_decoder_block(x, weight, conv_bias, bn_gamma, bn_beta,
                                    bn_mean, bn_var, tile_h=8,
                                    compute_dtype=jnp.float32)
    out_f32 = jax.block_until_ready(out_f32)
    assert out_f32.shape == (N, Cout, 2 * H, 2 * W)
    assert jnp.allclose(out_f32, ref, atol=1e-3, rtol=1e-3)

    # Default bf16 path with auto (VMEM-budget) tile_h: bf16 operands + bf16 output
    # stream; also exercises the whole-image tile and the other grid ordering.
    out_bf16 = unet_bn_decoder_block(x, weight, conv_bias, bn_gamma, bn_beta,
                                     bn_mean, bn_var)
    out_bf16 = jax.block_until_ready(out_bf16)
    assert out_bf16.shape == (N, Cout, 2 * H, 2 * W)
    assert jnp.allclose(out_bf16, ref, atol=4e-2, rtol=4e-2)

    # Odd/small spatial shape (H=W=7) + auto tile_h: degenerate-H fix and ragged-W
    # masking, f32 compute for a tight check.
    N2, Cin2, Cout2, H2, W2 = 1, 3, 5, 7, 7
    ks = jax.random.split(key, 14)
    xb = jax.random.normal(ks[7], (N2, Cin2, H2, W2), jnp.float32)
    wb = jax.random.normal(ks[8], (3, 3, Cin2, Cout2), jnp.float32) / jnp.sqrt(Cin2 * 9)
    bb = 0.1 * jax.random.normal(ks[9], (Cout2,), jnp.float32)
    gb = 1.0 + 0.1 * jax.random.normal(ks[10], (Cout2,), jnp.float32)
    beb = 0.1 * jax.random.normal(ks[11], (Cout2,), jnp.float32)
    mb = 0.1 * jax.random.normal(ks[12], (Cout2,), jnp.float32)
    vb = 1.0 + 0.1 * jax.nn.softplus(jax.random.normal(ks[13], (Cout2,), jnp.float32))
    ref2 = reference(xb, wb, bb, gb, beb, mb, vb)
    out2 = unet_bn_decoder_block(xb, wb, bb, gb, beb, mb, vb,
                                 compute_dtype=jnp.float32)
    out2 = jax.block_until_ready(out2)
    assert out2.shape == (N2, Cout2, 2 * H2, 2 * W2)
    assert jnp.allclose(out2, ref2, atol=1e-3, rtol=1e-3)

    print("KERNEL_OK")
</pallas_src>

<mosaic_0001>
module attributes {stable_mosaic.version = 11 : i64} {
  func.func @decoder_kernel(%arg0: i32, %arg1: i32, %arg2: memref<1x8x16x4xf32, #tpu.memory_space<vmem>>, %arg3: memref<1x1x16x4xf32, #tpu.memory_space<vmem>>, %arg4: memref<1x1x16x4xf32, #tpu.memory_space<vmem>>, %arg5: memref<16x4x8xf32, #tpu.memory_space<vmem>>, %arg6: memref<1x8xf32, #tpu.memory_space<vmem>>, %arg7: memref<1x8xf32, #tpu.memory_space<vmem>>, %arg8: memref<1x8x2x16x16xf32, #tpu.memory_space<vmem>>, %arg9: memref<11x32x4xf32, #tpu.memory_space<vmem>>) attributes {dimension_semantics = [#tpu.dimension_semantics<parallel>, #tpu.dimension_semantics<parallel>], iteration_bounds = array<i64: 2, 2>, scalar_prefetch = 0 : i64, scratch_operands = 1 : i64, tpu.core_type = #tpu.core_type<tc>, window_params = [{transform_indices = @transform_0, window_bounds = array<i64: 1, 8, 16, 4>}, {transform_indices = @transform_1, window_bounds = array<i64: 1, 1, 16, 4>}, {transform_indices = @transform_2, window_bounds = array<i64: 1, 1, 16, 4>}, {pipeline_mode = #tpu.pipeline_mode<synchronous>, transform_indices = @transform_3, window_bounds = array<i64: 16, 4, 8>}, {pipeline_mode = #tpu.pipeline_mode<synchronous>, transform_indices = @transform_4, window_bounds = array<i64: 1, 8>}, {pipeline_mode = #tpu.pipeline_mode<synchronous>, transform_indices = @transform_5, window_bounds = array<i64: 1, 8>}, {transform_indices = @transform_6, window_bounds = array<i64: 1, 8, 2, 16, 16>}]} {
    %cst = arith.constant 0.000000e+00 : f32
    %0 = vector.broadcast %cst : f32 to vector<11x8x4xf32>
    %c0 = arith.constant 0 : index
    %c0_0 = arith.constant 0 : index
    %c0_1 = arith.constant 0 : index
    %1 = vector.load %arg9[%c0, %c0_0, %c0_1] : memref<11x32x4xf32, #tpu.memory_space<vmem>>, vector<11x8x4xf32>
    tpu.vector_store %arg9[%c0, %c0_0, %c0_1], %0 {strides = array<i32>} : memref<11x32x4xf32, #tpu.memory_space<vmem>>, vector<11x8x4xf32>,
    %cst_2 = arith.constant 0.000000e+00 : f32
    %2 = vector.broadcast %cst_2 : f32 to vector<11x8x4xf32>
    %c0_3 = arith.constant 0 : index
    %c24 = arith.constant 24 : index
    %c0_4 = arith.constant 0 : index
    %3 = vector.load %arg9[%c0_3, %c24, %c0_4] : memref<11x32x4xf32, #tpu.memory_space<vmem>>, vector<11x8x4xf32>
    tpu.vector_store %arg9[%c0_3, %c24, %c0_4], %2 {strides = array<i32>} : memref<11x32x4xf32, #tpu.memory_space<vmem>>, vector<11x8x4xf32>,
    %cst_5 = arith.constant 0.000000e+00 : f32
    %4 = vector.broadcast %cst_5 : f32 to vector<1x16x4xf32>
    %c10 = arith.constant 10 : index
    %c8 = arith.constant 8 : index
    %c0_6 = arith.constant 0 : index
    %5 = vector.load %arg9[%c10, %c8, %c0_6] : memref<11x32x4xf32, #tpu.memory_space<vmem>>, vector<1x16x4xf32>
    tpu.vector_store %arg9[%c10, %c8, %c0_6], %4 {strides = array<i32>} : memref<11x32x4xf32, #tpu.memory_space<vmem>>, vector<1x16x4xf32>,
    %c0_7 = arith.constant 0 : index
    %c0_8 = arith.constant 0 : index
    %c0_9 = arith.constant 0 : index
    %c0_10 = arith.constant 0 : index
    %6 = vector.load %arg2[%c0_7, %c0_8, %c0_9, %c0_10] : memref<1x8x16x4xf32, #tpu.memory_space<vmem>>, vector<1x8x16x4xf32>
    %7 = vector.shape_cast %6 : vector<1x8x16x4xf32> to vector<8x16x4xf32>
    %c1 = arith.constant 1 : index
    %c8_11 = arith.constant 8 : index
    %c0_12 = arith.constant 0 : index
    %8 = vector.load %arg9[%c1, %c8_11, %c0_12] : memref<11x32x4xf32, #tpu.memory_space<vmem>>, vector<8x16x4xf32>
    tpu.vector_store %arg9[%c1, %c8_11, %c0_12], %7 {strides = array<i32>} : memref<11x32x4xf32, #tpu.memory_space<vmem>>, vector<8x16x4xf32>,
    %c0_i32 = arith.constant 0 : i32
    %9 = arith.cmpi eq, %arg0, %c0_i32 : i32
    %10 = arith.extui %9 : i1 to i32
    %c0_i32_13 = arith.constant 0 : i32
    %11 = arith.cmpi ne, %10, %c0_i32_13 : i32
    scf.if %11 {
      %cst_92 = arith.constant 0.000000e+00 : f32
      %149 = vector.broadcast %cst_92 : f32 to vector<1x16x4xf32>
      %c0_93 = arith.constant 0 : index
      %c8_94 = arith.constant 8 : index
      %c0_95 = arith.constant 0 : index
      %150 = vector.load %arg9[%c0_93, %c8_94, %c0_95] : memref<11x32x4xf32, #tpu.memory_space<vmem>>, vector<1x16x4xf32>
      tpu.vector_store %arg9[%c0_93, %c8_94, %c0_95], %149 {strides = array<i32>} : memref<11x32x4xf32, #tpu.memory_space<vmem>>, vector<1x16x4xf32>,
    } else {
    }
    %c0_i32_14 = arith.constant 0 : i32
    %12 = arith.cmpi sgt, %arg0, %c0_i32_14 : i32
    %13 = arith.extui %12 : i1 to i32
    %c0_i32_15 = arith.constant 0 : i32
    %14 = arith.cmpi ne, %13, %c0_i32_15 : i32
    scf.if %14 {
      %c0_92 = arith.constant 0 : index
      %c0_93 = arith.constant 0 : index
      %c0_94 = arith.constant 0 : index
      %c0_95 = arith.constant 0 : index
      %149 = vector.load %arg3[%c0_92, %c0_93, %c0_94, %c0_95] : memref<1x1x16x4xf32, #tpu.memory_space<vmem>>, vector<1x1x16x4xf32>
      %150 = vector.shape_cast %149 : vector<1x1x16x4xf32> to vector<1x16x4xf32>
      %c0_96 = arith.constant 0 : index
      %c8_97 = arith.constant 8 : index
      %c0_98 = arith.constant 0 : index
      %151 = vector.load %arg9[%c0_96, %c8_97, %c0_98] : memref<11x32x4xf32, #tpu.memory_space<vmem>>, vector<1x16x4xf32>
      tpu.vector_store %arg9[%c0_96, %c8_97, %c0_98], %150 {strides = array<i32>} : memref<11x32x4xf32, #tpu.memory_space<vmem>>, vector<1x16x4xf32>,
    } else {
    }
    %c1_i32 = arith.constant 1 : i32
    %15 = arith.cmpi eq, %arg0, %c1_i32 : i32
    %16 = arith.extui %15 : i1 to i32
    %c0_i32_16 = arith.constant 0 : i32
    %17 = arith.cmpi ne, %16, %c0_i32_16 : i32
    scf.if %17 {
      %cst_92 = arith.constant 0.000000e+00 : f32
      %149 = vector.broadcast %cst_92 : f32 to vector<1x16x4xf32>
      %c9_93 = arith.constant 9 : index
      %c8_94 = arith.constant 8 : index
      %c0_95 = arith.constant 0 : index
      %150 = vector.load %arg9[%c9_93, %c8_94, %c0_95] : memref<11x32x4xf32, #tpu.memory_space<vmem>>, vector<1x16x4xf32>
      tpu.vector_store %arg9[%c9_93, %c8_94, %c0_95], %149 {strides = array<i32>} : memref<11x32x4xf32, #tpu.memory_space<vmem>>, vector<1x16x4xf32>,
    } else {
    }
    %c1_i32_17 = arith.constant 1 : i32
    %18 = arith.cmpi slt, %arg0, %c1_i32_17 : i32
    %19 = arith.extui %18 : i1 to i32
    %c0_i32_18 = arith.constant 0 : i32
    %20 = arith.cmpi ne, %19, %c0_i32_18 : i32
    scf.if %20 {
      %c0_92 = arith.constant 0 : index
      %c0_93 = arith.constant 0 : index
      %c0_94 = arith.constant 0 : index
      %c0_95 = arith.constant 0 : index
      %149 = vector.load %arg4[%c0_92, %c0_93, %c0_94, %c0_95] : memref<1x1x16x4xf32, #tpu.memory_space<vmem>>, vector<1x1x16x4xf32>
      %150 = vector.shape_cast %149 : vector<1x1x16x4xf32> to vector<1x16x4xf32>
      %c9_96 = arith.constant 9 : index
      %c8_97 = arith.constant 8 : index
      %c0_98 = arith.constant 0 : index
      %151 = vector.load %arg9[%c9_96, %c8_97, %c0_98] : memref<11x32x4xf32, #tpu.memory_space<vmem>>, vector<1x16x4xf32>
      tpu.vector_store %arg9[%c9_96, %c8_97, %c0_98], %150 {strides = array<i32>} : memref<11x32x4xf32, #tpu.memory_space<vmem>>, vector<1x16x4xf32>,
    } else {
    }
    %c0_19 = arith.constant 0 : index
    %c0_20 = arith.constant 0 : index
    %c0_21 = arith.constant 0 : index
    %21 = vector.load %arg9[%c0_19, %c0_20, %c0_21] : memref<11x32x4xf32, #tpu.memory_space<vmem>>, vector<11x32x4xf32>
    %22 = vector.shape_cast %21 : vector<11x32x4xf32> to vector<352x4xf32>
    %c0_22 = arith.constant 0 : index
    %c0_23 = arith.constant 0 : index
    %23 = vector.load %arg6[%c0_22, %c0_23] : memref<1x8xf32, #tpu.memory_space<vmem>>, vector<1x8xf32>
    %c0_24 = arith.constant 0 : index
    %c0_25 = arith.constant 0 : index
    %24 = vector.load %arg7[%c0_24, %c0_25] : memref<1x8xf32, #tpu.memory_space<vmem>>, vector<1x8xf32>
    %25 = vector.extract_strided_slice %22 {offsets = [7, 0], sizes = [256, 4], strides = [1, 1]} : vector<352x4xf32> to vector<256x4xf32>
    %c0_26 = arith.constant 0 : index
    %c0_27 = arith.constant 0 : index
    %c0_28 = arith.constant 0 : index
    %26 = vector.load %arg5[%c0_26, %c0_27, %c0_28] : memref<16x4x8xf32, #tpu.memory_space<vmem>>, vector<1x4x8xf32>
    %27 = vector.shape_cast %26 : vector<1x4x8xf32> to vector<4x8xf32>
    %cst_29 = arith.constant dense<0.000000e+00> : vector<256x8xf32>
    %28 = tpu.matmul %25, %27, %cst_29 {dimension_numbers = #tpu.dot_dimension_numbers<[1], [0], [0], [1], [0, 0, 1, 1], [], []>} : vector<256x4xf32>, vector<4x8xf32>, vector<256x8xf32> -> vector<256x8xf32>
    %29 = vector.extract_strided_slice %22 {offsets = [8, 0], sizes = [256, 4], strides = [1, 1]} : vector<352x4xf32> to vector<256x4xf32>
    %c1_30 = arith.constant 1 : index
    %c0_31 = arith.constant 0 : index
    %c0_32 = arith.constant 0 : index
    %30 = vector.load %arg5[%c1_30, %c0_31, %c0_32] : memref<16x4x8xf32, #tpu.memory_space<vmem>>, vector<1x4x8xf32>
    %31 = vector.shape_cast %30 : vector<1x4x8xf32> to vector<4x8xf32>
    %cst_33 = arith.constant dense<0.000000e+00> : vector<256x8xf32>
    %32 = tpu.matmul %29, %31, %cst_33 {dimension_numbers = #tpu.dot_dimension_numbers<[1], [0], [0], [1], [0, 0, 1, 1], [], []>} : vector<256x4xf32>, vector<4x8xf32>, vector<256x8xf32> -> vector<256x8xf32>
    %33 = arith.addf %28, %32 : vector<256x8xf32>
    %34 = vector.extract_strided_slice %22 {offsets = [39, 0], sizes = [256, 4], strides = [1, 1]} : vector<352x4xf32> to vector<256x4xf32>
    %c2 = arith.constant 2 : index
    %c0_34 = arith.constant 0 : index
    %c0_35 = arith.constant 0 : index
    %35 = vector.load %arg5[%c2, %c0_34, %c0_35] : memref<16x4x8xf32, #tpu.memory_space<vmem>>, vector<1x4x8xf32>
    %36 = vector.shape_cast %35 : vector<1x4x8xf32> to vector<4x8xf32>
    %cst_36 = arith.constant dense<0.000000e+00> : vector<256x8xf32>
    %37 = tpu.matmul %34, %36, %cst_36 {dimension_numbers = #tpu.dot_dimension_numbers<[1], [0], [0], [1], [0, 0, 1, 1], [], []>} : vector<256x4xf32>, vector<4x8xf32>, vector<256x8xf32> -> vector<256x8xf32>
    %38 = arith.addf %33, %37 : vector<256x8xf32>
    %39 = vector.extract_strided_slice %22 {offsets = [40, 0], sizes = [256, 4], strides = [1, 1]} : vector<352x4xf32> to vector<256x4xf32>
    %c3 = arith.constant 3 : index
    %c0_37 = arith.constant 0 : index
    %c0_38 = arith.constant 0 : index
    %40 = vector.load %arg5[%c3, %c0_37, %c0_38] : memref<16x4x8xf32, #tpu.memory_space<vmem>>, vector<1x4x8xf32>
    %41 = vector.shape_cast %40 : vector<1x4x8xf32> to vector<4x8xf32>
    %cst_39 = arith.constant dense<0.000000e+00> : vector<256x8xf32>
    %42 = tpu.matmul %39, %41, %cst_39 {dimension_numbers = #tpu.dot_dimension_numbers<[1], [0], [0], [1], [0, 0, 1, 1], [], []>} : vector<256x4xf32>, vector<4x8xf32>, vector<256x8xf32> -> vector<256x8xf32>
    %43 = arith.addf %38, %42 : vector<256x8xf32>
    %44 = vector.shape_cast %43 : vector<256x8xf32> to vector<8x32x8xf32>
    %45 = vector.extract_strided_slice %44 {offsets = [0, 0, 0], sizes = [8, 16, 8], strides = [1, 1, 1]} : vector<8x32x8xf32> to vector<8x16x8xf32>
    %46 = vector.shape_cast %23 : vector<1x8xf32> to vector<1x1x8xf32>
    %47 = vector.broadcast %46 : vector<1x1x8xf32> to vector<8x16x8xf32>
    %48 = arith.mulf %45, %47 : vector<8x16x8xf32>
    %49 = vector.shape_cast %24 : vector<1x8xf32> to vector<1x1x8xf32>
    %50 = vector.broadcast %49 : vector<1x1x8xf32> to vector<8x16x8xf32>
    %51 = arith.addf %48, %50 : vector<8x16x8xf32>
    %cst_40 = arith.constant 0.000000e+00 : f32
    %52 = vector.broadcast %cst_40 : f32 to vector<8x16x8xf32>
    %53 = arith.maximumf %51, %52 : vector<8x16x8xf32>
    %54 = vector.extract_strided_slice %22 {offsets = [8, 0], sizes = [256, 4], strides = [1, 1]} : vector<352x4xf32> to vector<256x4xf32>
    %c4 = arith.constant 4 : index
    %c0_41 = arith.constant 0 : index
    %c0_42 = arith.constant 0 : index
    %55 = vector.load %arg5[%c4, %c0_41, %c0_42] : memref<16x4x8xf32, #tpu.memory_space<vmem>>, vector<1x4x8xf32>
    %56 = vector.shape_cast %55 : vector<1x4x8xf32> to vector<4x8xf32>
    %cst_43 = arith.constant dense<0.000000e+00> : vector<256x8xf32>
    %57 = tpu.matmul %54, %56, %cst_43 {dimension_numbers = #tpu.dot_dimension_numbers<[1], [0], [0], [1], [0, 0, 1, 1], [], []>} : vector<256x4xf32>, vector<4x8xf32>, vector<256x8xf32> -> vector<256x8xf32>
    %58 = vector.extract_strided_slice %22 {offsets = [9, 0], sizes = [256, 4], strides = [1, 1]} : vector<352x4xf32> to vector<256x4xf32>
    %c5 = arith.constant 5 : index
    %c0_44 = arith.constant 0 : index
    %c0_45 = arith.constant 0 : index
    %59 = vector.load %arg5[%c5, %c0_44, %c0_45] : memref<16x4x8xf32, #tpu.memory_space<vmem>>, vector<1x4x8xf32>
    %60 = vector.shape_cast %59 : vector<1x4x8xf32> to vector<4x8xf32>
    %cst_46 = arith.constant dense<0.000000e+00> : vector<256x8xf32>
    %61 = tpu.matmul %58, %60, %cst_46 {dimension_numbers = #tpu.dot_dimension_numbers<[1], [0], [0], [1], [0, 0, 1, 1], [], []>} : vector<256x4xf32>, vector<4x8xf32>, vector<256x8xf32> -> vector<256x8xf32>
    %62 = arith.addf %57, %61 : vector<256x8xf32>
    %63 = vector.extract_strided_slice %22 {offsets = [40, 0], sizes = [256, 4], strides = [1, 1]} : vector<352x4xf32> to vector<256x4xf32>
    %c6 = arith.constant 6 : index
    %c0_47 = arith.constant 0 : index
    %c0_48 = arith.constant 0 : index
    %64 = vector.load %arg5[%c6, %c0_47, %c0_48] : memref<16x4x8xf32, #tpu.memory_space<vmem>>, vector<1x4x8xf32>
    %65 = vector.shape_cast %64 : vector<1x4x8xf32> to vector<4x8xf32>
    %cst_49 = arith.constant dense<0.000000e+00> : vector<256x8xf32>
    %66 = tpu.matmul %63, %65, %cst_49 {dimension_numbers = #tpu.dot_dimension_numbers<[1], [0], [0], [1], [0, 0, 1, 1], [], []>} : vector<256x4xf32>, vector<4x8xf32>, vector<256x8xf32> -> vector<256x8xf32>
    %67 = arith.addf %62, %66 : vector<256x8xf32>
    %68 = vector.extract_strided_slice %22 {offsets = [41, 0], sizes = [256, 4], strides = [1, 1]} : vector<352x4xf32> to vector<256x4xf32>
    %c7 = arith.constant 7 : index
    %c0_50 = arith.constant 0 : index
    %c0_51 = arith.constant 0 : index
    %69 = vector.load %arg5[%c7, %c0_50, %c0_51] : memref<16x4x8xf32, #tpu.memory_space<vmem>>, vector<1x4x8xf32>
    %70 = vector.shape_cast %69 : vector<1x4x8xf32> to vector<4x8xf32>
    %cst_52 = arith.constant dense<0.000000e+00> : vector<256x8xf32>
    %71 = tpu.matmul %68, %70, %cst_52 {dimension_numbers = #tpu.dot_dimension_numbers<[1], [0], [0], [1], [0, 0, 1, 1], [], []>} : vector<256x4xf32>, vector<4x8xf32>, vector<256x8xf32> -> vector<256x8xf32>
    %72 = arith.addf %67, %71 : vector<256x8xf32>
    %73 = vector.shape_cast %72 : vector<256x8xf32> to vector<8x32x8xf32>
    %74 = vector.extract_strided_slice %73 {offsets = [0, 0, 0], sizes = [8, 16, 8], strides = [1, 1, 1]} : vector<8x32x8xf32> to vector<8x16x8xf32>
    %75 = vector.shape_cast %23 : vector<1x8xf32> to vector<1x1x8xf32>
    %76 = vector.broadcast %75 : vector<1x1x8xf32> to vector<8x16x8xf32>
    %77 = arith.mulf %74, %76 : vector<8x16x8xf32>
    %78 = vector.shape_cast %24 : vector<1x8xf32> to vector<1x1x8xf32>
    %79 = vector.broadcast %78 : vector<1x1x8xf32> to vector<8x16x8xf32>
    %80 = arith.addf %77, %79 : vector<8x16x8xf32>
    %cst_53 = arith.constant 0.000000e+00 : f32
    %81 = vector.broadcast %cst_53 : f32 to vector<8x16x8xf32>
    %82 = arith.maximumf %80, %81 : vector<8x16x8xf32>
    %83 = tpu.concatenate %53, %82 in 2 : vector<8x16x8xf32>, vector<8x16x8xf32> -> vector<8x16x16xf32>
    %c0_54 = arith.constant 0 : index
    %c0_55 = arith.constant 0 : index
    %c0_56 = arith.constant 0 : index
    %c0_57 = arith.constant 0 : index
    %c0_58 = arith.constant 0 : index
    %84 = vector.load %arg8[%c0_54, %c0_55, %c0_56, %c0_57, %c0_58] : memref<1x8x2x16x16xf32, #tpu.memory_space<vmem>>, vector<1x8x1x16x16xf32>
    %85 = vector.shape_cast %84 : vector<1x8x1x16x16xf32> to vector<8x16x16xf32>
    %86 = vector.shape_cast %83 : vector<8x16x16xf32> to vector<1x8x1x16x16xf32>
    tpu.vector_store %arg8[%c0_54, %c0_55, %c0_56, %c0_57, %c0_58], %86 {strides = array<i32>} : memref<1x8x2x16x16xf32, #tpu.memory_space<vmem>>, vector<1x8x1x16x16xf32>,
    %87 = vector.extract_strided_slice %22 {offsets = [39, 0], sizes = [256, 4], strides = [1, 1]} : vector<352x4xf32> to vector<256x4xf32>
    %c8_59 = arith.constant 8 : index
    %c0_60 = arith.constant 0 : index
    %c0_61 = arith.constant 0 : index
    %88 = vector.load %arg5[%c8_59, %c0_60, %c0_61] : memref<16x4x8xf32, #tpu.memory_space<vmem>>, vector<1x4x8xf32>
    %89 = vector.shape_cast %88 : vector<1x4x8xf32> to vector<4x8xf32>
    %cst_62 = arith.constant dense<0.000000e+00> : vector<256x8xf32>
    %90 = tpu.matmul %87, %89, %cst_62 {dimension_numbers = #tpu.dot_dimension_numbers<[1], [0], [0], [1], [0, 0, 1, 1], [], []>} : vector<256x4xf32>, vector<4x8xf32>, vector<256x8xf32> -> vector<256x8xf32>
    %91 = vector.extract_strided_slice %22 {offsets = [40, 0], sizes = [256, 4], strides = [1, 1]} : vector<352x4xf32> to vector<256x4xf32>
    %c9 = arith.constant 9 : index
    %c0_63 = arith.constant 0 : index
    %c0_64 = arith.constant 0 : index
    %92 = vector.load %arg5[%c9, %c0_63, %c0_64] : memref<16x4x8xf32, #tpu.memory_space<vmem>>, vector<1x4x8xf32>
    %93 = vector.shape_cast %92 : vector<1x4x8xf32> to vector<4x8xf32>
    %cst_65 = arith.constant dense<0.000000e+00> : vector<256x8xf32>
    %94 = tpu.matmul %91, %93, %cst_65 {dimension_numbers = #tpu.dot_dimension_numbers<[1], [0], [0], [1], [0, 0, 1, 1], [], []>} : vector<256x4xf32>, vector<4x8xf32>, vector<256x8xf32> -> vector<256x8xf32>
    %95 = arith.addf %90, %94 : vector<256x8xf32>
    %96 = vector.extract_strided_slice %22 {offsets = [71, 0], sizes = [256, 4], strides = [1, 1]} : vector<352x4xf32> to vector<256x4xf32>
    %c10_66 = arith.constant 10 : index
    %c0_67 = arith.constant 0 : index
    %c0_68 = arith.constant 0 : index
    %97 = vector.load %arg5[%c10_66, %c0_67, %c0_68] : memref<16x4x8xf32, #tpu.memory_space<vmem>>, vector<1x4x8xf32>
    %98 = vector.shape_cast %97 : vector<1x4x8xf32> to vector<4x8xf32>
    %cst_69 = arith.constant dense<0.000000e+00> : vector<256x8xf32>
    %99 = tpu.matmul %96, %98, %cst_69 {dimension_numbers = #tpu.dot_dimension_numbers<[1], [0], [0], [1], [0, 0, 1, 1], [], []>} : vector<256x4xf32>, vector<4x8xf32>, vector<256x8xf32> -> vector<256x8xf32>
    %100 = arith.addf %95, %99 : vector<256x8xf32>
    %101 = vector.extract_strided_slice %22 {offsets = [72, 0], sizes = [256, 4], strides = [1, 1]} : vector<352x4xf32> to vector<256x4xf32>
    %c11 = arith.constant 11 : index
    %c0_70 = arith.constant 0 : index
    %c0_71 = arith.constant 0 : index
    %102 = vector.load %arg5[%c11, %c0_70, %c0_71] : memref<16x4x8xf32, #tpu.memory_space<vmem>>, vector<1x4x8xf32>
    %103 = vector.shape_cast %102 : vector<1x4x8xf32> to vector<4x8xf32>
    %cst_72 = arith.constant dense<0.000000e+00> : vector<256x8xf32>
    %104 = tpu.matmul %101, %103, %cst_72 {dimension_numbers = #tpu.dot_dimension_numbers<[1], [0], [0], [1], [0, 0, 1, 1], [], []>} : vector<256x4xf32>, vector<4x8xf32>, vector<256x8xf32> -> vector<256x8xf32>
    %105 = arith.addf %100, %104 : vector<256x8xf32>
    %106 = vector.shape_cast %105 : vector<256x8xf32> to vector<8x32x8xf32>
    %107 = vector.extract_strided_slice %106 {offsets = [0, 0, 0], sizes = [8, 16, 8], strides = [1, 1, 1]} : vector<8x32x8xf32> to vector<8x16x8xf32>
    %108 = vector.shape_cast %23 : vector<1x8xf32> to vector<1x1x8xf32>
    %109 = vector.broadcast %108 : vector<1x1x8xf32> to vector<8x16x8xf32>
    %110 = arith.mulf %107, %109 : vector<8x16x8xf32>
    %111 = vector.shape_cast %24 : vector<1x8xf32> to vector<1x1x8xf32>
    %112 = vector.broadcast %111 : vector<1x1x8xf32> to vector<8x16x8xf32>
    %113 = arith.addf %110, %112 : vector<8x16x8xf32>
    %cst_73 = arith.constant 0.000000e+00 : f32
    %114 = vector.broadcast %cst_73 : f32 to vector<8x16x8xf32>
    %115 = arith.maximumf %113, %114 : vector<8x16x8xf32>
    %116 = vector.extract_strided_slice %22 {offsets = [40, 0], sizes = [256, 4], strides = [1, 1]} : vector<352x4xf32> to vector<256x4xf32>
    %c12 = arith.constant 12 : index
    %c0_74 = arith.constant 0 : index
    %c0_75 = arith.constant 0 : index
    %117 = vector.load %arg5[%c12, %c0_74, %c0_75] : memref<16x4x8xf32, #tpu.memory_space<vmem>>, vector<1x4x8xf32>
    %118 = vector.shape_cast %117 : vector<1x4x8xf32> to vector<4x8xf32>
    %cst_76 = arith.constant dense<0.000000e+00> : vector<256x8xf32>
    %119 = tpu.matmul %116, %118, %cst_76 {dimension_numbers = #tpu.dot_dimension_numbers<[1], [0], [0], [1], [0, 0, 1, 1], [], []>} : vector<256x4xf32>, vector<4x8xf32>, vector<256x8xf32> -> vector<256x8xf32>
    %120 = vector.extract_strided_slice %22 {offsets = [41, 0], sizes = [256, 4], strides = [1, 1]} : vector<352x4xf32> to vector<256x4xf32>
    %c13 = arith.constant 13 : index
    %c0_77 = arith.constant 0 : index
    %c0_78 = arith.constant 0 : index
    %121 = vector.load %arg5[%c13, %c0_77, %c0_78] : memref<16x4x8xf32, #tpu.memory_space<vmem>>, vector<1x4x8xf32>
    %122 = vector.shape_cast %121 : vector<1x4x8xf32> to vector<4x8xf32>
    %cst_79 = arith.constant dense<0.000000e+00> : vector<256x8xf32>
    %123 = tpu.matmul %120, %122, %cst_79 {dimension_numbers = #tpu.dot_dimension_numbers<[1], [0], [0], [1], [0, 0, 1, 1], [], []>} : vector<256x4xf32>, vector<4x8xf32>, vector<256x8xf32> -> vector<256x8xf32>
    %124 = arith.addf %119, %123 : vector<256x8xf32>
    %125 = vector.extract_strided_slice %22 {offsets = [72, 0], sizes = [256, 4], strides = [1, 1]} : vector<352x4xf32> to vector<256x4xf32>
    %c14 = arith.constant 14 : index
    %c0_80 = arith.constant 0 : index
    %c0_81 = arith.constant 0 : index
    %126 = vector.load %arg5[%c14, %c0_80, %c0_81] : memref<16x4x8xf32, #tpu.memory_space<vmem>>, vector<1x4x8xf32>
    %127 = vector.shape_cast %126 : vector<1x4x8xf32> to vector<4x8xf32>
    %cst_82 = arith.constant dense<0.000000e+00> : vector<256x8xf32>
    %128 = tpu.matmul %125, %127, %cst_82 {dimension_numbers = #tpu.dot_dimension_numbers<[1], [0], [0], [1], [0, 0, 1, 1], [], []>} : vector<256x4xf32>, vector<4x8xf32>, vector<256x8xf32> -> vector<256x8xf32>
    %129 = arith.addf %124, %128 : vector<256x8xf32>
    %130 = vector.extract_strided_slice %22 {offsets = [73, 0], sizes = [256, 4], strides = [1, 1]} : vector<352x4xf32> to vector<256x4xf32>
    %c15 = arith.constant 15 : index
    %c0_83 = arith.constant 0 : index
    %c0_84 = arith.constant 0 : index
    %131 = vector.load %arg5[%c15, %c0_83, %c0_84] : memref<16x4x8xf32, #tpu.memory_space<vmem>>, vector<1x4x8xf32>
    %132 = vector.shape_cast %131 : vector<1x4x8xf32> to vector<4x8xf32>
    %cst_85 = arith.constant dense<0.000000e+00> : vector<256x8xf32>
    %133 = tpu.matmul %130, %132, %cst_85 {dimension_numbers = #tpu.dot_dimension_numbers<[1], [0], [0], [1], [0, 0, 1, 1], [], []>} : vector<256x4xf32>, vector<4x8xf32>, vector<256x8xf32> -> vector<256x8xf32>
    %134 = arith.addf %129, %133 : vector<256x8xf32>
    %135 = vector.shape_cast %134 : vector<256x8xf32> to vector<8x32x8xf32>
    %136 = vector.extract_strided_slice %135 {offsets = [0, 0, 0], sizes = [8, 16, 8], strides = [1, 1, 1]} : vector<8x32x8xf32> to vector<8x16x8xf32>
    %137 = vector.shape_cast %23 : vector<1x8xf32> to vector<1x1x8xf32>
    %138 = vector.broadcast %137 : vector<1x1x8xf32> to vector<8x16x8xf32>
    %139 = arith.mulf %136, %138 : vector<8x16x8xf32>
    %140 = vector.shape_cast %24 : vector<1x8xf32> to vector<1x1x8xf32>
    %141 = vector.broadcast %140 : vector<1x1x8xf32> to vector<8x16x8xf32>
    %142 = arith.addf %139, %141 : vector<8x16x8xf32>
    %cst_86 = arith.constant 0.000000e+00 : f32
    %143 = vector.broadcast %cst_86 : f32 to vector<8x16x8xf32>
    %144 = arith.maximumf %142, %143 : vector<8x16x8xf32>
    %145 = tpu.concatenate %115, %144 in 2 : vector<8x16x8xf32>, vector<8x16x8xf32> -> vector<8x16x16xf32>
    %c0_87 = arith.constant 0 : index
    %c0_88 = arith.constant 0 : index
    %c1_89 = arith.constant 1 : index
    %c0_90 = arith.constant 0 : index
    %c0_91 = arith.constant 0 : index
    %146 = vector.load %arg8[%c0_87, %c0_88, %c1_89, %c0_90, %c0_91] : memref<1x8x2x16x16xf32, #tpu.memory_space<vmem>>, vector<1x8x1x16x16xf32>
    %147 = vector.shape_cast %146 : vector<1x8x1x16x16xf32> to vector<8x16x16xf32>
    %148 = vector.shape_cast %145 : vector<8x16x16xf32> to vector<1x8x1x16x16xf32>
    tpu.vector_store %arg8[%c0_87, %c0_88, %c1_89, %c0_90, %c0_91], %148 {strides = array<i32>} : memref<1x8x2x16x16xf32, #tpu.memory_space<vmem>>, vector<1x8x1x16x16xf32>,
    return
  }
  func.func @transform_0(%arg0: i32, %arg1: i32) -> (i32, i32, i32, i32) {
    %c0_i32 = arith.constant 0 : i32
    %c0_i32_0 = arith.constant 0 : i32
    %c0_i32_1 = arith.constant 0 : i32
    return %arg1, %arg0, %c0_i32, %c0_i32_0 : i32, i32, i32, i32
  }
  func.func @transform_1(%arg0: i32, %arg1: i32) -> (i32, i32, i32, i32) {
    %c8_i32 = arith.constant 8 : i32
    %0 = arith.muli %arg0, %c8_i32 : i32
    %c1_i32 = arith.constant 1 : i32
    %1 = arith.subi %0, %c1_i32 : i32
    %c0_i32 = arith.constant 0 : i32
    %2 = arith.maxsi %1, %c0_i32 : i32
    %c0_i32_0 = arith.constant 0 : i32
    %c0_i32_1 = arith.constant 0 : i32
    %c0_i32_2 = arith.constant 0 : i32
    return %arg1, %2, %c0_i32_0, %c0_i32_1 : i32, i32, i32, i32
  }
  func.func @transform_2(%arg0: i32, %arg1: i32) -> (i32, i32, i32, i32) {
    %c8_i32 = arith.constant 8 : i32
    %0 = arith.muli %arg0, %c8_i32 : i32
    %c8_i32_0 = arith.constant 8 : i32
    %1 = arith.addi %0, %c8_i32_0 : i32
    %c15_i32 = arith.constant 15 : i32
    %2 = arith.minsi %1, %c15_i32 : i32
    %c0_i32 = arith.constant 0 : i32
    %c0_i32_1 = arith.constant 0 : i32
    %c0_i32_2 = arith.constant 0 : i32
    return %arg1, %2, %c0_i32, %c0_i32_1 : i32, i32, i32, i32
  }
  func.func @transform_3(%arg0: i32, %arg1: i32) -> (i32, i32, i32) {
    %c0_i32 = arith.constant 0 : i32
    %c0_i32_0 = arith.constant 0 : i32
    %c0_i32_1 = arith.constant 0 : i32
    %c0_i32_2 = arith.constant 0 : i32
    return %c0_i32, %c0_i32_0, %c0_i32_1 : i32, i32, i32
  }
  func.func @transform_4(%arg0: i32, %arg1: i32) -> (i32, i32) {
    %c0_i32 = arith.constant 0 : i32
    %c0_i32_0 = arith.constant 0 : i32
    %c0_i32_1 = arith.constant 0 : i32
    return %c0_i32, %c0_i32_0 : i32, i32
  }
  func.func @transform_5(%arg0: i32, %arg1: i32) -> (i32, i32) {
    %c0_i32 = arith.constant 0 : i32
    %c0_i32_0 = arith.constant 0 : i32
    %c0_i32_1 = arith.constant 0 : i32
    return %c0_i32, %c0_i32_0 : i32, i32
  }
  func.func @transform_6(%arg0: i32, %arg1: i32) -> (i32, i32, i32, i32, i32) {
    %c0_i32 = arith.constant 0 : i32
    %c0_i32_0 = arith.constant 0 : i32
    %c0_i32_1 = arith.constant 0 : i32
    %c0_i32_2 = arith.constant 0 : i32
    return %arg1, %arg0, %c0_i32, %c0_i32_0, %c0_i32_1 : i32, i32, i32, i32, i32
  }
}

</mosaic_0001>

<llo_original>
// kernel: tpu_custom_call.1
$region0: #{tpu_custom_call.1}
  #allocation0 [shape = 'u32[]', space=smem, size = 0x4, offset = 0x4, fixed_abs, tag = 'smem constant byte address 0x4 - core index']
  #allocation1 [shape = 'u32[72,128]{1,0:T(1,128)}', space=vmem, size = 0x9000, scoped, tag = 'internal scratch']
  #allocation2 [shape = 'f32[11,32,4]{2,1,0:T(8,128)}', space=vmem, size = 0x2c000, scoped, tag = 'scratch operand']
  %s0 = inlined_call_operand.vmem [shape: f32[2,16,16,4], index: 0, kind: input, shape index: {}]
  %s1 = inlined_call_operand.vmem [shape: f32[2,16,16,4], index: 1, kind: input, shape index: {}]
  %s2 = inlined_call_operand.vmem [shape: f32[2,16,16,4], index: 2, kind: input, shape index: {}]
  %s3 = inlined_call_operand.vmem [shape: f32[16,4,8], index: 3, kind: input, shape index: {}]
  %s4 = inlined_call_operand.vmem [shape: f32[1,8], index: 4, kind: input, shape index: {}]
  %s5 = inlined_call_operand.vmem [shape: f32[1,8], index: 5, kind: input, shape index: {}]
  %s6 = inlined_call_operand.hbm [shape: f32[2,16,2,16,16], index: 6, kind: output, shape index: {}]
  %s7 = sld [smem:[#allocation0]]
  $region73: #{tpu_custom_call.1} parent=0
    _
  %s9 = ssub.s32 1, %s7
  %s10 = scalar_select 0, %s9, %s7
  $region1: #{tpu_custom_call.1} parent=0
    #allocation3 [shape = 'u8[262144]{0}', space=vmem, size = 0x40000, scoped, tag = 'output window, operand 0']
    #allocation4 [shape = 's32[2]{0}', space=sflag, size = 0x8, scoped, tag = 'scoped memory for tpu_custom_call.1']
    %11 = vsyncpa [#allocation4], 0
    %s12 = scalar_lea.sflag [#allocation4], 1
    %13 = vsyncpa %s12, 0
    loop: start=0, step=1, limit=6
    $region2: #{tpu_custom_call.1} parent=1 // loop_pre_header
      _
    $region3: #{tpu_custom_call.1} parent=1 // loop_header
      %s15 = sphi 0, %s19
      %p16 = scmp.ge.s32.totalorder %s15, 6
      %s22 = sphi 0, %s34
      %s23 = sphi 0, %s30
      %s24 = sphi 0, %s22
      %s25 = sphi 0, %s23
      %s26 = sphi 0, %s24
      %s27 = sphi 0, %s25
      %s39 = sphi 0, %s41
      %s42 = sphi 0, %s39
      %s43 = sphi 0, %s42
      %s59 = sphi 0, %s43
      %s75 = sphi 0, %s77
      %s78 = sphi 0, %s75
      %s79 = sphi 0, %s78
      %s95 = sphi 0, %s79
      %s111 = sphi 0, %s113
      %s114 = sphi 0, %s111
      %s115 = sphi 0, %s114
      %s131 = sphi 0, %s115
      %s135 = sphi 0, %s135
      %s137 = sphi 0, %s135
      %s138 = sphi 0, %s137
      %s152 = sphi 0, %s138
      %s156 = sphi 0, %s156
      %s158 = sphi 0, %s156
      %s159 = sphi 0, %s158
      %s173 = sphi 0, %s159
      %s177 = sphi 0, %s177
      %s179 = sphi 0, %s177
      %s180 = sphi 0, %s179
      %s194 = sphi 0, %s180
      %s202 = sphi 0, %s204
      %s205 = sphi 0, %s202
      %s206 = sphi 0, %s205
      %s222 = sphi 0, %s206
    $region4: #{tpu_custom_call.1} parent=1 // loop_header_branch
      %18 = sbr.rel (%p16) target = $region8
    $region5: #{tpu_custom_call.1} parent=1 // loop_body
      %s20 = ssub.s32 %s15, 1
      %s21 = ssub.s32 %s15, 2
      %s28 = sadd.s32 1, %s23
      %p29 = scmp.ge.s32.totalorder %s28, 2
      %s30 = scalar_select %p29, 0, %s28
      %s31 = sadd.s32 1, %s22
      %s32 = scalar_select %p29, %s31, %s22
      %p33 = scmp.ge.s32.totalorder %s32, 2
      %s34 = scalar_select %p33, 0, %s32
      %s35 = ssub.s32 %s23, %s30
      %s36 = ssub.s32 %s22, %s34
      %s37 = sor.u32 %s35, %s36
      %p38 = scmp.eq.s32.totalorder %s37, 0
      %s40 = sadd.s32 %s39, 1
      %s41 = scalar_select %p38, %s39, %s40
      %p44 = pneg %p38
      %p45 = scmp.eq.s32.totalorder %s15, 3
      %p46 = por %p44, %p45
      %p47 = scmp.ne.s32.totalorder %s39, %s42
      %p48 = scmp.eq.s32.totalorder %s15, 0
      %p49 = por %p47, %p48
      %p50 = scmp.ne.s32.totalorder %s39, %s42
      %p51 = scmp.eq.s32.totalorder %s20, 3
      %p52 = por %p50, %p51
      %p53 = scmp.ne.s32.totalorder %s42, %s43
      %p54 = scmp.eq.s32.totalorder %s20, 0
      %p55 = por %p53, %p54
      %p56 = scmp.ne.s32.totalorder %s42, %s43
      %p57 = scmp.eq.s32.totalorder %s21, 3
      %p58 = por %p56, %p57
      %p60 = scmp.ne.s32.totalorder %s43, %s59
      %p61 = scmp.eq.s32.totalorder %s21, 0
      %p62 = por %p60, %p61
      %s63 = smul.u32 %s22, 8
      %s64 = ssub.s32 %s63, 1
      %p65 = scmp.gt.s32.totalorder %s64, 0
      %s66 = scalar_select %p65, %s64, 0
      %s67 = smul.u32 %s34, 8
      %s68 = ssub.s32 %s67, 1
      %p69 = scmp.gt.s32.totalorder %s68, 0
      %s70 = scalar_select %p69, %s68, 0
      %s71 = ssub.s32 %s23, %s30
      %s72 = ssub.s32 %s66, %s70
      %s73 = sor.u32 %s71, %s72
      %p74 = scmp.eq.s32.totalorder %s73, 0
      %s76 = sadd.s32 %s75, 1
      %s77 = scalar_select %p74, %s75, %s76
      %p80 = pneg %p74
      %p81 = scmp.eq.s32.totalorder %s15, 3
      %p82 = por %p80, %p81
      %p83 = scmp.ne.s32.totalorder %s75, %s78
      %p84 = scmp.eq.s32.totalorder %s15, 0
      %p85 = por %p83, %p84
      %p86 = scmp.ne.s32.totalorder %s75, %s78
      %p87 = scmp.eq.s32.totalorder %s20, 3
      %p88 = por %p86, %p87
      %p89 = scmp.ne.s32.totalorder %s78, %s79
      %p90 = scmp.eq.s32.totalorder %s20, 0
      %p91 = por %p89, %p90
      %p92 = scmp.ne.s32.totalorder %s78, %s79
      %p93 = scmp.eq.s32.totalorder %s21, 3
      %p94 = por %p92, %p93
      %p96 = scmp.ne.s32.totalorder %s79, %s95
      %p97 = scmp.eq.s32.totalorder %s21, 0
      %p98 = por %p96, %p97
      %s99 = smul.u32 %s22, 8
      %s100 = sadd.s32 %s99, 8
      %p101 = scmp.lt.s32.totalorder %s100, 15
      %s102 = scalar_select %p101, %s100, 15
      %s103 = smul.u32 %s34, 8
      %s104 = sadd.s32 %s103, 8
      %p105 = scmp.lt.s32.totalorder %s104, 15
      %s106 = scalar_select %p105, %s104, 15
      %s107 = ssub.s32 %s23, %s30
      %s108 = ssub.s32 %s102, %s106
      %s109 = sor.u32 %s107, %s108
      %p110 = scmp.eq.s32.totalorder %s109, 0
      %s112 = sadd.s32 %s111, 1
      %s113 = scalar_select %p110, %s111, %s112
      %p116 = pneg %p110
      %p117 = scmp.eq.s32.totalorder %s15, 3
      %p118 = por %p116, %p117
      %p119 = scmp.ne.s32.totalorder %s111, %s114
      %p120 = scmp.eq.s32.totalorder %s15, 0
      %p121 = por %p119, %p120
      %p122 = scmp.ne.s32.totalorder %s111, %s114
      %p123 = scmp.eq.s32.totalorder %s20, 3
      %p124 = por %p122, %p123
      %p125 = scmp.ne.s32.totalorder %s114, %s115
      %p126 = scmp.eq.s32.totalorder %s20, 0
      %p127 = por %p125, %p126
      %p128 = scmp.ne.s32.totalorder %s114, %s115
      %p129 = scmp.eq.s32.totalorder %s21, 3
      %p130 = por %p128, %p129
      %p132 = scmp.ne.s32.totalorder %s115, %s131
      %p133 = scmp.eq.s32.totalorder %s21, 0
      %p134 = por %p132, %p133
      %s136 = sadd.s32 %s135, 1
      %p139 = scmp.eq.s32.totalorder %s15, 3
      %p140 = scmp.ne.s32.totalorder %s135, %s137
      %p141 = scmp.eq.s32.totalorder %s15, 0
      %p142 = por %p140, %p141
      %p143 = scmp.ne.s32.totalorder %s135, %s137
      %p144 = scmp.eq.s32.totalorder %s20, 3
      %p145 = por %p143, %p144
      %p146 = scmp.ne.s32.totalorder %s137, %s138
      %p147 = scmp.eq.s32.totalorder %s20, 0
      %p148 = por %p146, %p147
      %p149 = scmp.ne.s32.totalorder %s137, %s138
      %p150 = scmp.eq.s32.totalorder %s21, 3
      %p151 = por %p149, %p150
      %p153 = scmp.ne.s32.totalorder %s138, %s152
      %p154 = scmp.eq.s32.totalorder %s21, 0
      %p155 = por %p153, %p154
      %s157 = sadd.s32 %s156, 1
      %p160 = scmp.eq.s32.totalorder %s15, 3
      %p161 = scmp.ne.s32.totalorder %s156, %s158
      %p162 = scmp.eq.s32.totalorder %s15, 0
      %p163 = por %p161, %p162
      %p164 = scmp.ne.s32.totalorder %s156, %s158
      %p165 = scmp.eq.s32.totalorder %s20, 3
      %p166 = por %p164, %p165
      %p167 = scmp.ne.s32.totalorder %s158, %s159
      %p168 = scmp.eq.s32.totalorder %s20, 0
      %p169 = por %p167, %p168
      %p170 = scmp.ne.s32.totalorder %s158, %s159
      %p171 = scmp.eq.s32.totalorder %s21, 3
      %p172 = por %p170, %p171
      %p174 = scmp.ne.s32.totalorder %s159, %s173
      %p175 = scmp.eq.s32.totalorder %s21, 0
      %p176 = por %p174, %p175
      %s178 = sadd.s32 %s177, 1
      %p181 = scmp.eq.s32.totalorder %s15, 3
      %p182 = scmp.ne.s32.totalorder %s177, %s179
      %p183 = scmp.eq.s32.totalorder %s15, 0
      %p184 = por %p182, %p183
      %p185 = scmp.ne.s32.totalorder %s177, %s179
      %p186 = scmp.eq.s32.totalorder %s20, 3
      %p187 = por %p185, %p186
      %p188 = scmp.ne.s32.totalorder %s179, %s180
      %p189 = scmp.eq.s32.totalorder %s20, 0
      %p190 = por %p188, %p189
      %p191 = scmp.ne.s32.totalorder %s179, %s180
      %p192 = scmp.eq.s32.totalorder %s21, 3
      %p193 = por %p191, %p192
      %p195 = scmp.ne.s32.totalorder %s180, %s194
      %p196 = scmp.eq.s32.totalorder %s21, 0
      %p197 = por %p195, %p196
      %s198 = ssub.s32 %s23, %s30
      %s199 = ssub.s32 %s22, %s34
      %s200 = sor.u32 %s198, %s199
      %p201 = scmp.eq.s32.totalorder %s200, 0
      %s203 = sadd.s32 %s202, 1
      %s204 = scalar_select %p201, %s202, %s203
      %p207 = pneg %p201
      %p208 = scmp.eq.s32.totalorder %s15, 3
      %p209 = por %p207, %p208
      %p210 = scmp.ne.s32.totalorder %s202, %s205
      %p211 = scmp.eq.s32.totalorder %s15, 0
      %p212 = por %p210, %p211
      %p213 = scmp.ne.s32.totalorder %s202, %s205
      %p214 = scmp.eq.s32.totalorder %s20, 3
      %p215 = por %p213, %p214
      %p216 = scmp.ne.s32.totalorder %s205, %s206
      %p217 = scmp.eq.s32.totalorder %s20, 0
      %p218 = por %p216, %p217
      %p219 = scmp.ne.s32.totalorder %s205, %s206
      %p220 = scmp.eq.s32.totalorder %s21, 3
      %p221 = por %p219, %p220
      %p223 = scmp.ne.s32.totalorder %s206, %s222
      %p224 = scmp.eq.s32.totalorder %s21, 0
      %p225 = por %p223, %p224
      %p226 = scmp.le.s32.totalorder 1, %s15
      %p227 = scmp.lt.s32.totalorder %s15, 5
      %p228 = pnand %p226, %p227
      %p229 = pneg %p228
      // Predicated region
      $region9: #{tpu_custom_call.1} parent=5 // pred_check
        _
      $region10: #{tpu_custom_call.1} parent=5 // pred_check_branch
        %231 = sbr.rel (%p228) target = $region12
      $region11: #{tpu_custom_call.1} parent=5 // pred_region
        %s232 = ssub.s32 %s15, 1
        // Predicated region
        $region13: #{tpu_custom_call.1} parent=11 // pred_check
          %p233 = pneg %p148
        $region14: #{tpu_custom_call.1} parent=11 // pred_check_branch
          %235 = sbr.rel (%p233) target = $region16
        $region15: #{tpu_custom_call.1} parent=11 // pred_region
          _
        $region16: #{tpu_custom_call.1} parent=11 // pred_fallthru
          _
        // Predicated region
        $region17: #{tpu_custom_call.1} parent=11 // pred_check
          %p236 = pneg %p169
        $region18: #{tpu_custom_call.1} parent=11 // pred_check_branch
          %238 = sbr.rel (%p236) target = $region20
        $region19: #{tpu_custom_call.1} parent=11 // pred_region
          _
        $region20: #{tpu_custom_call.1} parent=11 // pred_fallthru
          _
        // Predicated region
        $region21: #{tpu_custom_call.1} parent=11 // pred_check
          %p239 = pneg %p190
        $region22: #{tpu_custom_call.1} parent=11 // pred_check_branch
          %241 = sbr.rel (%p239) target = $region24
        $region23: #{tpu_custom_call.1} parent=11 // pred_region
          _
        $region24: #{tpu_custom_call.1} parent=11 // pred_fallthru
          _
      $region12: #{tpu_custom_call.1} parent=5 // pred_fallthru
        _
      %p242 = scmp.lt.s32.totalorder %s15, 4
      // Predicated region
      $region25: #{tpu_custom_call.1} parent=5 // pred_check
        %p243 = pneg %p242
      $region26: #{tpu_custom_call.1} parent=5 // pred_check_branch
        %245 = sbr.rel (%p243) target = $region28
      $region27: #{tpu_custom_call.1} parent=5 // pred_region
        // Predicated region
        $region29: #{tpu_custom_call.1} parent=27 // pred_check
          %p246 = pneg %p49
        $region30: #{tpu_custom_call.1} parent=27 // pred_check_branch
          %248 = sbr.rel (%p246) target = $region32
        $region31: #{tpu_custom_call.1} parent=27 // pred_region
          %s249 = smul.u32 8, %s22
          %p250 = scmp.lt.s32.totalorder %s23, 1
          %s251 = scalar_select %p250, %s23, 1
          %p252 = scmp.lt.s32.totalorder %s249, 15
          %s253 = scalar_select %p252, %s249, 15
          %s254 = smul.addr %s253, 2
          %s255 = smul.addr %s251, 32
          %s256 = sadd.s32 %s254, %s255
          %s257 = smul.addr %s256, 8
          %s258 = scalar_lea.vmem %s0, %s257
          %s259 = smul.u32 8, %s22
        $region32: #{tpu_custom_call.1} parent=27 // pred_fallthru
          _
        // Predicated region
        $region33: #{tpu_custom_call.1} parent=27 // pred_check
          %p260 = pneg %p85
        $region34: #{tpu_custom_call.1} parent=27 // pred_check_branch
          %262 = sbr.rel (%p260) target = $region36
        $region35: #{tpu_custom_call.1} parent=27 // pred_region
          %s263 = smul.u32 %s22, 8
          %s264 = ssub.s32 %s263, 1
          %p265 = scmp.gt.s32.totalorder %s264, 0
          %s266 = scalar_select %p265, %s264, 0
          %p267 = scmp.lt.s32.totalorder %s23, 1
          %s268 = scalar_select %p267, %s23, 1
          %p269 = scmp.lt.s32.totalorder %s266, 15
          %s270 = scalar_select %p269, %s266, 15
          %s271 = smul.addr %s270, 2
          %s272 = smul.addr %s268, 32
          %s273 = sadd.s32 %s271, %s272
          %s274 = smul.addr %s273, 8
          %s275 = scalar_lea.vmem %s1, %s274
          %s276 = smul.u32 %s22, 8
          %s277 = ssub.s32 %s276, 1
          %p278 = scmp.gt.s32.totalorder %s277, 0
          %s279 = scalar_select %p278, %s277, 0
        $region36: #{tpu_custom_call.1} parent=27 // pred_fallthru
          _
        // Predicated region
        $region37: #{tpu_custom_call.1} parent=27 // pred_check
          %p280 = pneg %p121
        $region38: #{tpu_custom_call.1} parent=27 // pred_check_branch
          %282 = sbr.rel (%p280) target = $region40
        $region39: #{tpu_custom_call.1} parent=27 // pred_region
          %s283 = smul.u32 %s22, 8
          %s284 = sadd.s32 %s283, 8
          %p285 = scmp.lt.s32.totalorder %s284, 15
          %s286 = scalar_select %p285, %s284, 15
          %p287 = scmp.lt.s32.totalorder %s23, 1
          %s288 = scalar_select %p287, %s23, 1
          %p289 = scmp.lt.s32.totalorder %s286, 15
          %s290 = scalar_select %p289, %s286, 15
          %s291 = smul.addr %s290, 2
          %s292 = smul.addr %s288, 32
          %s293 = sadd.s32 %s291, %s292
          %s294 = smul.addr %s293, 8
          %s295 = scalar_lea.vmem %s2, %s294
          %s296 = smul.u32 %s22, 8
          %s297 = sadd.s32 %s296, 8
          %p298 = scmp.lt.s32.totalorder %s297, 15
          %s299 = scalar_select %p298, %s297, 15
        $region40: #{tpu_custom_call.1} parent=27 // pred_fallthru
          _
      $region28: #{tpu_custom_call.1} parent=5 // pred_fallthru
        _
      %p300 = scmp.le.s32.totalorder 1, %s15
      %p301 = scmp.lt.s32.totalorder %s15, 5
      %p302 = pnand %p300, %p301
      %p303 = pneg %p302
      // Predicated region
      $region41: #{tpu_custom_call.1} parent=5 // pred_check
        _
      $region42: #{tpu_custom_call.1} parent=5 // pred_check_branch
        %305 = sbr.rel (%p302) target = $region44
      $region43: #{tpu_custom_call.1} parent=5 // pred_region
        %s306 = ssub.s32 %s15, 1
        %s307 = smul.u32 8, %s24
        %p308 = scmp.lt.s32.totalorder %s25, 1
        %s309 = scalar_select %p308, %s25, 1
        %p310 = scmp.lt.s32.totalorder %s307, 15
        %s311 = scalar_select %p310, %s307, 15
        %s312 = smul.addr %s311, 2
        %s313 = smul.addr %s309, 32
        %s314 = sadd.s32 %s312, %s313
        %s315 = smul.addr %s314, 8
        %s316 = scalar_lea.vmem %s0, %s315
        %p317 = pneg %p55
        %p318 = pneg %p52
        %s319 = smul.u32 %s24, 8
        %s320 = ssub.s32 %s319, 1
        %p321 = scmp.gt.s32.totalorder %s320, 0
        %s322 = scalar_select %p321, %s320, 0
        %p323 = scmp.lt.s32.totalorder %s25, 1
        %s324 = scalar_select %p323, %s25, 1
        %p325 = scmp.lt.s32.totalorder %s322, 15
        %s326 = scalar_select %p325, %s322, 15
        %s327 = smul.addr %s326, 2
        %s328 = smul.addr %s324, 32
        %s329 = sadd.s32 %s327, %s328
        %s330 = smul.addr %s329, 8
        %s331 = scalar_lea.vmem %s1, %s330
        %p332 = pneg %p91
        %p333 = pneg %p88
        %s334 = smul.u32 %s24, 8
        %s335 = sadd.s32 %s334, 8
        %p336 = scmp.lt.s32.totalorder %s335, 15
        %s337 = scalar_select %p336, %s335, 15
        %p338 = scmp.lt.s32.totalorder %s25, 1
        %s339 = scalar_select %p338, %s25, 1
        %p340 = scmp.lt.s32.totalorder %s337, 15
        %s341 = scalar_select %p340, %s337, 15
        %s342 = smul.addr %s341, 2
        %s343 = smul.addr %s339, 32
        %s344 = sadd.s32 %s342, %s343
        %s345 = smul.addr %s344, 8
        %s346 = scalar_lea.vmem %s2, %s345
        %p347 = pneg %p127
        %p348 = pneg %p124
        %p349 = pneg %p148
        %p350 = pneg %p145
        %p351 = pneg %p169
        %p352 = pneg %p166
        %p353 = pneg %p190
        %p354 = pneg %p187
        %p355 = pneg %p218
        %p356 = pneg %p215
        %s357 = sand.u32 %s205, 1
        %s358 = scalar_lea.sflag [#allocation4], %s357
        %s359 = sand.u32 %s205, 1
        %s360 = smul.addr %s359, 256
        %s361 = scalar_lea.vmem [#allocation3], %s360
        %s362 = smul.u32 8, %s24
        %p363 = scmp.lt.s32.totalorder %s25, 1
        %s364 = scalar_select %p363, %s25, 1
        %p365 = scmp.lt.s32.totalorder %s362, 15
        %s366 = scalar_select %p365, %s362, 15
        %s367 = smul.addr %s366, 2
        %s368 = smul.addr %s364, 32
        %s369 = sadd.s32 %s367, %s368
        %s370 = smul.addr %s369, 8
        %s371 = scalar_lea.vmem %s0, %s370
        %s372 = smul.u32 8, %s24
        %s373 = smul.u32 %s24, 8
        %s374 = ssub.s32 %s373, 1
        %p375 = scmp.gt.s32.totalorder %s374, 0
        %s376 = scalar_select %p375, %s374, 0
        %p377 = scmp.lt.s32.totalorder %s25, 1
        %s378 = scalar_select %p377, %s25, 1
        %p379 = scmp.lt.s32.totalorder %s376, 15
        %s380 = scalar_select %p379, %s376, 15
        %s381 = smul.addr %s380, 2
        %s382 = smul.addr %s378, 32
        %s383 = sadd.s32 %s381, %s382
        %s384 = smul.addr %s383, 8
        %s385 = scalar_lea.vmem %s1, %s384
        %s386 = smul.u32 %s24, 8
        %s387 = ssub.s32 %s386, 1
        %p388 = scmp.gt.s32.totalorder %s387, 0
        %s389 = scalar_select %p388, %s387, 0
        %s390 = smul.u32 %s24, 8
        %s391 = sadd.s32 %s390, 8
        %p392 = scmp.lt.s32.totalorder %s391, 15
        %s393 = scalar_select %p392, %s391, 15
        %p394 = scmp.lt.s32.totalorder %s25, 1
        %s395 = scalar_select %p394, %s25, 1
        %p396 = scmp.lt.s32.totalorder %s393, 15
        %s397 = scalar_select %p396, %s393, 15
        %s398 = smul.addr %s397, 2
        %s399 = smul.addr %s395, 32
        %s400 = sadd.s32 %s398, %s399
        %s401 = smul.addr %s400, 8
        %s402 = scalar_lea.vmem %s2, %s401
        %s403 = smul.u32 %s24, 8
        %s404 = sadd.s32 %s403, 8
        %p405 = scmp.lt.s32.totalorder %s404, 15
        %s406 = scalar_select %p405, %s404, 15
        %s407 = smul.u32 8, %s24
        %vm408 = vcmask 31744
        %409 = vst.msk [vmem:[#allocation2] sm:$0xff] %vm408, 0.0
        %410 = vst.msk [vmem:[#allocation2 + $0x20] sm:$0xff] %vm408, 0.0
        %411 = vst.msk [vmem:[#allocation2 + $0x40] sm:$0xff] %vm408, 0.0
        %412 = vst.msk [vmem:[#allocation2 + $0x60] sm:$0xff] %vm408, 0.0
        %413 = vst.msk [vmem:[#allocation2 + $0x80] sm:$0xff] %vm408, 0.0
        %414 = vst.msk [vmem:[#allocation2 + $0xa0] sm:$0xff] %vm408, 0.0
        %415 = vst.msk [vmem:[#allocation2 + $0xc0] sm:$0xff] %vm408, 0.0
        %416 = vst.msk [vmem:[#allocation2 + $0xe0] sm:$0xff] %vm408, 0.0
        %417 = vst.msk [vmem:[#allocation2 + $0x100] sm:$0xff] %vm408, 0.0
        %418 = vst.msk [vmem:[#allocation2 + $0x120] sm:$0xff] %vm408, 0.0
        %419 = vst.msk [vmem:[#allocation2 + $0x140] sm:$0xff] %vm408, 0.0
        %420 = vst.msk [vmem:[#allocation2 + $0x18] sm:$0xff] %vm408, 0.0
        %421 = vst.msk [vmem:[#allocation2 + $0x38] sm:$0xff] %vm408, 0.0
        %422 = vst.msk [vmem:[#allocation2 + $0x58] sm:$0xff] %vm408, 0.0
        %423 = vst.msk [vmem:[#allocation2 + $0x78] sm:$0xff] %vm408, 0.0
        %424 = vst.msk [vmem:[#allocation2 + $0x98] sm:$0xff] %vm408, 0.0
        %425 = vst.msk [vmem:[#allocation2 + $0xb8] sm:$0xff] %vm408, 0.0
        %426 = vst.msk [vmem:[#allocation2 + $0xd8] sm:$0xff] %vm408, 0.0
        %427 = vst.msk [vmem:[#allocation2 + $0xf8] sm:$0xff] %vm408, 0.0
        %428 = vst.msk [vmem:[#allocation2 + $0x118] sm:$0xff] %vm408, 0.0
        %429 = vst.msk [vmem:[#allocation2 + $0x138] sm:$0xff] %vm408, 0.0
        %430 = vst.msk [vmem:[#allocation2 + $0x158] sm:$0xff] %vm408, 0.0
        %s431 = scalar_lea.vmem [#allocation2], 320
        %432 = vst.msk [vmem:[%s431 + $0x8] sm:$0xff] %vm408, 0.0
        %433 = vst.msk [vmem:[%s431 + $0x10] sm:$0xff] %vm408, 0.0
        %v434 = vld [vmem:[%s371] sm:$0xff]
        %v435 = vld [vmem:[%s371 + $0x8] sm:$0xff]
        %v436 = vld [vmem:[%s371 + $0x10] sm:$0xff]
        %v437 = vld [vmem:[%s371 + $0x18] sm:$0xff]
        %v438 = vld [vmem:[%s371 + $0x20] sm:$0xff]
        %v439 = vld [vmem:[%s371 + $0x28] sm:$0xff]
        %v440 = vld [vmem:[%s371 + $0x30] sm:$0xff]
        %v441 = vld [vmem:[%s371 + $0x38] sm:$0xff]
        %v442 = vld [vmem:[%s371 + $0x40] sm:$0xff]
        %v443 = vld [vmem:[%s371 + $0x48] sm:$0xff]
        %v444 = vld [vmem:[%s371 + $0x50] sm:$0xff]
        %v445 = vld [vmem:[%s371 + $0x58] sm:$0xff]
        %v446 = vld [vmem:[%s371 + $0x60] sm:$0xff]
        %v447 = vld [vmem:[%s371 + $0x68] sm:$0xff]
        %v448 = vld [vmem:[%s371 + $0x70] sm:$0xff]
        %v449 = vld [vmem:[%s371 + $0x78] sm:$0xff]
        %s450 = scalar_lea.vmem [#allocation2], 32
        %451 = vst.msk [vmem:[%s450 + $0x8] sm:$0xff] %vm408, %v434
        %452 = vst.msk [vmem:[%s450 + $0x10] sm:$0xff] %vm408, %v435
        %453 = vst.msk [vmem:[%s450 + $0x28] sm:$0xff] %vm408, %v436
        %454 = vst.msk [vmem:[%s450 + $0x30] sm:$0xff] %vm408, %v437
        %455 = vst.msk [vmem:[%s450 + $0x48] sm:$0xff] %vm408, %v438
        %456 = vst.msk [vmem:[%s450 + $0x50] sm:$0xff] %vm408, %v439
        %457 = vst.msk [vmem:[%s450 + $0x68] sm:$0xff] %vm408, %v440
        %458 = vst.msk [vmem:[%s450 + $0x70] sm:$0xff] %vm408, %v441
        %459 = vst.msk [vmem:[%s450 + $0x88] sm:$0xff] %vm408, %v442
        %460 = vst.msk [vmem:[%s450 + $0x90] sm:$0xff] %vm408, %v443
        %461 = vst.msk [vmem:[%s450 + $0xa8] sm:$0xff] %vm408, %v444
        %462 = vst.msk [vmem:[%s450 + $0xb0] sm:$0xff] %vm408, %v445
        %463 = vst.msk [vmem:[%s450 + $0xc8] sm:$0xff] %vm408, %v446
        %464 = vst.msk [vmem:[%s450 + $0xd0] sm:$0xff] %vm408, %v447
        %465 = vst.msk [vmem:[%s450 + $0xe8] sm:$0xff] %vm408, %v448
        %466 = vst.msk [vmem:[%s450 + $0xf0] sm:$0xff] %vm408, %v449
        %p467 = scmp.eq.s32.totalorder %s24, 0
        // Predicated region
        $region45: #{tpu_custom_call.1} parent=43 // pred_check
          %p468 = pneg %p467
        $region46: #{tpu_custom_call.1} parent=43 // pred_check_branch
          %470 = sbr.rel (%p468) target = $region48
        $region47: #{tpu_custom_call.1} parent=43 // pred_region
          %471 = vst.msk [vmem:[#allocation2 + $0x8] sm:$0xff] %vm408, 0.0
          %472 = vst.msk [vmem:[#allocation2 + $0x10] sm:$0xff] %vm408, 0.0
        $region48: #{tpu_custom_call.1} parent=43 // pred_fallthru
          _
        %p473 = scmp.gt.s32.totalorder %s24, 0
        // Predicated region
        $region49: #{tpu_custom_call.1} parent=43 // pred_check
          %p474 = pneg %p473
        $region50: #{tpu_custom_call.1} parent=43 // pred_check_branch
          %476 = sbr.rel (%p474) target = $region52
        $region51: #{tpu_custom_call.1} parent=43 // pred_region
          %v477 = vld [vmem:[%s385] sm:$0xff]
          %v478 = vld [vmem:[%s385 + $0x8] sm:$0xff]
          %479 = vst.msk [vmem:[#allocation2 + $0x8] sm:$0xff] %vm408, %v477
          %480 = vst.msk [vmem:[#allocation2 + $0x10] sm:$0xff] %vm408, %v478
        $region52: #{tpu_custom_call.1} parent=43 // pred_fallthru
          _
        %p481 = scmp.eq.s32.totalorder %s24, 1
        // Predicated region
        $region53: #{tpu_custom_call.1} parent=43 // pred_check
          %p482 = pneg %p481
        $region54: #{tpu_custom_call.1} parent=43 // pred_check_branch
          %484 = sbr.rel (%p482) target = $region56
        $region55: #{tpu_custom_call.1} parent=43 // pred_region
          %s485 = scalar_lea.vmem [#allocation2], 288
          %486 = vst.msk [vmem:[%s485 + $0x8] sm:$0xff] %vm408, 0.0
          %487 = vst.msk [vmem:[%s485 + $0x10] sm:$0xff] %vm408, 0.0
        $region56: #{tpu_custom_call.1} parent=43 // pred_fallthru
          _
        %p488 = scmp.lt.s32.totalorder %s24, 1
        // Predicated region
        $region57: #{tpu_custom_call.1} parent=43 // pred_check
          %p489 = pneg %p488
        $region58: #{tpu_custom_call.1} parent=43 // pred_check_branch
          %491 = sbr.rel (%p489) target = $region60
        $region59: #{tpu_custom_call.1} parent=43 // pred_region
          %v492 = vld [vmem:[%s402] sm:$0xff]
          %v493 = vld [vmem:[%s402 + $0x8] sm:$0xff]
          %s494 = scalar_lea.vmem [#allocation2], 288
          %495 = vst.msk [vmem:[%s494 + $0x8] sm:$0xff] %vm408, %v492
          %496 = vst.msk [vmem:[%s494 + $0x10] sm:$0xff] %vm408, %v493
        $region60: #{tpu_custom_call.1} parent=43 // pred_fallthru
          _
        %v497 = vld [vmem:[#allocation2] sm:$0xff]
        %v498 = vld [vmem:[#allocation2 + $0x8] sm:$0xff]
        %v499 = vld [vmem:[#allocation2 + $0x10] sm:$0xff]
        %v500 = vld [vmem:[#allocation2 + $0x18] sm:$0xff]
        %v501 = vld [vmem:[#allocation2 + $0x20] sm:$0xff]
        %v502 = vld [vmem:[#allocation2 + $0x28] sm:$0xff]
        %v503 = vld [vmem:[#allocation2 + $0x30] sm:$0xff]
        %v504 = vld [vmem:[#allocation2 + $0x38] sm:$0xff]
        %v505 = vld [vmem:[#allocation2 + $0x40] sm:$0xff]
        %v506 = vld [vmem:[#allocation2 + $0x48] sm:$0xff]
        %v507 = vld [vmem:[#allocation2 + $0x50] sm:$0xff]
        %v508 = vld [vmem:[#allocation2 + $0x58] sm:$0xff]
        %v509 = vld [vmem:[#allocation2 + $0x60] sm:$0xff]
        %v510 = vld [vmem:[#allocation2 + $0x68] sm:$0xff]
        %v511 = vld [vmem:[#allocation2 + $0x70] sm:$0xff]
        %v512 = vld [vmem:[#allocation2 + $0x78] sm:$0xff]
        %v513 = vld [vmem:[#allocation2 + $0x80] sm:$0xff]
        %v514 = vld [vmem:[#allocation2 + $0x88] sm:$0xff]
        %v515 = vld [vmem:[#allocation2 + $0x90] sm:$0xff]
        %v516 = vld [vmem:[#allocation2 + $0x98] sm:$0xff]
        %v517 = vld [vmem:[#allocation2 + $0xa0] sm:$0xff]
        %v518 = vld [vmem:[#allocation2 + $0xa8] sm:$0xff]
        %v519 = vld [vmem:[#allocation2 + $0xb0] sm:$0xff]
        %v520 = vld [vmem:[#allocation2 + $0xb8] sm:$0xff]
        %v521 = vld [vmem:[#allocation2 + $0xc0] sm:$0xff]
        %v522 = vld [vmem:[#allocation2 + $0xc8] sm:$0xff]
        %v523 = vld [vmem:[#allocation2 + $0xd0] sm:$0xff]
        %v524 = vld [vmem:[#allocation2 + $0xd8] sm:$0xff]
        %v525 = vld [vmem:[#allocation2 + $0xe0] sm:$0xff]
        %v526 = vld [vmem:[#allocation2 + $0xe8] sm:$0xff]
        %v527 = vld [vmem:[#allocation2 + $0xf0] sm:$0xff]
        %v528 = vld [vmem:[#allocation2 + $0xf8] sm:$0xff]
        %v529 = vld [vmem:[#allocation2 + $0x100] sm:$0xff]
        %v530 = vld [vmem:[#allocation2 + $0x108] sm:$0xff]
        %v531 = vld [vmem:[#allocation2 + $0x110] sm:$0xff]
        %v532 = vld [vmem:[#allocation2 + $0x118] sm:$0xff]
        %v533 = vld [vmem:[#allocation2 + $0x120] sm:$0xff]
        %v534 = vld [vmem:[#allocation2 + $0x128] sm:$0xff]
        %v535 = vld [vmem:[#allocation2 + $0x130] sm:$0xff]
        %v536 = vld [vmem:[#allocation2 + $0x138] sm:$0xff]
        %v537 = vld [vmem:[#allocation2 + $0x140] sm:$0xff]
        %v538 = vld [vmem:[#allocation2 + $0x148] sm:$0xff]
        %v539 = vld [vmem:[%s4] sm:$0x1]
        %v540 = vld [vmem:[%s5] sm:$0x1]
        %v541 = vld [vmem:[%s3] sm:$0xf]
        %s542 = scalar_lea.vmem %s3, 4
        %v543 = vld [vmem:[%s542] sm:$0xf]
        %v545 = vsel %vm408, %v498, 0
        %v548 = vsel %vm408, %v499, 0
        %v551 = vsel %vm408, %v500, 0
        %v554 = vsel %vm408, %v501, 0
        %v557 = vsel %vm408, %v502, 0
        %v560 = vsel %vm408, %v503, 0
        %v563 = vsel %vm408, %v504, 0
        %v566 = vsel %vm408, %v505, 0
        %v569 = vsel %vm408, %v506, 0
        %v572 = vsel %vm408, %v507, 0
        %v575 = vsel %vm408, %v508, 0
        %v578 = vsel %vm408, %v509, 0
        %v581 = vsel %vm408, %v510, 0
        %v584 = vsel %vm408, %v511, 0
        %v587 = vsel %vm408, %v512, 0
        %v590 = vsel %vm408, %v513, 0
        %v593 = vsel %vm408, %v514, 0
        %v596 = vsel %vm408, %v515, 0
        %v599 = vsel %vm408, %v516, 0
        %v602 = vsel %vm408, %v517, 0
        %v605 = vsel %vm408, %v518, 0
        %v608 = vsel %vm408, %v519, 0
        %v611 = vsel %vm408, %v520, 0
        %v614 = vsel %vm408, %v521, 0
        %v617 = vsel %vm408, %v522, 0
        %v620 = vsel %vm408, %v523, 0
        %v623 = vsel %vm408, %v524, 0
        %v626 = vsel %vm408, %v525, 0
        %v629 = vsel %vm408, %v526, 0
        %v632 = vsel %vm408, %v527, 0
        %v635 = vsel %vm408, %v528, 0
        %v638 = vsel %vm408, %v529, 0
        %vm640 = vcmask 1043456
        %v642 = vsel %vm640, %v543, 0
        %644 = vmatpush.msra.mxu0 0.0
        %645 = vmatpush.msra.mxu0 0.0
        %646 = vmatpush.msra.mxu0 0.0
        %647 = vmatpush.msra.mxu0 0.0
        %648 = vmatpush.msra.mxu0 0.0
        %649 = vmatpush.msra.mxu0 0.0
        %650 = vmatpush.msra.mxu0 0.0
        %651 = vmatpush.msra.mxu0 0.0
        %652 = vmatpush.msra.mxu0 0.0
        %653 = vmatpush.msra.mxu0 0.0
        %654 = vmatpush.msra.mxu0 0.0
        %655 = vmatpush.msra.mxu0 0.0
        %656 = vmatpush.msra.mxu0 0.0
        %657 = vmatpush.msra.mxu0 0.0
        %658 = vmatpush.msra.mxu0 0.0
        %659 = vmatpush.msra.mxu0 %v642
        %660 = vmatmul.f32.gmra.mxu0 %v545
        %v661 = vpop.f32.mrf.mxu0
        %v662 = vadd.f32 0.0, %v661
        %663 = vmatmul.f32.gmra.mxu0 %v548
        %v664 = vpop.f32.mrf.mxu0
        %v665 = vadd.f32 0.0, %v664
        %666 = vmatmul.f32.gmra.mxu0 %v551
        %v667 = vpop.f32.mrf.mxu0
        %668 = vmatmul.f32.gmra.mxu0 %v554
        %v669 = vpop.f32.mrf.mxu0
        %670 = vmatmul.f32.gmra.mxu0 %v557
        %v671 = vpop.f32.mrf.mxu0
        %v672 = vadd.f32 0.0, %v671
        %673 = vmatmul.f32.gmra.mxu0 %v560
        %v674 = vpop.f32.mrf.mxu0
        %v675 = vadd.f32 0.0, %v674
        %676 = vmatmul.f32.gmra.mxu0 %v563
        %v677 = vpop.f32.mrf.mxu0
        %678 = vmatmul.f32.gmra.mxu0 %v566
        %v679 = vpop.f32.mrf.mxu0
        %680 = vmatmul.f32.gmra.mxu0 %v569
        %v681 = vpop.f32.mrf.mxu0
        %v682 = vadd.f32 0.0, %v681
        %683 = vmatmul.f32.gmra.mxu0 %v572
        %v684 = vpop.f32.mrf.mxu0
        %v685 = vadd.f32 0.0, %v684
        %686 = vmatmul.f32.gmra.mxu0 %v575
        %v687 = vpop.f32.mrf.mxu0
        %688 = vmatmul.f32.gmra.mxu0 %v578
        %v689 = vpop.f32.mrf.mxu0
        %690 = vmatmul.f32.gmra.mxu0 %v581
        %v691 = vpop.f32.mrf.mxu0
        %v692 = vadd.f32 0.0, %v691
        %693 = vmatmul.f32.gmra.mxu0 %v584
        %v694 = vpop.f32.mrf.mxu0
        %v695 = vadd.f32 0.0, %v694
        %696 = vmatmul.f32.gmra.mxu0 %v587
        %v697 = vpop.f32.mrf.mxu0
        %698 = vmatmul.f32.gmra.mxu0 %v590
        %v699 = vpop.f32.mrf.mxu0
        %700 = vmatmul.f32.gmra.mxu0 %v593
        %v701 = vpop.f32.mrf.mxu0
        %v702 = vadd.f32 0.0, %v701
        %703 = vmatmul.f32.gmra.mxu0 %v596
        %v704 = vpop.f32.mrf.mxu0
        %v705 = vadd.f32 0.0, %v704
        %706 = vmatmul.f32.gmra.mxu0 %v599
        %v707 = vpop.f32.mrf.mxu0
        %708 = vmatmul.f32.gmra.mxu0 %v602
        %v709 = vpop.f32.mrf.mxu0
        %710 = vmatmul.f32.gmra.mxu0 %v605
        %v711 = vpop.f32.mrf.mxu0
        %v712 = vadd.f32 0.0, %v711
        %713 = vmatmul.f32.gmra.mxu0 %v608
        %v714 = vpop.f32.mrf.mxu0
        %v715 = vadd.f32 0.0, %v714
        %716 = vmatmul.f32.gmra.mxu0 %v611
        %v717 = vpop.f32.mrf.mxu0
        %718 = vmatmul.f32.gmra.mxu0 %v614
        %v719 = vpop.f32.mrf.mxu0
        %720 = vmatmul.f32.gmra.mxu0 %v617
        %v721 = vpop.f32.mrf.mxu0
        %v722 = vadd.f32 0.0, %v721
        %723 = vmatmul.f32.gmra.mxu0 %v620
        %v724 = vpop.f32.mrf.mxu0
        %v725 = vadd.f32 0.0, %v724
        %726 = vmatmul.f32.gmra.mxu0 %v623
        %v727 = vpop.f32.mrf.mxu0
        %728 = vmatmul.f32.gmra.mxu0 %v626
        %v729 = vpop.f32.mrf.mxu0
        %730 = vmatmul.f32.gmra.mxu0 %v629
        %v731 = vpop.f32.mrf.mxu0
        %v732 = vadd.f32 0.0, %v731
        %733 = vmatmul.f32.gmra.mxu0 %v632
        %v734 = vpop.f32.mrf.mxu0
        %v735 = vadd.f32 0.0, %v734
        %736 = vmatmul.f32.gmra.mxu0 %v635
        %v737 = vpop.f32.mrf.mxu0
        %738 = vmatmul.f32.gmra.mxu0 %v638
        %v739 = vpop.f32.mrf.mxu0
        %740 = vdwg.mxu0
        %vm742 = vcmask 1040384
        %v743 = vrot.slane %v497, 7
        %v744 = vrot.slane %v498, 7
        %v745 = vsel %vm742, %v743, %v744
        %v746 = vrot.slane %v499, 7
        %v747 = vsel %vm742, %v744, %v746
        %v748 = vrot.slane %v500, 7
        %v749 = vsel %vm742, %v746, %v748
        %v750 = vrot.slane %v501, 7
        %v751 = vsel %vm742, %v748, %v750
        %v752 = vrot.slane %v502, 7
        %v753 = vsel %vm742, %v750, %v752
        %v754 = vrot.slane %v503, 7
        %v755 = vsel %vm742, %v752, %v754
        %v756 = vrot.slane %v504, 7
        %v757 = vsel %vm742, %v754, %v756
        %v758 = vrot.slane %v505, 7
        %v759 = vsel %vm742, %v756, %v758
        %v760 = vrot.slane %v506, 7
        %v761 = vsel %vm742, %v758, %v760
        %v762 = vrot.slane %v507, 7
        %v763 = vsel %vm742, %v760, %v762
        %v764 = vrot.slane %v508, 7
        %v765 = vsel %vm742, %v762, %v764
        %v766 = vrot.slane %v509, 7
        %v767 = vsel %vm742, %v764, %v766
        %v768 = vrot.slane %v510, 7
        %v769 = vsel %vm742, %v766, %v768
        %v770 = vrot.slane %v511, 7
        %v771 = vsel %vm742, %v768, %v770
        %v772 = vrot.slane %v512, 7
        %v773 = vsel %vm742, %v770, %v772
        %v774 = vrot.slane %v513, 7
        %v775 = vsel %vm742, %v772, %v774
        %v776 = vrot.slane %v514, 7
        %v777 = vsel %vm742, %v774, %v776
        %v778 = vrot.slane %v515, 7
        %v779 = vsel %vm742, %v776, %v778
        %v780 = vrot.slane %v516, 7
        %v781 = vsel %vm742, %v778, %v780
        %v782 = vrot.slane %v517, 7
        %v783 = vsel %vm742, %v780, %v782
        %v784 = vrot.slane %v518, 7
        %v785 = vsel %vm742, %v782, %v784
        %v786 = vrot.slane %v519, 7
        %v787 = vsel %vm742, %v784, %v786
        %v788 = vrot.slane %v520, 7
        %v789 = vsel %vm742, %v786, %v788
        %v790 = vrot.slane %v521, 7
        %v791 = vsel %vm742, %v788, %v790
        %v792 = vrot.slane %v522, 7
        %v793 = vsel %vm742, %v790, %v792
        %v794 = vrot.slane %v523, 7
        %v795 = vsel %vm742, %v792, %v794
        %v796 = vrot.slane %v524, 7
        %v797 = vsel %vm742, %v794, %v796
        %v798 = vrot.slane %v525, 7
        %v799 = vsel %vm742, %v796, %v798
        %v800 = vrot.slane %v526, 7
        %v801 = vsel %vm742, %v798, %v800
        %v802 = vrot.slane %v527, 7
        %v803 = vsel %vm742, %v800, %v802
        %v804 = vrot.slane %v528, 7
        %v805 = vsel %vm742, %v802, %v804
        %v806 = vrot.slane %v529, 7
        %v807 = vsel %vm742, %v804, %v806
        %v808 = vsel %vm408, %v745, 0
        %v810 = vsel %vm408, %v747, 0
        %v812 = vsel %vm408, %v749, 0
        %v814 = vsel %vm408, %v751, 0
        %v816 = vsel %vm408, %v753, 0
        %v818 = vsel %vm408, %v755, 0
        %v820 = vsel %vm408, %v757, 0
        %v822 = vsel %vm408, %v759, 0
        %v824 = vsel %vm408, %v761, 0
        %v826 = vsel %vm408, %v763, 0
        %v828 = vsel %vm408, %v765, 0
        %v830 = vsel %vm408, %v767, 0
        %v832 = vsel %vm408, %v769, 0
        %v834 = vsel %vm408, %v771, 0
        %v836 = vsel %vm408, %v773, 0
        %v838 = vsel %vm408, %v775, 0
        %v840 = vsel %vm408, %v777, 0
        %v842 = vsel %vm408, %v779, 0
        %v844 = vsel %vm408, %v781, 0
        %v846 = vsel %vm408, %v783, 0
        %v848 = vsel %vm408, %v785, 0
        %v850 = vsel %vm408, %v787, 0
        %v852 = vsel %vm408, %v789, 0
        %v854 = vsel %vm408, %v791, 0
        %v856 = vsel %vm408, %v793, 0
        %v858 = vsel %vm408, %v795, 0
        %v860 = vsel %vm408, %v797, 0
        %v862 = vsel %vm408, %v799, 0
        %v864 = vsel %vm408, %v801, 0
        %v866 = vsel %vm408, %v803, 0
        %v868 = vsel %vm408, %v805, 0
        %v870 = vsel %vm408, %v807, 0
        %v873 = vsel %vm640, %v541, 0
        %875 = vmatpush.msra.mxu0 0.0
        %876 = vmatpush.msra.mxu0 0.0
        %877 = vmatpush.msra.mxu0 0.0
        %878 = vmatpush.msra.mxu0 0.0
        %879 = vmatpush.msra.mxu0 0.0
        %880 = vmatpush.msra.mxu0 0.0
        %881 = vmatpush.msra.mxu0 0.0
        %882 = vmatpush.msra.mxu0 0.0
        %883 = vmatpush.msra.mxu0 0.0
        %884 = vmatpush.msra.mxu0 0.0
        %885 = vmatpush.msra.mxu0 0.0
        %886 = vmatpush.msra.mxu0 0.0
        %887 = vmatpush.msra.mxu0 0.0
        %888 = vmatpush.msra.mxu0 0.0
        %889 = vmatpush.msra.mxu0 0.0
        %890 = vmatpush.msra.mxu0 %v873
        %891 = vmatmul.f32.gmra.mxu0 %v808
        %v892 = vpop.f32.mrf.mxu0
        %v893 = vadd.f32 %v662, %v892
        %894 = vmatmul.f32.gmra.mxu0 %v810
        %v895 = vpop.f32.mrf.mxu0
        %v896 = vadd.f32 %v665, %v895
        %897 = vmatmul.f32.gmra.mxu0 %v812
        %v898 = vpop.f32.mrf.mxu0
        %899 = vmatmul.f32.gmra.mxu0 %v814
        %v900 = vpop.f32.mrf.mxu0
        %901 = vmatmul.f32.gmra.mxu0 %v816
        %v902 = vpop.f32.mrf.mxu0
        %v903 = vadd.f32 %v672, %v902
        %904 = vmatmul.f32.gmra.mxu0 %v818
        %v905 = vpop.f32.mrf.mxu0
        %v906 = vadd.f32 %v675, %v905
        %907 = vmatmul.f32.gmra.mxu0 %v820
        %v908 = vpop.f32.mrf.mxu0
        %909 = vmatmul.f32.gmra.mxu0 %v822
        %v910 = vpop.f32.mrf.mxu0
        %911 = vmatmul.f32.gmra.mxu0 %v824
        %v912 = vpop.f32.mrf.mxu0
        %v913 = vadd.f32 %v682, %v912
        %914 = vmatmul.f32.gmra.mxu0 %v826
        %v915 = vpop.f32.mrf.mxu0
        %v916 = vadd.f32 %v685, %v915
        %917 = vmatmul.f32.gmra.mxu0 %v828
        %v918 = vpop.f32.mrf.mxu0
        %919 = vmatmul.f32.gmra.mxu0 %v830
        %v920 = vpop.f32.mrf.mxu0
        %921 = vmatmul.f32.gmra.mxu0 %v832
        %v922 = vpop.f32.mrf.mxu0
        %v923 = vadd.f32 %v692, %v922
        %924 = vmatmul.f32.gmra.mxu0 %v834
        %v925 = vpop.f32.mrf.mxu0
        %v926 = vadd.f32 %v695, %v925
        %927 = vmatmul.f32.gmra.mxu0 %v836
        %v928 = vpop.f32.mrf.mxu0
        %929 = vmatmul.f32.gmra.mxu0 %v838
        %v930 = vpop.f32.mrf.mxu0
        %931 = vmatmul.f32.gmra.mxu0 %v840
        %v932 = vpop.f32.mrf.mxu0
        %v933 = vadd.f32 %v702, %v932
        %934 = vmatmul.f32.gmra.mxu0 %v842
        %v935 = vpop.f32.mrf.mxu0
        %v936 = vadd.f32 %v705, %v935
        %937 = vmatmul.f32.gmra.mxu0 %v844
        %v938 = vpop.f32.mrf.mxu0
        %939 = vmatmul.f32.gmra.mxu0 %v846
        %v940 = vpop.f32.mrf.mxu0
        %941 = vmatmul.f32.gmra.mxu0 %v848
        %v942 = vpop.f32.mrf.mxu0
        %v943 = vadd.f32 %v712, %v942
        %944 = vmatmul.f32.gmra.mxu0 %v850
        %v945 = vpop.f32.mrf.mxu0
        %v946 = vadd.f32 %v715, %v945
        %947 = vmatmul.f32.gmra.mxu0 %v852
        %v948 = vpop.f32.mrf.mxu0
        %949 = vmatmul.f32.gmra.mxu0 %v854
        %v950 = vpop.f32.mrf.mxu0
        %951 = vmatmul.f32.gmra.mxu0 %v856
        %v952 = vpop.f32.mrf.mxu0
        %v953 = vadd.f32 %v722, %v952
        %954 = vmatmul.f32.gmra.mxu0 %v858
        %v955 = vpop.f32.mrf.mxu0
        %v956 = vadd.f32 %v725, %v955
        %957 = vmatmul.f32.gmra.mxu0 %v860
        %v958 = vpop.f32.mrf.mxu0
        %959 = vmatmul.f32.gmra.mxu0 %v862
        %v960 = vpop.f32.mrf.mxu0
        %961 = vmatmul.f32.gmra.mxu0 %v864
        %v962 = vpop.f32.mrf.mxu0
        %v963 = vadd.f32 %v732, %v962
        %964 = vmatmul.f32.gmra.mxu0 %v866
        %v965 = vpop.f32.mrf.mxu0
        %v966 = vadd.f32 %v735, %v965
        %967 = vmatmul.f32.gmra.mxu0 %v868
        %v968 = vpop.f32.mrf.mxu0
        %969 = vmatmul.f32.gmra.mxu0 %v870
        %v970 = vpop.f32.mrf.mxu0
        %971 = vdwg.mxu0
        %s972 = scalar_lea.vmem %s3, 8
        %v973 = vld [vmem:[%s972] sm:$0xf]
        %v978 = vrot.slane %v530, 7
        %v979 = vsel %vm742, %v806, %v978
        %v980 = vrot.slane %v531, 7
        %v981 = vsel %vm742, %v978, %v980
        %v982 = vrot.slane %v532, 7
        %v983 = vsel %vm742, %v980, %v982
        %v984 = vrot.slane %v533, 7
        %v985 = vsel %vm742, %v982, %v984
        %v986 = vsel %vm408, %v979, 0
        %v988 = vsel %vm408, %v981, 0
        %v990 = vsel %vm408, %v983, 0
        %v992 = vsel %vm408, %v985, 0
        %v995 = vsel %vm640, %v973, 0
        %997 = vmatpush.msra.mxu0 0.0
        %998 = vmatpush.msra.mxu0 0.0
        %999 = vmatpush.msra.mxu0 0.0
        %1000 = vmatpush.msra.mxu0 0.0
        %1001 = vmatpush.msra.mxu0 0.0
        %1002 = vmatpush.msra.mxu0 0.0
        %1003 = vmatpush.msra.mxu0 0.0
        %1004 = vmatpush.msra.mxu0 0.0
        %1005 = vmatpush.msra.mxu0 0.0
        %1006 = vmatpush.msra.mxu0 0.0
        %1007 = vmatpush.msra.mxu0 0.0
        %1008 = vmatpush.msra.mxu0 0.0
        %1009 = vmatpush.msra.mxu0 0.0
        %1010 = vmatpush.msra.mxu0 0.0
        %1011 = vmatpush.msra.mxu0 0.0
        %1012 = vmatpush.msra.mxu0 %v995
        %1013 = vmatmul.f32.gmra.mxu0 %v816
        %v1014 = vpop.f32.mrf.mxu0
        %v1015 = vadd.f32 0.0, %v1014
        %1016 = vmatmul.f32.gmra.mxu0 %v818
        %v1017 = vpop.f32.mrf.mxu0
        %v1018 = vadd.f32 0.0, %v1017
        %1019 = vmatmul.f32.gmra.mxu0 %v820
        %v1020 = vpop.f32.mrf.mxu0
        %1021 = vmatmul.f32.gmra.mxu0 %v822
        %v1022 = vpop.f32.mrf.mxu0
        %1023 = vmatmul.f32.gmra.mxu0 %v824
        %v1024 = vpop.f32.mrf.mxu0
        %v1025 = vadd.f32 0.0, %v1024
        %1026 = vmatmul.f32.gmra.mxu0 %v826
        %v1027 = vpop.f32.mrf.mxu0
        %v1028 = vadd.f32 0.0, %v1027
        %1029 = vmatmul.f32.gmra.mxu0 %v828
        %v1030 = vpop.f32.mrf.mxu0
        %1031 = vmatmul.f32.gmra.mxu0 %v830
        %v1032 = vpop.f32.mrf.mxu0
        %1033 = vmatmul.f32.gmra.mxu0 %v832
        %v1034 = vpop.f32.mrf.mxu0
        %v1035 = vadd.f32 0.0, %v1034
        %1036 = vmatmul.f32.gmra.mxu0 %v834
        %v1037 = vpop.f32.mrf.mxu0
        %v1038 = vadd.f32 0.0, %v1037
        %1039 = vmatmul.f32.gmra.mxu0 %v836
        %v1040 = vpop.f32.mrf.mxu0
        %1041 = vmatmul.f32.gmra.mxu0 %v838
        %v1042 = vpop.f32.mrf.mxu0
        %1043 = vmatmul.f32.gmra.mxu0 %v840
        %v1044 = vpop.f32.mrf.mxu0
        %v1045 = vadd.f32 0.0, %v1044
        %1046 = vmatmul.f32.gmra.mxu0 %v842
        %v1047 = vpop.f32.mrf.mxu0
        %v1048 = vadd.f32 0.0, %v1047
        %1049 = vmatmul.f32.gmra.mxu0 %v844
        %v1050 = vpop.f32.mrf.mxu0
        %1051 = vmatmul.f32.gmra.mxu0 %v846
        %v1052 = vpop.f32.mrf.mxu0
        %1053 = vmatmul.f32.gmra.mxu0 %v848
        %v1054 = vpop.f32.mrf.mxu0
        %v1055 = vadd.f32 0.0, %v1054
        %1056 = vmatmul.f32.gmra.mxu0 %v850
        %v1057 = vpop.f32.mrf.mxu0
        %v1058 = vadd.f32 0.0, %v1057
        %1059 = vmatmul.f32.gmra.mxu0 %v852
        %v1060 = vpop.f32.mrf.mxu0
        %1061 = vmatmul.f32.gmra.mxu0 %v854
        %v1062 = vpop.f32.mrf.mxu0
        %1063 = vmatmul.f32.gmra.mxu0 %v856
        %v1064 = vpop.f32.mrf.mxu0
        %v1065 = vadd.f32 0.0, %v1064
        %1066 = vmatmul.f32.gmra.mxu0 %v858
        %v1067 = vpop.f32.mrf.mxu0
        %v1068 = vadd.f32 0.0, %v1067
        %1069 = vmatmul.f32.gmra.mxu0 %v860
        %v1070 = vpop.f32.mrf.mxu0
        %1071 = vmatmul.f32.gmra.mxu0 %v862
        %v1072 = vpop.f32.mrf.mxu0
        %1073 = vmatmul.f32.gmra.mxu0 %v864
        %v1074 = vpop.f32.mrf.mxu0
        %v1075 = vadd.f32 0.0, %v1074
        %1076 = vmatmul.f32.gmra.mxu0 %v866
        %v1077 = vpop.f32.mrf.mxu0
        %v1078 = vadd.f32 0.0, %v1077
        %1079 = vmatmul.f32.gmra.mxu0 %v868
        %v1080 = vpop.f32.mrf.mxu0
        %1081 = vmatmul.f32.gmra.mxu0 %v870
        %v1082 = vpop.f32.mrf.mxu0
        %1083 = vmatmul.f32.gmra.mxu0 %v986
        %v1084 = vpop.f32.mrf.mxu0
        %v1085 = vadd.f32 0.0, %v1084
        %1086 = vmatmul.f32.gmra.mxu0 %v988
        %v1087 = vpop.f32.mrf.mxu0
        %v1088 = vadd.f32 0.0, %v1087
        %1089 = vmatmul.f32.gmra.mxu0 %v990
        %v1090 = vpop.f32.mrf.mxu0
        %1091 = vmatmul.f32.gmra.mxu0 %v992
        %v1092 = vpop.f32.mrf.mxu0
        %1093 = vdwg.mxu0
        %v1094 = vadd.f32 %v893, %v1015
        %v1095 = vadd.f32 %v896, %v1018
        %v1096 = vadd.f32 %v903, %v1025
        %v1097 = vadd.f32 %v906, %v1028
        %v1098 = vadd.f32 %v913, %v1035
        %v1099 = vadd.f32 %v916, %v1038
        %v1100 = vadd.f32 %v923, %v1045
        %v1101 = vadd.f32 %v926, %v1048
        %v1102 = vadd.f32 %v933, %v1055
        %v1103 = vadd.f32 %v936, %v1058
        %v1104 = vadd.f32 %v943, %v1065
        %v1105 = vadd.f32 %v946, %v1068
        %v1106 = vadd.f32 %v953, %v1075
        %v1107 = vadd.f32 %v956, %v1078
        %v1108 = vadd.f32 %v963, %v1085
        %v1109 = vadd.f32 %v966, %v1088
        %s1110 = scalar_lea.vmem %s3, 12
        %v1111 = vld [vmem:[%s1110] sm:$0xf]
        %v1112 = vsel %vm408, %v530, 0
        %v1114 = vsel %vm408, %v531, 0
        %v1116 = vsel %vm408, %v532, 0
        %v1118 = vsel %vm408, %v533, 0
        %v1121 = vsel %vm640, %v1111, 0
        %1123 = vmatpush.msra.mxu0 0.0
        %1124 = vmatpush.msra.mxu0 0.0
        %1125 = vmatpush.msra.mxu0 0.0
        %1126 = vmatpush.msra.mxu0 0.0
        %1127 = vmatpush.msra.mxu0 0.0
        %1128 = vmatpush.msra.mxu0 0.0
        %1129 = vmatpush.msra.mxu0 0.0
        %1130 = vmatpush.msra.mxu0 0.0
        %1131 = vmatpush.msra.mxu0 0.0
        %1132 = vmatpush.msra.mxu0 0.0
        %1133 = vmatpush.msra.mxu0 0.0
        %1134 = vmatpush.msra.mxu0 0.0
        %1135 = vmatpush.msra.mxu0 0.0
        %1136 = vmatpush.msra.mxu0 0.0
        %1137 = vmatpush.msra.mxu0 0.0
        %1138 = vmatpush.msra.mxu0 %v1121
        %1139 = vmatmul.f32.gmra.mxu0 %v557
        %v1140 = vpop.f32.mrf.mxu0
        %v1141 = vadd.f32 0.0, %v1140
        %1142 = vmatmul.f32.gmra.mxu0 %v560
        %v1143 = vpop.f32.mrf.mxu0
        %v1144 = vadd.f32 0.0, %v1143
        %1145 = vmatmul.f32.gmra.mxu0 %v563
        %v1146 = vpop.f32.mrf.mxu0
        %1147 = vmatmul.f32.gmra.mxu0 %v566
        %v1148 = vpop.f32.mrf.mxu0
        %1149 = vmatmul.f32.gmra.mxu0 %v569
        %v1150 = vpop.f32.mrf.mxu0
        %v1151 = vadd.f32 0.0, %v1150
        %1152 = vmatmul.f32.gmra.mxu0 %v572
        %v1153 = vpop.f32.mrf.mxu0
        %v1154 = vadd.f32 0.0, %v1153
        %1155 = vmatmul.f32.gmra.mxu0 %v575
        %v1156 = vpop.f32.mrf.mxu0
        %1157 = vmatmul.f32.gmra.mxu0 %v578
        %v1158 = vpop.f32.mrf.mxu0
        %1159 = vmatmul.f32.gmra.mxu0 %v581
        %v1160 = vpop.f32.mrf.mxu0
        %v1161 = vadd.f32 0.0, %v1160
        %1162 = vmatmul.f32.gmra.mxu0 %v584
        %v1163 = vpop.f32.mrf.mxu0
        %v1164 = vadd.f32 0.0, %v1163
        %1165 = vmatmul.f32.gmra.mxu0 %v587
        %v1166 = vpop.f32.mrf.mxu0
        %1167 = vmatmul.f32.gmra.mxu0 %v590
        %v1168 = vpop.f32.mrf.mxu0
        %1169 = vmatmul.f32.gmra.mxu0 %v593
        %v1170 = vpop.f32.mrf.mxu0
        %v1171 = vadd.f32 0.0, %v1170
        %1172 = vmatmul.f32.gmra.mxu0 %v596
        %v1173 = vpop.f32.mrf.mxu0
        %v1174 = vadd.f32 0.0, %v1173
        %1175 = vmatmul.f32.gmra.mxu0 %v599
        %v1176 = vpop.f32.mrf.mxu0
        %1177 = vmatmul.f32.gmra.mxu0 %v602
        %v1178 = vpop.f32.mrf.mxu0
        %1179 = vmatmul.f32.gmra.mxu0 %v605
        %v1180 = vpop.f32.mrf.mxu0
        %v1181 = vadd.f32 0.0, %v1180
        %1182 = vmatmul.f32.gmra.mxu0 %v608
        %v1183 = vpop.f32.mrf.mxu0
        %v1184 = vadd.f32 0.0, %v1183
        %1185 = vmatmul.f32.gmra.mxu0 %v611
        %v1186 = vpop.f32.mrf.mxu0
        %1187 = vmatmul.f32.gmra.mxu0 %v614
        %v1188 = vpop.f32.mrf.mxu0
        %1189 = vmatmul.f32.gmra.mxu0 %v617
        %v1190 = vpop.f32.mrf.mxu0
        %v1191 = vadd.f32 0.0, %v1190
        %1192 = vmatmul.f32.gmra.mxu0 %v620
        %v1193 = vpop.f32.mrf.mxu0
        %v1194 = vadd.f32 0.0, %v1193
        %1195 = vmatmul.f32.gmra.mxu0 %v623
        %v1196 = vpop.f32.mrf.mxu0
        %1197 = vmatmul.f32.gmra.mxu0 %v626
        %v1198 = vpop.f32.mrf.mxu0
        %1199 = vmatmul.f32.gmra.mxu0 %v629
        %v1200 = vpop.f32.mrf.mxu0
        %v1201 = vadd.f32 0.0, %v1200
        %1202 = vmatmul.f32.gmra.mxu0 %v632
        %v1203 = vpop.f32.mrf.mxu0
        %v1204 = vadd.f32 0.0, %v1203
        %1205 = vmatmul.f32.gmra.mxu0 %v635
        %v1206 = vpop.f32.mrf.mxu0
        %1207 = vmatmul.f32.gmra.mxu0 %v638
        %v1208 = vpop.f32.mrf.mxu0
        %1209 = vmatmul.f32.gmra.mxu0 %v1112
        %v1210 = vpop.f32.mrf.mxu0
        %v1211 = vadd.f32 0.0, %v1210
        %1212 = vmatmul.f32.gmra.mxu0 %v1114
        %v1213 = vpop.f32.mrf.mxu0
        %v1214 = vadd.f32 0.0, %v1213
        %1215 = vmatmul.f32.gmra.mxu0 %v1116
        %v1216 = vpop.f32.mrf.mxu0
        %1217 = vmatmul.f32.gmra.mxu0 %v1118
        %v1218 = vpop.f32.mrf.mxu0
        %1219 = vdwg.mxu0
        %v1220 = vadd.f32 %v1094, %v1141
        %v1221 = vadd.f32 %v1095, %v1144
        %v1222 = vadd.f32 %v1096, %v1151
        %v1223 = vadd.f32 %v1097, %v1154
        %v1224 = vadd.f32 %v1098, %v1161
        %v1225 = vadd.f32 %v1099, %v1164
        %v1226 = vadd.f32 %v1100, %v1171
        %v1227 = vadd.f32 %v1101, %v1174
        %v1228 = vadd.f32 %v1102, %v1181
        %v1229 = vadd.f32 %v1103, %v1184
        %v1230 = vadd.f32 %v1104, %v1191
        %v1231 = vadd.f32 %v1105, %v1194
        %v1232 = vadd.f32 %v1106, %v1201
        %v1233 = vadd.f32 %v1107, %v1204
        %v1234 = vadd.f32 %v1108, %v1211
        %v1235 = vadd.f32 %v1109, %v1214
        %v1237 = vperm.slane %v539, 0
        %v1239 = vmul.f32 %v1220, %v1237
        %v1240 = vmul.f32 %v1221, %v1237
        %v1241 = vmul.f32 %v1222, %v1237
        %v1242 = vmul.f32 %v1223, %v1237
        %v1243 = vmul.f32 %v1224, %v1237
        %v1244 = vmul.f32 %v1225, %v1237
        %v1245 = vmul.f32 %v1226, %v1237
        %v1246 = vmul.f32 %v1227, %v1237
        %v1247 = vmul.f32 %v1228, %v1237
        %v1248 = vmul.f32 %v1229, %v1237
        %v1249 = vmul.f32 %v1230, %v1237
        %v1250 = vmul.f32 %v1231, %v1237
        %v1251 = vmul.f32 %v1232, %v1237
        %v1252 = vmul.f32 %v1233, %v1237
        %v1253 = vmul.f32 %v1234, %v1237
        %v1254 = vmul.f32 %v1235, %v1237
        %v1256 = vperm.slane %v540, 0
        %v1258 = vadd.f32 %v1239, %v1256
        %v1259 = vadd.f32 %v1240, %v1256
        %v1260 = vadd.f32 %v1241, %v1256
        %v1261 = vadd.f32 %v1242, %v1256
        %v1262 = vadd.f32 %v1243, %v1256
        %v1263 = vadd.f32 %v1244, %v1256
        %v1264 = vadd.f32 %v1245, %v1256
        %v1265 = vadd.f32 %v1246, %v1256
        %v1266 = vadd.f32 %v1247, %v1256
        %v1267 = vadd.f32 %v1248, %v1256
        %v1268 = vadd.f32 %v1249, %v1256
        %v1269 = vadd.f32 %v1250, %v1256
        %v1270 = vadd.f32 %v1251, %v1256
        %v1271 = vadd.f32 %v1252, %v1256
        %v1272 = vadd.f32 %v1253, %v1256
        %v1273 = vadd.f32 %v1254, %v1256
        %v1274 = vmax.f32 %v1258, 0.0
        %v1275 = vmax.f32 %v1259, 0.0
        %v1276 = vmax.f32 %v1260, 0.0
        %v1277 = vmax.f32 %v1261, 0.0
        %v1278 = vmax.f32 %v1262, 0.0
        %v1279 = vmax.f32 %v1263, 0.0
        %v1280 = vmax.f32 %v1264, 0.0
        %v1281 = vmax.f32 %v1265, 0.0
        %v1282 = vmax.f32 %v1266, 0.0
        %v1283 = vmax.f32 %v1267, 0.0
        %v1284 = vmax.f32 %v1268, 0.0
        %v1285 = vmax.f32 %v1269, 0.0
        %v1286 = vmax.f32 %v1270, 0.0
        %v1287 = vmax.f32 %v1271, 0.0
        %v1288 = vmax.f32 %v1272, 0.0
        %v1289 = vmax.f32 %v1273, 0.0
        %s1290 = scalar_lea.vmem %s3, 16
        %v1291 = vld [vmem:[%s1290] sm:$0xf]
        %s1292 = scalar_lea.vmem %s3, 20
        %v1293 = vld [vmem:[%s1292] sm:$0xf]
        %vm1294 = vcmask 1046528
        %v1295 = vrot.slane %v498, 1
        %v1296 = vrot.slane %v499, 1
        %v1297 = vsel %vm1294, %v1295, %v1296
        %v1298 = vrot.slane %v500, 1
        %v1299 = vsel %vm1294, %v1296, %v1298
        %v1300 = vrot.slane %v501, 1
        %v1301 = vsel %vm1294, %v1298, %v1300
        %v1302 = vrot.slane %v502, 1
        %v1303 = vsel %vm1294, %v1300, %v1302
        %v1304 = vrot.slane %v503, 1
        %v1305 = vsel %vm1294, %v1302, %v1304
        %v1306 = vrot.slane %v504, 1
        %v1307 = vsel %vm1294, %v1304, %v1306
        %v1308 = vrot.slane %v505, 1
        %v1309 = vsel %vm1294, %v1306, %v1308
        %v1310 = vrot.slane %v506, 1
        %v1311 = vsel %vm1294, %v1308, %v1310
        %v1312 = vrot.slane %v507, 1
        %v1313 = vsel %vm1294, %v1310, %v1312
        %v1314 = vrot.slane %v508, 1
        %v1315 = vsel %vm1294, %v1312, %v1314
        %v1316 = vrot.slane %v509, 1
        %v1317 = vsel %vm1294, %v1314, %v1316
        %v1318 = vrot.slane %v510, 1
        %v1319 = vsel %vm1294, %v1316, %v1318
        %v1320 = vrot.slane %v511, 1
        %v1321 = vsel %vm1294, %v1318, %v1320
        %v1322 = vrot.slane %v512, 1
        %v1323 = vsel %vm1294, %v1320, %v1322
        %v1324 = vrot.slane %v513, 1
        %v1325 = vsel %vm1294, %v1322, %v1324
        %v1326 = vrot.slane %v514, 1
        %v1327 = vsel %vm1294, %v1324, %v1326
        %v1328 = vrot.slane %v515, 1
        %v1329 = vsel %vm1294, %v1326, %v1328
        %v1330 = vrot.slane %v516, 1
        %v1331 = vsel %vm1294, %v1328, %v1330
        %v1332 = vrot.slane %v517, 1
        %v1333 = vsel %vm1294, %v1330, %v1332
        %v1334 = vrot.slane %v518, 1
        %v1335 = vsel %vm1294, %v1332, %v1334
        %v1336 = vrot.slane %v519, 1
        %v1337 = vsel %vm1294, %v1334, %v1336
        %v1338 = vrot.slane %v520, 1
        %v1339 = vsel %vm1294, %v1336, %v1338
        %v1340 = vrot.slane %v521, 1
        %v1341 = vsel %vm1294, %v1338, %v1340
        %v1342 = vrot.slane %v522, 1
        %v1343 = vsel %vm1294, %v1340, %v1342
        %v1344 = vrot.slane %v523, 1
        %v1345 = vsel %vm1294, %v1342, %v1344
        %v1346 = vrot.slane %v524, 1
        %v1347 = vsel %vm1294, %v1344, %v1346
        %v1348 = vrot.slane %v525, 1
        %v1349 = vsel %vm1294, %v1346, %v1348
        %v1350 = vrot.slane %v526, 1
        %v1351 = vsel %vm1294, %v1348, %v1350
        %v1352 = vrot.slane %v527, 1
        %v1353 = vsel %vm1294, %v1350, %v1352
        %v1354 = vrot.slane %v528, 1
        %v1355 = vsel %vm1294, %v1352, %v1354
        %v1356 = vrot.slane %v529, 1
        %v1357 = vsel %vm1294, %v1354, %v1356
        %v1358 = vrot.slane %v530, 1
        %v1359 = vsel %vm1294, %v1356, %v1358
        %v1360 = vsel %vm408, %v1297, 0
        %v1362 = vsel %vm408, %v1299, 0
        %v1364 = vsel %vm408, %v1301, 0
        %v1366 = vsel %vm408, %v1303, 0
        %v1368 = vsel %vm408, %v1305, 0
        %v1370 = vsel %vm408, %v1307, 0
        %v1372 = vsel %vm408, %v1309, 0
        %v1374 = vsel %vm408, %v1311, 0
        %v1376 = vsel %vm408, %v1313, 0
        %v1378 = vsel %vm408, %v1315, 0
        %v1380 = vsel %vm408, %v1317, 0
        %v1382 = vsel %vm408, %v1319, 0
        %v1384 = vsel %vm408, %v1321, 0
        %v1386 = vsel %vm408, %v1323, 0
        %v1388 = vsel %vm408, %v1325, 0
        %v1390 = vsel %vm408, %v1327, 0
        %v1392 = vsel %vm408, %v1329, 0
        %v1394 = vsel %vm408, %v1331, 0
        %v1396 = vsel %vm408, %v1333, 0
        %v1398 = vsel %vm408, %v1335, 0
        %v1400 = vsel %vm408, %v1337, 0
        %v1402 = vsel %vm408, %v1339, 0
        %v1404 = vsel %vm408, %v1341, 0
        %v1406 = vsel %vm408, %v1343, 0
        %v1408 = vsel %vm408, %v1345, 0
        %v1410 = vsel %vm408, %v1347, 0
        %v1412 = vsel %vm408, %v1349, 0
        %v1414 = vsel %vm408, %v1351, 0
        %v1416 = vsel %vm408, %v1353, 0
        %v1418 = vsel %vm408, %v1355, 0
        %v1420 = vsel %vm408, %v1357, 0
        %v1422 = vsel %vm408, %v1359, 0
        %v1425 = vsel %vm640, %v1293, 0
        %1427 = vmatpush.msra.mxu0 0.0
        %1428 = vmatpush.msra.mxu0 0.0
        %1429 = vmatpush.msra.mxu0 0.0
        %1430 = vmatpush.msra.mxu0 0.0
        %1431 = vmatpush.msra.mxu0 0.0
        %1432 = vmatpush.msra.mxu0 0.0
        %1433 = vmatpush.msra.mxu0 0.0
        %1434 = vmatpush.msra.mxu0 0.0
        %1435 = vmatpush.msra.mxu0 0.0
        %1436 = vmatpush.msra.mxu0 0.0
        %1437 = vmatpush.msra.mxu0 0.0
        %1438 = vmatpush.msra.mxu0 0.0
        %1439 = vmatpush.msra.mxu0 0.0
        %1440 = vmatpush.msra.mxu0 0.0
        %1441 = vmatpush.msra.mxu0 0.0
        %1442 = vmatpush.msra.mxu0 %v1425
        %1443 = vmatmul.f32.gmra.mxu0 %v1360
        %v1444 = vpop.f32.mrf.mxu0
        %v1445 = vadd.f32 0.0, %v1444
        %1446 = vmatmul.f32.gmra.mxu0 %v1362
        %v1447 = vpop.f32.mrf.mxu0
        %v1448 = vadd.f32 0.0, %v1447
        %1449 = vmatmul.f32.gmra.mxu0 %v1364
        %v1450 = vpop.f32.mrf.mxu0
        %1451 = vmatmul.f32.gmra.mxu0 %v1366
        %v1452 = vpop.f32.mrf.mxu0
        %1453 = vmatmul.f32.gmra.mxu0 %v1368
        %v1454 = vpop.f32.mrf.mxu0
        %v1455 = vadd.f32 0.0, %v1454
        %1456 = vmatmul.f32.gmra.mxu0 %v1370
        %v1457 = vpop.f32.mrf.mxu0
        %v1458 = vadd.f32 0.0, %v1457
        %1459 = vmatmul.f32.gmra.mxu0 %v1372
        %v1460 = vpop.f32.mrf.mxu0
        %1461 = vmatmul.f32.gmra.mxu0 %v1374
        %v1462 = vpop.f32.mrf.mxu0
        %1463 = vmatmul.f32.gmra.mxu0 %v1376
        %v1464 = vpop.f32.mrf.mxu0
        %v1465 = vadd.f32 0.0, %v1464
        %1466 = vmatmul.f32.gmra.mxu0 %v1378
        %v1467 = vpop.f32.mrf.mxu0
        %v1468 = vadd.f32 0.0, %v1467
        %1469 = vmatmul.f32.gmra.mxu0 %v1380
        %v1470 = vpop.f32.mrf.mxu0
        %1471 = vmatmul.f32.gmra.mxu0 %v1382
        %v1472 = vpop.f32.mrf.mxu0
        %1473 = vmatmul.f32.gmra.mxu0 %v1384
        %v1474 = vpop.f32.mrf.mxu0
        %v1475 = vadd.f32 0.0, %v1474
        %1476 = vmatmul.f32.gmra.mxu0 %v1386
        %v1477 = vpop.f32.mrf.mxu0
        %v1478 = vadd.f32 0.0, %v1477
        %1479 = vmatmul.f32.gmra.mxu0 %v1388
        %v1480 = vpop.f32.mrf.mxu0
        %1481 = vmatmul.f32.gmra.mxu0 %v1390
        %v1482 = vpop.f32.mrf.mxu0
        %1483 = vmatmul.f32.gmra.mxu0 %v1392
        %v1484 = vpop.f32.mrf.mxu0
        %v1485 = vadd.f32 0.0, %v1484
        %1486 = vmatmul.f32.gmra.mxu0 %v1394
        %v1487 = vpop.f32.mrf.mxu0
        %v1488 = vadd.f32 0.0, %v1487
        %1489 = vmatmul.f32.gmra.mxu0 %v1396
        %v1490 = vpop.f32.mrf.mxu0
        %1491 = vmatmul.f32.gmra.mxu0 %v1398
        %v1492 = vpop.f32.mrf.mxu0
        %1493 = vmatmul.f32.gmra.mxu0 %v1400
        %v1494 = vpop.f32.mrf.mxu0
        %v1495 = vadd.f32 0.0, %v1494
        %1496 = vmatmul.f32.gmra.mxu0 %v1402
        %v1497 = vpop.f32.mrf.mxu0
        %v1498 = vadd.f32 0.0, %v1497
        %1499 = vmatmul.f32.gmra.mxu0 %v1404
        %v1500 = vpop.f32.mrf.mxu0
        %1501 = vmatmul.f32.gmra.mxu0 %v1406
        %v1502 = vpop.f32.mrf.mxu0
        %1503 = vmatmul.f32.gmra.mxu0 %v1408
        %v1504 = vpop.f32.mrf.mxu0
        %v1505 = vadd.f32 0.0, %v1504
        %1506 = vmatmul.f32.gmra.mxu0 %v1410
        %v1507 = vpop.f32.mrf.mxu0
        %v1508 = vadd.f32 0.0, %v1507
        %1509 = vmatmul.f32.gmra.mxu0 %v1412
        %v1510 = vpop.f32.mrf.mxu0
        %1511 = vmatmul.f32.gmra.mxu0 %v1414
        %v1512 = vpop.f32.mrf.mxu0
        %1513 = vmatmul.f32.gmra.mxu0 %v1416
        %v1514 = vpop.f32.mrf.mxu0
        %v1515 = vadd.f32 0.0, %v1514
        %1516 = vmatmul.f32.gmra.mxu0 %v1418
        %v1517 = vpop.f32.mrf.mxu0
        %v1518 = vadd.f32 0.0, %v1517
        %1519 = vmatmul.f32.gmra.mxu0 %v1420
        %v1520 = vpop.f32.mrf.mxu0
        %1521 = vmatmul.f32.gmra.mxu0 %v1422
        %v1522 = vpop.f32.mrf.mxu0
        %1523 = vdwg.mxu0
        %v1525 = vsel %vm640, %v1291, 0
        %1527 = vmatpush.msra.mxu0 0.0
        %1528 = vmatpush.msra.mxu0 0.0
        %1529 = vmatpush.msra.mxu0 0.0
        %1530 = vmatpush.msra.mxu0 0.0
        %1531 = vmatpush.msra.mxu0 0.0
        %1532 = vmatpush.msra.mxu0 0.0
        %1533 = vmatpush.msra.mxu0 0.0
        %1534 = vmatpush.msra.mxu0 0.0
        %1535 = vmatpush.msra.mxu0 0.0
        %1536 = vmatpush.msra.mxu0 0.0
        %1537 = vmatpush.msra.mxu0 0.0
        %1538 = vmatpush.msra.mxu0 0.0
        %1539 = vmatpush.msra.mxu0 0.0
        %1540 = vmatpush.msra.mxu0 0.0
        %1541 = vmatpush.msra.mxu0 0.0
        %1542 = vmatpush.msra.mxu0 %v1525
        %1543 = vmatmul.f32.gmra.mxu0 %v545
        %v1544 = vpop.f32.mrf.mxu0
        %v1545 = vadd.f32 %v1445, %v1544
        %1546 = vmatmul.f32.gmra.mxu0 %v548
        %v1547 = vpop.f32.mrf.mxu0
        %v1548 = vadd.f32 %v1448, %v1547
        %1549 = vmatmul.f32.gmra.mxu0 %v551
        %v1550 = vpop.f32.mrf.mxu0
        %1551 = vmatmul.f32.gmra.mxu0 %v554
        %v1552 = vpop.f32.mrf.mxu0
        %1553 = vmatmul.f32.gmra.mxu0 %v557
        %v1554 = vpop.f32.mrf.mxu0
        %v1555 = vadd.f32 %v1455, %v1554
        %1556 = vmatmul.f32.gmra.mxu0 %v560
        %v1557 = vpop.f32.mrf.mxu0
        %v1558 = vadd.f32 %v1458, %v1557
        %1559 = vmatmul.f32.gmra.mxu0 %v563
        %v1560 = vpop.f32.mrf.mxu0
        %1561 = vmatmul.f32.gmra.mxu0 %v566
        %v1562 = vpop.f32.mrf.mxu0
        %1563 = vmatmul.f32.gmra.mxu0 %v569
        %v1564 = vpop.f32.mrf.mxu0
        %v1565 = vadd.f32 %v1465, %v1564
        %1566 = vmatmul.f32.gmra.mxu0 %v572
        %v1567 = vpop.f32.mrf.mxu0
        %v1568 = vadd.f32 %v1468, %v1567
        %1569 = vmatmul.f32.gmra.mxu0 %v575
        %v1570 = vpop.f32.mrf.mxu0
        %1571 = vmatmul.f32.gmra.mxu0 %v578
        %v1572 = vpop.f32.mrf.mxu0
        %1573 = vmatmul.f32.gmra.mxu0 %v581
        %v1574 = vpop.f32.mrf.mxu0
        %v1575 = vadd.f32 %v1475, %v1574
        %1576 = vmatmul.f32.gmra.mxu0 %v584
        %v1577 = vpop.f32.mrf.mxu0
        %v1578 = vadd.f32 %v1478, %v1577
        %1579 = vmatmul.f32.gmra.mxu0 %v587
        %v1580 = vpop.f32.mrf.mxu0
        %1581 = vmatmul.f32.gmra.mxu0 %v590
        %v1582 = vpop.f32.mrf.mxu0
        %1583 = vmatmul.f32.gmra.mxu0 %v593
        %v1584 = vpop.f32.mrf.mxu0
        %v1585 = vadd.f32 %v1485, %v1584
        %1586 = vmatmul.f32.gmra.mxu0 %v596
        %v1587 = vpop.f32.mrf.mxu0
        %v1588 = vadd.f32 %v1488, %v1587
        %1589 = vmatmul.f32.gmra.mxu0 %v599
        %v1590 = vpop.f32.mrf.mxu0
        %1591 = vmatmul.f32.gmra.mxu0 %v602
        %v1592 = vpop.f32.mrf.mxu0
        %1593 = vmatmul.f32.gmra.mxu0 %v605
        %v1594 = vpop.f32.mrf.mxu0
        %v1595 = vadd.f32 %v1495, %v1594
        %1596 = vmatmul.f32.gmra.mxu0 %v608
        %v1597 = vpop.f32.mrf.mxu0
        %v1598 = vadd.f32 %v1498, %v1597
        %1599 = vmatmul.f32.gmra.mxu0 %v611
        %v1600 = vpop.f32.mrf.mxu0
        %1601 = vmatmul.f32.gmra.mxu0 %v614
        %v1602 = vpop.f32.mrf.mxu0
        %1603 = vmatmul.f32.gmra.mxu0 %v617
        %v1604 = vpop.f32.mrf.mxu0
        %v1605 = vadd.f32 %v1505, %v1604
        %1606 = vmatmul.f32.gmra.mxu0 %v620
        %v1607 = vpop.f32.mrf.mxu0
        %v1608 = vadd.f32 %v1508, %v1607
        %1609 = vmatmul.f32.gmra.mxu0 %v623
        %v1610 = vpop.f32.mrf.mxu0
        %1611 = vmatmul.f32.gmra.mxu0 %v626
        %v1612 = vpop.f32.mrf.mxu0
        %1613 = vmatmul.f32.gmra.mxu0 %v629
        %v1614 = vpop.f32.mrf.mxu0
        %v1615 = vadd.f32 %v1515, %v1614
        %1616 = vmatmul.f32.gmra.mxu0 %v632
        %v1617 = vpop.f32.mrf.mxu0
        %v1618 = vadd.f32 %v1518, %v1617
        %1619 = vmatmul.f32.gmra.mxu0 %v635
        %v1620 = vpop.f32.mrf.mxu0
        %1621 = vmatmul.f32.gmra.mxu0 %v638
        %v1622 = vpop.f32.mrf.mxu0
        %1623 = vdwg.mxu0
        %s1624 = scalar_lea.vmem %s3, 24
        %v1625 = vld [vmem:[%s1624] sm:$0xf]
        %v1627 = vsel %vm640, %v1625, 0
        %1629 = vmatpush.msra.mxu0 0.0
        %1630 = vmatpush.msra.mxu0 0.0
        %1631 = vmatpush.msra.mxu0 0.0
        %1632 = vmatpush.msra.mxu0 0.0
        %1633 = vmatpush.msra.mxu0 0.0
        %1634 = vmatpush.msra.mxu0 0.0
        %1635 = vmatpush.msra.mxu0 0.0
        %1636 = vmatpush.msra.mxu0 0.0
        %1637 = vmatpush.msra.mxu0 0.0
        %1638 = vmatpush.msra.mxu0 0.0
        %1639 = vmatpush.msra.mxu0 0.0
        %1640 = vmatpush.msra.mxu0 0.0
        %1641 = vmatpush.msra.mxu0 0.0
        %1642 = vmatpush.msra.mxu0 0.0
        %1643 = vmatpush.msra.mxu0 0.0
        %1644 = vmatpush.msra.mxu0 %v1627
        %1645 = vmatmul.f32.gmra.mxu0 %v557
        %v1646 = vpop.f32.mrf.mxu0
        %v1647 = vadd.f32 0.0, %v1646
        %1648 = vmatmul.f32.gmra.mxu0 %v560
        %v1649 = vpop.f32.mrf.mxu0
        %v1650 = vadd.f32 0.0, %v1649
        %1651 = vmatmul.f32.gmra.mxu0 %v563
        %v1652 = vpop.f32.mrf.mxu0
        %1653 = vmatmul.f32.gmra.mxu0 %v566
        %v1654 = vpop.f32.mrf.mxu0
        %1655 = vmatmul.f32.gmra.mxu0 %v569
        %v1656 = vpop.f32.mrf.mxu0
        %v1657 = vadd.f32 0.0, %v1656
        %1658 = vmatmul.f32.gmra.mxu0 %v572
        %v1659 = vpop.f32.mrf.mxu0
        %v1660 = vadd.f32 0.0, %v1659
        %1661 = vmatmul.f32.gmra.mxu0 %v575
        %v1662 = vpop.f32.mrf.mxu0
        %1663 = vmatmul.f32.gmra.mxu0 %v578
        %v1664 = vpop.f32.mrf.mxu0
        %1665 = vmatmul.f32.gmra.mxu0 %v581
        %v1666 = vpop.f32.mrf.mxu0
        %v1667 = vadd.f32 0.0, %v1666
        %1668 = vmatmul.f32.gmra.mxu0 %v584
        %v1669 = vpop.f32.mrf.mxu0
        %v1670 = vadd.f32 0.0, %v1669
        %1671 = vmatmul.f32.gmra.mxu0 %v587
        %v1672 = vpop.f32.mrf.mxu0
        %1673 = vmatmul.f32.gmra.mxu0 %v590
        %v1674 = vpop.f32.mrf.mxu0
        %1675 = vmatmul.f32.gmra.mxu0 %v593
        %v1676 = vpop.f32.mrf.mxu0
        %v1677 = vadd.f32 0.0, %v1676
        %1678 = vmatmul.f32.gmra.mxu0 %v596
        %v1679 = vpop.f32.mrf.mxu0
        %v1680 = vadd.f32 0.0, %v1679
        %1681 = vmatmul.f32.gmra.mxu0 %v599
        %v1682 = vpop.f32.mrf.mxu0
        %1683 = vmatmul.f32.gmra.mxu0 %v602
        %v1684 = vpop.f32.mrf.mxu0
        %1685 = vmatmul.f32.gmra.mxu0 %v605
        %v1686 = vpop.f32.mrf.mxu0
        %v1687 = vadd.f32 0.0, %v1686
        %1688 = vmatmul.f32.gmra.mxu0 %v608
        %v1689 = vpop.f32.mrf.mxu0
        %v1690 = vadd.f32 0.0, %v1689
        %1691 = vmatmul.f32.gmra.mxu0 %v611
        %v1692 = vpop.f32.mrf.mxu0
        %1693 = vmatmul.f32.gmra.mxu0 %v614
        %v1694 = vpop.f32.mrf.mxu0
        %1695 = vmatmul.f32.gmra.mxu0 %v617
        %v1696 = vpop.f32.mrf.mxu0
        %v1697 = vadd.f32 0.0, %v1696
        %1698 = vmatmul.f32.gmra.mxu0 %v620
        %v1699 = vpop.f32.mrf.mxu0
        %v1700 = vadd.f32 0.0, %v1699
        %1701 = vmatmul.f32.gmra.mxu0 %v623
        %v1702 = vpop.f32.mrf.mxu0
        %1703 = vmatmul.f32.gmra.mxu0 %v626
        %v1704 = vpop.f32.mrf.mxu0
        %1705 = vmatmul.f32.gmra.mxu0 %v629
        %v1706 = vpop.f32.mrf.mxu0
        %v1707 = vadd.f32 0.0, %v1706
        %1708 = vmatmul.f32.gmra.mxu0 %v632
        %v1709 = vpop.f32.mrf.mxu0
        %v1710 = vadd.f32 0.0, %v1709
        %1711 = vmatmul.f32.gmra.mxu0 %v635
        %v1712 = vpop.f32.mrf.mxu0
        %1713 = vmatmul.f32.gmra.mxu0 %v638
        %v1714 = vpop.f32.mrf.mxu0
        %1715 = vmatmul.f32.gmra.mxu0 %v1112
        %v1716 = vpop.f32.mrf.mxu0
        %v1717 = vadd.f32 0.0, %v1716
        %1718 = vmatmul.f32.gmra.mxu0 %v1114
        %v1719 = vpop.f32.mrf.mxu0
        %v1720 = vadd.f32 0.0, %v1719
        %1721 = vmatmul.f32.gmra.mxu0 %v1116
        %v1722 = vpop.f32.mrf.mxu0
        %1723 = vmatmul.f32.gmra.mxu0 %v1118
        %v1724 = vpop.f32.mrf.mxu0
        %1725 = vdwg.mxu0
        %v1726 = vadd.f32 %v1545, %v1647
        %v1727 = vadd.f32 %v1548, %v1650
        %v1728 = vadd.f32 %v1555, %v1657
        %v1729 = vadd.f32 %v1558, %v1660
        %v1730 = vadd.f32 %v1565, %v1667
        %v1731 = vadd.f32 %v1568, %v1670
        %v1732 = vadd.f32 %v1575, %v1677
        %v1733 = vadd.f32 %v1578, %v1680
        %v1734 = vadd.f32 %v1585, %v1687
        %v1735 = vadd.f32 %v1588, %v1690
        %v1736 = vadd.f32 %v1595, %v1697
        %v1737 = vadd.f32 %v1598, %v1700
        %v1738 = vadd.f32 %v1605, %v1707
        %v1739 = vadd.f32 %v1608, %v1710
        %v1740 = vadd.f32 %v1615, %v1717
        %v1741 = vadd.f32 %v1618, %v1720
        %s1742 = scalar_lea.vmem %s3, 28
        %v1743 = vld [vmem:[%s1742] sm:$0xf]
        %v1745 = vrot.slane %v531, 1
        %v1746 = vsel %vm1294, %v1358, %v1745
        %v1747 = vrot.slane %v532, 1
        %v1748 = vsel %vm1294, %v1745, %v1747
        %v1749 = vrot.slane %v533, 1
        %v1750 = vsel %vm1294, %v1747, %v1749
        %v1751 = vrot.slane %v534, 1
        %v1752 = vsel %vm1294, %v1749, %v1751
        %v1753 = vsel %vm408, %v1746, 0
        %v1755 = vsel %vm408, %v1748, 0
        %v1757 = vsel %vm408, %v1750, 0
        %v1759 = vsel %vm408, %v1752, 0
        %v1762 = vsel %vm640, %v1743, 0
        %1764 = vmatpush.msra.mxu0 0.0
        %1765 = vmatpush.msra.mxu0 0.0
        %1766 = vmatpush.msra.mxu0 0.0
        %1767 = vmatpush.msra.mxu0 0.0
        %1768 = vmatpush.msra.mxu0 0.0
        %1769 = vmatpush.msra.mxu0 0.0
        %1770 = vmatpush.msra.mxu0 0.0
        %1771 = vmatpush.msra.mxu0 0.0
        %1772 = vmatpush.msra.mxu0 0.0
        %1773 = vmatpush.msra.mxu0 0.0
        %1774 = vmatpush.msra.mxu0 0.0
        %1775 = vmatpush.msra.mxu0 0.0
        %1776 = vmatpush.msra.mxu0 0.0
        %1777 = vmatpush.msra.mxu0 0.0
        %1778 = vmatpush.msra.mxu0 0.0
        %1779 = vmatpush.msra.mxu0 %v1762
        %1780 = vmatmul.f32.gmra.mxu0 %v1368
        %v1781 = vpop.f32.mrf.mxu0
        %v1782 = vadd.f32 0.0, %v1781
        %1783 = vmatmul.f32.gmra.mxu0 %v1370
        %v1784 = vpop.f32.mrf.mxu0
        %v1785 = vadd.f32 0.0, %v1784
        %1786 = vmatmul.f32.gmra.mxu0 %v1372
        %v1787 = vpop.f32.mrf.mxu0
        %1788 = vmatmul.f32.gmra.mxu0 %v1374
        %v1789 = vpop.f32.mrf.mxu0
        %1790 = vmatmul.f32.gmra.mxu0 %v1376
        %v1791 = vpop.f32.mrf.mxu0
        %v1792 = vadd.f32 0.0, %v1791
        %1793 = vmatmul.f32.gmra.mxu0 %v1378
        %v1794 = vpop.f32.mrf.mxu0
        %v1795 = vadd.f32 0.0, %v1794
        %1796 = vmatmul.f32.gmra.mxu0 %v1380
        %v1797 = vpop.f32.mrf.mxu0
        %1798 = vmatmul.f32.gmra.mxu0 %v1382
        %v1799 = vpop.f32.mrf.mxu0
        %1800 = vmatmul.f32.gmra.mxu0 %v1384
        %v1801 = vpop.f32.mrf.mxu0
        %v1802 = vadd.f32 0.0, %v1801
        %1803 = vmatmul.f32.gmra.mxu0 %v1386
        %v1804 = vpop.f32.mrf.mxu0
        %v1805 = vadd.f32 0.0, %v1804
        %1806 = vmatmul.f32.gmra.mxu0 %v1388
        %v1807 = vpop.f32.mrf.mxu0
        %1808 = vmatmul.f32.gmra.mxu0 %v1390
        %v1809 = vpop.f32.mrf.mxu0
        %1810 = vmatmul.f32.gmra.mxu0 %v1392
        %v1811 = vpop.f32.mrf.mxu0
        %v1812 = vadd.f32 0.0, %v1811
        %1813 = vmatmul.f32.gmra.mxu0 %v1394
        %v1814 = vpop.f32.mrf.mxu0
        %v1815 = vadd.f32 0.0, %v1814
        %1816 = vmatmul.f32.gmra.mxu0 %v1396
        %v1817 = vpop.f32.mrf.mxu0
        %1818 = vmatmul.f32.gmra.mxu0 %v1398
        %v1819 = vpop.f32.mrf.mxu0
        %1820 = vmatmul.f32.gmra.mxu0 %v1400
        %v1821 = vpop.f32.mrf.mxu0
        %v1822 = vadd.f32 0.0, %v1821
        %1823 = vmatmul.f32.gmra.mxu0 %v1402
        %v1824 = vpop.f32.mrf.mxu0
        %v1825 = vadd.f32 0.0, %v1824
        %1826 = vmatmul.f32.gmra.mxu0 %v1404
        %v1827 = vpop.f32.mrf.mxu0
        %1828 = vmatmul.f32.gmra.mxu0 %v1406
        %v1829 = vpop.f32.mrf.mxu0
        %1830 = vmatmul.f32.gmra.mxu0 %v1408
        %v1831 = vpop.f32.mrf.mxu0
        %v1832 = vadd.f32 0.0, %v1831
        %1833 = vmatmul.f32.gmra.mxu0 %v1410
        %v1834 = vpop.f32.mrf.mxu0
        %v1835 = vadd.f32 0.0, %v1834
        %1836 = vmatmul.f32.gmra.mxu0 %v1412
        %v1837 = vpop.f32.mrf.mxu0
        %1838 = vmatmul.f32.gmra.mxu0 %v1414
        %v1839 = vpop.f32.mrf.mxu0
        %1840 = vmatmul.f32.gmra.mxu0 %v1416
        %v1841 = vpop.f32.mrf.mxu0
        %v1842 = vadd.f32 0.0, %v1841
        %1843 = vmatmul.f32.gmra.mxu0 %v1418
        %v1844 = vpop.f32.mrf.mxu0
        %v1845 = vadd.f32 0.0, %v1844
        %1846 = vmatmul.f32.gmra.mxu0 %v1420
        %v1847 = vpop.f32.mrf.mxu0
        %1848 = vmatmul.f32.gmra.mxu0 %v1422
        %v1849 = vpop.f32.mrf.mxu0
        %1850 = vmatmul.f32.gmra.mxu0 %v1753
        %v1851 = vpop.f32.mrf.mxu0
        %v1852 = vadd.f32 0.0, %v1851
        %1853 = vmatmul.f32.gmra.mxu0 %v1755
        %v1854 = vpop.f32.mrf.mxu0
        %v1855 = vadd.f32 0.0, %v1854
        %1856 = vmatmul.f32.gmra.mxu0 %v1757
        %v1857 = vpop.f32.mrf.mxu0
        %1858 = vmatmul.f32.gmra.mxu0 %v1759
        %v1859 = vpop.f32.mrf.mxu0
        %1860 = vdwg.mxu0
        %v1861 = vadd.f32 %v1726, %v1782
        %v1862 = vadd.f32 %v1727, %v1785
        %v1863 = vadd.f32 %v1728, %v1792
        %v1864 = vadd.f32 %v1729, %v1795
        %v1865 = vadd.f32 %v1730, %v1802
        %v1866 = vadd.f32 %v1731, %v1805
        %v1867 = vadd.f32 %v1732, %v1812
        %v1868 = vadd.f32 %v1733, %v1815
        %v1869 = vadd.f32 %v1734, %v1822
        %v1870 = vadd.f32 %v1735, %v1825
        %v1871 = vadd.f32 %v1736, %v1832
        %v1872 = vadd.f32 %v1737, %v1835
        %v1873 = vadd.f32 %v1738, %v1842
        %v1874 = vadd.f32 %v1739, %v1845
        %v1875 = vadd.f32 %v1740, %v1852
        %v1876 = vadd.f32 %v1741, %v1855
        %v1877 = vmul.f32 %v1861, %v1237
        %v1878 = vmul.f32 %v1862, %v1237
        %v1879 = vmul.f32 %v1863, %v1237
        %v1880 = vmul.f32 %v1864, %v1237
        %v1881 = vmul.f32 %v1865, %v1237
        %v1882 = vmul.f32 %v1866, %v1237
        %v1883 = vmul.f32 %v1867, %v1237
        %v1884 = vmul.f32 %v1868, %v1237
        %v1885 = vmul.f32 %v1869, %v1237
        %v1886 = vmul.f32 %v1870, %v1237
        %v1887 = vmul.f32 %v1871, %v1237
        %v1888 = vmul.f32 %v1872, %v1237
        %v1889 = vmul.f32 %v1873, %v1237
        %v1890 = vmul.f32 %v1874, %v1237
        %v1891 = vmul.f32 %v1875, %v1237
        %v1892 = vmul.f32 %v1876, %v1237
        %v1893 = vadd.f32 %v1877, %v1256
        %v1894 = vadd.f32 %v1878, %v1256
        %v1895 = vadd.f32 %v1879, %v1256
        %v1896 = vadd.f32 %v1880, %v1256
        %v1897 = vadd.f32 %v1881, %v1256
        %v1898 = vadd.f32 %v1882, %v1256
        %v1899 = vadd.f32 %v1883, %v1256
        %v1900 = vadd.f32 %v1884, %v1256
        %v1901 = vadd.f32 %v1885, %v1256
        %v1902 = vadd.f32 %v1886, %v1256
        %v1903 = vadd.f32 %v1887, %v1256
        %v1904 = vadd.f32 %v1888, %v1256
        %v1905 = vadd.f32 %v1889, %v1256
        %v1906 = vadd.f32 %v1890, %v1256
        %v1907 = vadd.f32 %v1891, %v1256
        %v1908 = vadd.f32 %v1892, %v1256
        %v1909 = vmax.f32 %v1893, 0.0
        %v1910 = vmax.f32 %v1894, 0.0
        %v1911 = vmax.f32 %v1895, 0.0
        %v1912 = vmax.f32 %v1896, 0.0
        %v1913 = vmax.f32 %v1897, 0.0
        %v1914 = vmax.f32 %v1898, 0.0
        %v1915 = vmax.f32 %v1899, 0.0
        %v1916 = vmax.f32 %v1900, 0.0
        %v1917 = vmax.f32 %v1901, 0.0
        %v1918 = vmax.f32 %v1902, 0.0
        %v1919 = vmax.f32 %v1903, 0.0
        %v1920 = vmax.f32 %v1904, 0.0
        %v1921 = vmax.f32 %v1905, 0.0
        %v1922 = vmax.f32 %v1906, 0.0
        %v1923 = vmax.f32 %v1907, 0.0
        %v1924 = vmax.f32 %v1908, 0.0
        %1941 = vrot.lane.b32.xlu0 %v1909, 8
        %v1942 = vpop.permute.xlu0 %1941
        %1943 = vrot.lane.b32.xlu0 %v1910, 8
        %v1944 = vpop.permute.xlu0 %1943
        %1945 = vrot.lane.b32.xlu0 %v1911, 8
        %v1946 = vpop.permute.xlu0 %1945
        %1947 = vrot.lane.b32.xlu0 %v1912, 8
        %v1948 = vpop.permute.xlu0 %1947
        %1949 = vrot.lane.b32.xlu0 %v1913, 8
        %v1950 = vpop.permute.xlu0 %1949
        %1951 = vrot.lane.b32.xlu0 %v1914, 8
        %v1952 = vpop.permute.xlu0 %1951
        %1953 = vrot.lane.b32.xlu0 %v1915, 8
        %v1954 = vpop.permute.xlu0 %1953
        %1955 = vrot.lane.b32.xlu0 %v1916, 8
        %v1956 = vpop.permute.xlu0 %1955
        %1957 = vrot.lane.b32.xlu0 %v1917, 8
        %v1958 = vpop.permute.xlu0 %1957
        %1959 = vrot.lane.b32.xlu0 %v1918, 8
        %v1960 = vpop.permute.xlu0 %1959
        %1961 = vrot.lane.b32.xlu0 %v1919, 8
        %v1962 = vpop.permute.xlu0 %1961
        %1963 = vrot.lane.b32.xlu0 %v1920, 8
        %v1964 = vpop.permute.xlu0 %1963
        %1965 = vrot.lane.b32.xlu0 %v1921, 8
        %v1966 = vpop.permute.xlu0 %1965
        %1967 = vrot.lane.b32.xlu0 %v1922, 8
        %v1968 = vpop.permute.xlu0 %1967
        %1969 = vrot.lane.b32.xlu0 %v1923, 8
        %v1970 = vpop.permute.xlu0 %1969
        %1971 = vrot.lane.b32.xlu0 %v1924, 8
        %v1972 = vpop.permute.xlu0 %1971
        %vm1989 = vcmask 64512
        %v1990 = vsel %vm1989, %v1274, %v1942
        %v1991 = vsel %vm1989, %v1275, %v1944
        %v1992 = vsel %vm1989, %v1276, %v1946
        %v1993 = vsel %vm1989, %v1277, %v1948
        %v1994 = vsel %vm1989, %v1278, %v1950
        %v1995 = vsel %vm1989, %v1279, %v1952
        %v1996 = vsel %vm1989, %v1280, %v1954
        %v1997 = vsel %vm1989, %v1281, %v1956
        %v1998 = vsel %vm1989, %v1282, %v1958
        %v1999 = vsel %vm1989, %v1283, %v1960
        %v2000 = vsel %vm1989, %v1284, %v1962
        %v2001 = vsel %vm1989, %v1285, %v1964
        %v2002 = vsel %vm1989, %v1286, %v1966
        %v2003 = vsel %vm1989, %v1287, %v1968
        %v2004 = vsel %vm1989, %v1288, %v1970
        %v2005 = vsel %vm1989, %v1289, %v1972
        %vm2006 = vcmask 130048
        %2007 = vst.msk [vmem:[%s361] sm:$0xff] %vm2006, %v1990
        %2008 = vst.msk [vmem:[%s361 + $0x8] sm:$0xff] %vm2006, %v1991
        %2009 = vst.msk [vmem:[%s361 + $0x20] sm:$0xff] %vm2006, %v1992
        %2010 = vst.msk [vmem:[%s361 + $0x28] sm:$0xff] %vm2006, %v1993
        %2011 = vst.msk [vmem:[%s361 + $0x40] sm:$0xff] %vm2006, %v1994
        %2012 = vst.msk [vmem:[%s361 + $0x48] sm:$0xff] %vm2006, %v1995
        %2013 = vst.msk [vmem:[%s361 + $0x60] sm:$0xff] %vm2006, %v1996
        %2014 = vst.msk [vmem:[%s361 + $0x68] sm:$0xff] %vm2006, %v1997
        %2015 = vst.msk [vmem:[%s361 + $0x80] sm:$0xff] %vm2006, %v1998
        %2016 = vst.msk [vmem:[%s361 + $0x88] sm:$0xff] %vm2006, %v1999
        %2017 = vst.msk [vmem:[%s361 + $0xa0] sm:$0xff] %vm2006, %v2000
        %2018 = vst.msk [vmem:[%s361 + $0xa8] sm:$0xff] %vm2006, %v2001
        %2019 = vst.msk [vmem:[%s361 + $0xc0] sm:$0xff] %vm2006, %v2002
        %2020 = vst.msk [vmem:[%s361 + $0xc8] sm:$0xff] %vm2006, %v2003
        %2021 = vst.msk [vmem:[%s361 + $0xe0] sm:$0xff] %vm2006, %v2004
        %2022 = vst.msk [vmem:[%s361 + $0xe8] sm:$0xff] %vm2006, %v2005
        %s2023 = scalar_lea.vmem %s3, 32
        %v2024 = vld [vmem:[%s2023] sm:$0xf]
        %s2025 = scalar_lea.vmem %s3, 36
        %v2026 = vld [vmem:[%s2025] sm:$0xf]
        %v2028 = vsel %vm640, %v2026, 0
        %2030 = vmatpush.msra.mxu0 0.0
        %2031 = vmatpush.msra.mxu0 0.0
        %2032 = vmatpush.msra.mxu0 0.0
        %2033 = vmatpush.msra.mxu0 0.0
        %2034 = vmatpush.msra.mxu0 0.0
        %2035 = vmatpush.msra.mxu0 0.0
        %2036 = vmatpush.msra.mxu0 0.0
        %2037 = vmatpush.msra.mxu0 0.0
        %2038 = vmatpush.msra.mxu0 0.0
        %2039 = vmatpush.msra.mxu0 0.0
        %2040 = vmatpush.msra.mxu0 0.0
        %2041 = vmatpush.msra.mxu0 0.0
        %2042 = vmatpush.msra.mxu0 0.0
        %2043 = vmatpush.msra.mxu0 0.0
        %2044 = vmatpush.msra.mxu0 0.0
        %2045 = vmatpush.msra.mxu0 %v2028
        %2046 = vmatmul.f32.gmra.mxu0 %v557
        %v2047 = vpop.f32.mrf.mxu0
        %v2048 = vadd.f32 0.0, %v2047
        %2049 = vmatmul.f32.gmra.mxu0 %v560
        %v2050 = vpop.f32.mrf.mxu0
        %v2051 = vadd.f32 0.0, %v2050
        %2052 = vmatmul.f32.gmra.mxu0 %v563
        %v2053 = vpop.f32.mrf.mxu0
        %2054 = vmatmul.f32.gmra.mxu0 %v566
        %v2055 = vpop.f32.mrf.mxu0
        %2056 = vmatmul.f32.gmra.mxu0 %v569
        %v2057 = vpop.f32.mrf.mxu0
        %v2058 = vadd.f32 0.0, %v2057
        %2059 = vmatmul.f32.gmra.mxu0 %v572
        %v2060 = vpop.f32.mrf.mxu0
        %v2061 = vadd.f32 0.0, %v2060
        %2062 = vmatmul.f32.gmra.mxu0 %v575
        %v2063 = vpop.f32.mrf.mxu0
        %2064 = vmatmul.f32.gmra.mxu0 %v578
        %v2065 = vpop.f32.mrf.mxu0
        %2066 = vmatmul.f32.gmra.mxu0 %v581
        %v2067 = vpop.f32.mrf.mxu0
        %v2068 = vadd.f32 0.0, %v2067
        %2069 = vmatmul.f32.gmra.mxu0 %v584
        %v2070 = vpop.f32.mrf.mxu0
        %v2071 = vadd.f32 0.0, %v2070
        %2072 = vmatmul.f32.gmra.mxu0 %v587
        %v2073 = vpop.f32.mrf.mxu0
        %2074 = vmatmul.f32.gmra.mxu0 %v590
        %v2075 = vpop.f32.mrf.mxu0
        %2076 = vmatmul.f32.gmra.mxu0 %v593
        %v2077 = vpop.f32.mrf.mxu0
        %v2078 = vadd.f32 0.0, %v2077
        %2079 = vmatmul.f32.gmra.mxu0 %v596
        %v2080 = vpop.f32.mrf.mxu0
        %v2081 = vadd.f32 0.0, %v2080
        %2082 = vmatmul.f32.gmra.mxu0 %v599
        %v2083 = vpop.f32.mrf.mxu0
        %2084 = vmatmul.f32.gmra.mxu0 %v602
        %v2085 = vpop.f32.mrf.mxu0
        %2086 = vmatmul.f32.gmra.mxu0 %v605
        %v2087 = vpop.f32.mrf.mxu0
        %v2088 = vadd.f32 0.0, %v2087
        %2089 = vmatmul.f32.gmra.mxu0 %v608
        %v2090 = vpop.f32.mrf.mxu0
        %v2091 = vadd.f32 0.0, %v2090
        %2092 = vmatmul.f32.gmra.mxu0 %v611
        %v2093 = vpop.f32.mrf.mxu0
        %2094 = vmatmul.f32.gmra.mxu0 %v614
        %v2095 = vpop.f32.mrf.mxu0
        %2096 = vmatmul.f32.gmra.mxu0 %v617
        %v2097 = vpop.f32.mrf.mxu0
        %v2098 = vadd.f32 0.0, %v2097
        %2099 = vmatmul.f32.gmra.mxu0 %v620
        %v2100 = vpop.f32.mrf.mxu0
        %v2101 = vadd.f32 0.0, %v2100
        %2102 = vmatmul.f32.gmra.mxu0 %v623
        %v2103 = vpop.f32.mrf.mxu0
        %2104 = vmatmul.f32.gmra.mxu0 %v626
        %v2105 = vpop.f32.mrf.mxu0
        %2106 = vmatmul.f32.gmra.mxu0 %v629
        %v2107 = vpop.f32.mrf.mxu0
        %v2108 = vadd.f32 0.0, %v2107
        %2109 = vmatmul.f32.gmra.mxu0 %v632
        %v2110 = vpop.f32.mrf.mxu0
        %v2111 = vadd.f32 0.0, %v2110
        %2112 = vmatmul.f32.gmra.mxu0 %v635
        %v2113 = vpop.f32.mrf.mxu0
        %2114 = vmatmul.f32.gmra.mxu0 %v638
        %v2115 = vpop.f32.mrf.mxu0
        %2116 = vmatmul.f32.gmra.mxu0 %v1112
        %v2117 = vpop.f32.mrf.mxu0
        %v2118 = vadd.f32 0.0, %v2117
        %2119 = vmatmul.f32.gmra.mxu0 %v1114
        %v2120 = vpop.f32.mrf.mxu0
        %v2121 = vadd.f32 0.0, %v2120
        %2122 = vmatmul.f32.gmra.mxu0 %v1116
        %v2123 = vpop.f32.mrf.mxu0
        %2124 = vmatmul.f32.gmra.mxu0 %v1118
        %v2125 = vpop.f32.mrf.mxu0
        %2126 = vdwg.mxu0
        %v2128 = vsel %vm640, %v2024, 0
        %2130 = vmatpush.msra.mxu0 0.0
        %2131 = vmatpush.msra.mxu0 0.0
        %2132 = vmatpush.msra.mxu0 0.0
        %2133 = vmatpush.msra.mxu0 0.0
        %2134 = vmatpush.msra.mxu0 0.0
        %2135 = vmatpush.msra.mxu0 0.0
        %2136 = vmatpush.msra.mxu0 0.0
        %2137 = vmatpush.msra.mxu0 0.0
        %2138 = vmatpush.msra.mxu0 0.0
        %2139 = vmatpush.msra.mxu0 0.0
        %2140 = vmatpush.msra.mxu0 0.0
        %2141 = vmatpush.msra.mxu0 0.0
        %2142 = vmatpush.msra.mxu0 0.0
        %2143 = vmatpush.msra.mxu0 0.0
        %2144 = vmatpush.msra.mxu0 0.0
        %2145 = vmatpush.msra.mxu0 %v2128
        %2146 = vmatmul.f32.gmra.mxu0 %v816
        %v2147 = vpop.f32.mrf.mxu0
        %v2148 = vadd.f32 %v2048, %v2147
        %2149 = vmatmul.f32.gmra.mxu0 %v818
        %v2150 = vpop.f32.mrf.mxu0
        %v2151 = vadd.f32 %v2051, %v2150
        %2152 = vmatmul.f32.gmra.mxu0 %v820
        %v2153 = vpop.f32.mrf.mxu0
        %2154 = vmatmul.f32.gmra.mxu0 %v822
        %v2155 = vpop.f32.mrf.mxu0
        %2156 = vmatmul.f32.gmra.mxu0 %v824
        %v2157 = vpop.f32.mrf.mxu0
        %v2158 = vadd.f32 %v2058, %v2157
        %2159 = vmatmul.f32.gmra.mxu0 %v826
        %v2160 = vpop.f32.mrf.mxu0
        %v2161 = vadd.f32 %v2061, %v2160
        %2162 = vmatmul.f32.gmra.mxu0 %v828
        %v2163 = vpop.f32.mrf.mxu0
        %2164 = vmatmul.f32.gmra.mxu0 %v830
        %v2165 = vpop.f32.mrf.mxu0
        %2166 = vmatmul.f32.gmra.mxu0 %v832
        %v2167 = vpop.f32.mrf.mxu0
        %v2168 = vadd.f32 %v2068, %v2167
        %2169 = vmatmul.f32.gmra.mxu0 %v834
        %v2170 = vpop.f32.mrf.mxu0
        %v2171 = vadd.f32 %v2071, %v2170
        %2172 = vmatmul.f32.gmra.mxu0 %v836
        %v2173 = vpop.f32.mrf.mxu0
        %2174 = vmatmul.f32.gmra.mxu0 %v838
        %v2175 = vpop.f32.mrf.mxu0
        %2176 = vmatmul.f32.gmra.mxu0 %v840
        %v2177 = vpop.f32.mrf.mxu0
        %v2178 = vadd.f32 %v2078, %v2177
        %2179 = vmatmul.f32.gmra.mxu0 %v842
        %v2180 = vpop.f32.mrf.mxu0
        %v2181 = vadd.f32 %v2081, %v2180
        %2182 = vmatmul.f32.gmra.mxu0 %v844
        %v2183 = vpop.f32.mrf.mxu0
        %2184 = vmatmul.f32.gmra.mxu0 %v846
        %v2185 = vpop.f32.mrf.mxu0
        %2186 = vmatmul.f32.gmra.mxu0 %v848
        %v2187 = vpop.f32.mrf.mxu0
        %v2188 = vadd.f32 %v2088, %v2187
        %2189 = vmatmul.f32.gmra.mxu0 %v850
        %v2190 = vpop.f32.mrf.mxu0
        %v2191 = vadd.f32 %v2091, %v2190
        %2192 = vmatmul.f32.gmra.mxu0 %v852
        %v2193 = vpop.f32.mrf.mxu0
        %2194 = vmatmul.f32.gmra.mxu0 %v854
        %v2195 = vpop.f32.mrf.mxu0
        %2196 = vmatmul.f32.gmra.mxu0 %v856
        %v2197 = vpop.f32.mrf.mxu0
        %v2198 = vadd.f32 %v2098, %v2197
        %2199 = vmatmul.f32.gmra.mxu0 %v858
        %v2200 = vpop.f32.mrf.mxu0
        %v2201 = vadd.f32 %v2101, %v2200
        %2202 = vmatmul.f32.gmra.mxu0 %v860
        %v2203 = vpop.f32.mrf.mxu0
        %2204 = vmatmul.f32.gmra.mxu0 %v862
        %v2205 = vpop.f32.mrf.mxu0
        %2206 = vmatmul.f32.gmra.mxu0 %v864
        %v2207 = vpop.f32.mrf.mxu0
        %v2208 = vadd.f32 %v2108, %v2207
        %2209 = vmatmul.f32.gmra.mxu0 %v866
        %v2210 = vpop.f32.mrf.mxu0
        %v2211 = vadd.f32 %v2111, %v2210
        %2212 = vmatmul.f32.gmra.mxu0 %v868
        %v2213 = vpop.f32.mrf.mxu0
        %2214 = vmatmul.f32.gmra.mxu0 %v870
        %v2215 = vpop.f32.mrf.mxu0
        %2216 = vmatmul.f32.gmra.mxu0 %v986
        %v2217 = vpop.f32.mrf.mxu0
        %v2218 = vadd.f32 %v2118, %v2217
        %2219 = vmatmul.f32.gmra.mxu0 %v988
        %v2220 = vpop.f32.mrf.mxu0
        %v2221 = vadd.f32 %v2121, %v2220
        %2222 = vmatmul.f32.gmra.mxu0 %v990
        %v2223 = vpop.f32.mrf.mxu0
        %2224 = vmatmul.f32.gmra.mxu0 %v992
        %v2225 = vpop.f32.mrf.mxu0
        %2226 = vdwg.mxu0
        %s2227 = scalar_lea.vmem %s3, 40
        %v2228 = vld [vmem:[%s2227] sm:$0xf]
        %v2232 = vrot.slane %v534, 7
        %v2233 = vsel %vm742, %v984, %v2232
        %v2234 = vrot.slane %v535, 7
        %v2235 = vsel %vm742, %v2232, %v2234
        %v2236 = vrot.slane %v536, 7
        %v2237 = vsel %vm742, %v2234, %v2236
        %v2238 = vrot.slane %v537, 7
        %v2239 = vsel %vm742, %v2236, %v2238
        %v2240 = vsel %vm408, %v2233, 0
        %v2242 = vsel %vm408, %v2235, 0
        %v2244 = vsel %vm408, %v2237, 0
        %v2246 = vsel %vm408, %v2239, 0
        %v2249 = vsel %vm640, %v2228, 0
        %2251 = vmatpush.msra.mxu0 0.0
        %2252 = vmatpush.msra.mxu0 0.0
        %2253 = vmatpush.msra.mxu0 0.0
        %2254 = vmatpush.msra.mxu0 0.0
        %2255 = vmatpush.msra.mxu0 0.0
        %2256 = vmatpush.msra.mxu0 0.0
        %2257 = vmatpush.msra.mxu0 0.0
        %2258 = vmatpush.msra.mxu0 0.0
        %2259 = vmatpush.msra.mxu0 0.0
        %2260 = vmatpush.msra.mxu0 0.0
        %2261 = vmatpush.msra.mxu0 0.0
        %2262 = vmatpush.msra.mxu0 0.0
        %2263 = vmatpush.msra.mxu0 0.0
        %2264 = vmatpush.msra.mxu0 0.0
        %2265 = vmatpush.msra.mxu0 0.0
        %2266 = vmatpush.msra.mxu0 %v2249
        %2267 = vmatmul.f32.gmra.mxu0 %v824
        %v2268 = vpop.f32.mrf.mxu0
        %v2269 = vadd.f32 0.0, %v2268
        %2270 = vmatmul.f32.gmra.mxu0 %v826
        %v2271 = vpop.f32.mrf.mxu0
        %v2272 = vadd.f32 0.0, %v2271
        %2273 = vmatmul.f32.gmra.mxu0 %v828
        %v2274 = vpop.f32.mrf.mxu0
        %2275 = vmatmul.f32.gmra.mxu0 %v830
        %v2276 = vpop.f32.mrf.mxu0
        %2277 = vmatmul.f32.gmra.mxu0 %v832
        %v2278 = vpop.f32.mrf.mxu0
        %v2279 = vadd.f32 0.0, %v2278
        %2280 = vmatmul.f32.gmra.mxu0 %v834
        %v2281 = vpop.f32.mrf.mxu0
        %v2282 = vadd.f32 0.0, %v2281
        %2283 = vmatmul.f32.gmra.mxu0 %v836
        %v2284 = vpop.f32.mrf.mxu0
        %2285 = vmatmul.f32.gmra.mxu0 %v838
        %v2286 = vpop.f32.mrf.mxu0
        %2287 = vmatmul.f32.gmra.mxu0 %v840
        %v2288 = vpop.f32.mrf.mxu0
        %v2289 = vadd.f32 0.0, %v2288
        %2290 = vmatmul.f32.gmra.mxu0 %v842
        %v2291 = vpop.f32.mrf.mxu0
        %v2292 = vadd.f32 0.0, %v2291
        %2293 = vmatmul.f32.gmra.mxu0 %v844
        %v2294 = vpop.f32.mrf.mxu0
        %2295 = vmatmul.f32.gmra.mxu0 %v846
        %v2296 = vpop.f32.mrf.mxu0
        %2297 = vmatmul.f32.gmra.mxu0 %v848
        %v2298 = vpop.f32.mrf.mxu0
        %v2299 = vadd.f32 0.0, %v2298
        %2300 = vmatmul.f32.gmra.mxu0 %v850
        %v2301 = vpop.f32.mrf.mxu0
        %v2302 = vadd.f32 0.0, %v2301
        %2303 = vmatmul.f32.gmra.mxu0 %v852
        %v2304 = vpop.f32.mrf.mxu0
        %2305 = vmatmul.f32.gmra.mxu0 %v854
        %v2306 = vpop.f32.mrf.mxu0
        %2307 = vmatmul.f32.gmra.mxu0 %v856
        %v2308 = vpop.f32.mrf.mxu0
        %v2309 = vadd.f32 0.0, %v2308
        %2310 = vmatmul.f32.gmra.mxu0 %v858
        %v2311 = vpop.f32.mrf.mxu0
        %v2312 = vadd.f32 0.0, %v2311
        %2313 = vmatmul.f32.gmra.mxu0 %v860
        %v2314 = vpop.f32.mrf.mxu0
        %2315 = vmatmul.f32.gmra.mxu0 %v862
        %v2316 = vpop.f32.mrf.mxu0
        %2317 = vmatmul.f32.gmra.mxu0 %v864
        %v2318 = vpop.f32.mrf.mxu0
        %v2319 = vadd.f32 0.0, %v2318
        %2320 = vmatmul.f32.gmra.mxu0 %v866
        %v2321 = vpop.f32.mrf.mxu0
        %v2322 = vadd.f32 0.0, %v2321
        %2323 = vmatmul.f32.gmra.mxu0 %v868
        %v2324 = vpop.f32.mrf.mxu0
        %2325 = vmatmul.f32.gmra.mxu0 %v870
        %v2326 = vpop.f32.mrf.mxu0
        %2327 = vmatmul.f32.gmra.mxu0 %v986
        %v2328 = vpop.f32.mrf.mxu0
        %v2329 = vadd.f32 0.0, %v2328
        %2330 = vmatmul.f32.gmra.mxu0 %v988
        %v2331 = vpop.f32.mrf.mxu0
        %v2332 = vadd.f32 0.0, %v2331
        %2333 = vmatmul.f32.gmra.mxu0 %v990
        %v2334 = vpop.f32.mrf.mxu0
        %2335 = vmatmul.f32.gmra.mxu0 %v992
        %v2336 = vpop.f32.mrf.mxu0
        %2337 = vmatmul.f32.gmra.mxu0 %v2240
        %v2338 = vpop.f32.mrf.mxu0
        %v2339 = vadd.f32 0.0, %v2338
        %2340 = vmatmul.f32.gmra.mxu0 %v2242
        %v2341 = vpop.f32.mrf.mxu0
        %v2342 = vadd.f32 0.0, %v2341
        %2343 = vmatmul.f32.gmra.mxu0 %v2244
        %v2344 = vpop.f32.mrf.mxu0
        %2345 = vmatmul.f32.gmra.mxu0 %v2246
        %v2346 = vpop.f32.mrf.mxu0
        %2347 = vdwg.mxu0
        %v2348 = vadd.f32 %v2148, %v2269
        %v2349 = vadd.f32 %v2151, %v2272
        %v2350 = vadd.f32 %v2158, %v2279
        %v2351 = vadd.f32 %v2161, %v2282
        %v2352 = vadd.f32 %v2168, %v2289
        %v2353 = vadd.f32 %v2171, %v2292
        %v2354 = vadd.f32 %v2178, %v2299
        %v2355 = vadd.f32 %v2181, %v2302
        %v2356 = vadd.f32 %v2188, %v2309
        %v2357 = vadd.f32 %v2191, %v2312
        %v2358 = vadd.f32 %v2198, %v2319
        %v2359 = vadd.f32 %v2201, %v2322
        %v2360 = vadd.f32 %v2208, %v2329
        %v2361 = vadd.f32 %v2211, %v2332
        %v2362 = vadd.f32 %v2218, %v2339
        %v2363 = vadd.f32 %v2221, %v2342
        %s2364 = scalar_lea.vmem %s3, 44
        %v2365 = vld [vmem:[%s2364] sm:$0xf]
        %v2366 = vsel %vm408, %v534, 0
        %v2368 = vsel %vm408, %v535, 0
        %v2370 = vsel %vm408, %v536, 0
        %v2372 = vsel %vm408, %v537, 0
        %v2375 = vsel %vm640, %v2365, 0
        %2377 = vmatpush.msra.mxu0 0.0
        %2378 = vmatpush.msra.mxu0 0.0
        %2379 = vmatpush.msra.mxu0 0.0
        %2380 = vmatpush.msra.mxu0 0.0
        %2381 = vmatpush.msra.mxu0 0.0
        %2382 = vmatpush.msra.mxu0 0.0
        %2383 = vmatpush.msra.mxu0 0.0
        %2384 = vmatpush.msra.mxu0 0.0
        %2385 = vmatpush.msra.mxu0 0.0
        %2386 = vmatpush.msra.mxu0 0.0
        %2387 = vmatpush.msra.mxu0 0.0
        %2388 = vmatpush.msra.mxu0 0.0
        %2389 = vmatpush.msra.mxu0 0.0
        %2390 = vmatpush.msra.mxu0 0.0
        %2391 = vmatpush.msra.mxu0 0.0
        %2392 = vmatpush.msra.mxu0 %v2375
        %2393 = vmatmul.f32.gmra.mxu0 %v569
        %v2394 = vpop.f32.mrf.mxu0
        %v2395 = vadd.f32 0.0, %v2394
        %2396 = vmatmul.f32.gmra.mxu0 %v572
        %v2397 = vpop.f32.mrf.mxu0
        %v2398 = vadd.f32 0.0, %v2397
        %2399 = vmatmul.f32.gmra.mxu0 %v575
        %v2400 = vpop.f32.mrf.mxu0
        %2401 = vmatmul.f32.gmra.mxu0 %v578
        %v2402 = vpop.f32.mrf.mxu0
        %2403 = vmatmul.f32.gmra.mxu0 %v581
        %v2404 = vpop.f32.mrf.mxu0
        %v2405 = vadd.f32 0.0, %v2404
        %2406 = vmatmul.f32.gmra.mxu0 %v584
        %v2407 = vpop.f32.mrf.mxu0
        %v2408 = vadd.f32 0.0, %v2407
        %2409 = vmatmul.f32.gmra.mxu0 %v587
        %v2410 = vpop.f32.mrf.mxu0
        %2411 = vmatmul.f32.gmra.mxu0 %v590
        %v2412 = vpop.f32.mrf.mxu0
        %2413 = vmatmul.f32.gmra.mxu0 %v593
        %v2414 = vpop.f32.mrf.mxu0
        %v2415 = vadd.f32 0.0, %v2414
        %2416 = vmatmul.f32.gmra.mxu0 %v596
        %v2417 = vpop.f32.mrf.mxu0
        %v2418 = vadd.f32 0.0, %v2417
        %2419 = vmatmul.f32.gmra.mxu0 %v599
        %v2420 = vpop.f32.mrf.mxu0
        %2421 = vmatmul.f32.gmra.mxu0 %v602
        %v2422 = vpop.f32.mrf.mxu0
        %2423 = vmatmul.f32.gmra.mxu0 %v605
        %v2424 = vpop.f32.mrf.mxu0
        %v2425 = vadd.f32 0.0, %v2424
        %2426 = vmatmul.f32.gmra.mxu0 %v608
        %v2427 = vpop.f32.mrf.mxu0
        %v2428 = vadd.f32 0.0, %v2427
        %2429 = vmatmul.f32.gmra.mxu0 %v611
        %v2430 = vpop.f32.mrf.mxu0
        %2431 = vmatmul.f32.gmra.mxu0 %v614
        %v2432 = vpop.f32.mrf.mxu0
        %2433 = vmatmul.f32.gmra.mxu0 %v617
        %v2434 = vpop.f32.mrf.mxu0
        %v2435 = vadd.f32 0.0, %v2434
        %2436 = vmatmul.f32.gmra.mxu0 %v620
        %v2437 = vpop.f32.mrf.mxu0
        %v2438 = vadd.f32 0.0, %v2437
        %2439 = vmatmul.f32.gmra.mxu0 %v623
        %v2440 = vpop.f32.mrf.mxu0
        %2441 = vmatmul.f32.gmra.mxu0 %v626
        %v2442 = vpop.f32.mrf.mxu0
        %2443 = vmatmul.f32.gmra.mxu0 %v629
        %v2444 = vpop.f32.mrf.mxu0
        %v2445 = vadd.f32 0.0, %v2444
        %2446 = vmatmul.f32.gmra.mxu0 %v632
        %v2447 = vpop.f32.mrf.mxu0
        %v2448 = vadd.f32 0.0, %v2447
        %2449 = vmatmul.f32.gmra.mxu0 %v635
        %v2450 = vpop.f32.mrf.mxu0
        %2451 = vmatmul.f32.gmra.mxu0 %v638
        %v2452 = vpop.f32.mrf.mxu0
        %2453 = vmatmul.f32.gmra.mxu0 %v1112
        %v2454 = vpop.f32.mrf.mxu0
        %v2455 = vadd.f32 0.0, %v2454
        %2456 = vmatmul.f32.gmra.mxu0 %v1114
        %v2457 = vpop.f32.mrf.mxu0
        %v2458 = vadd.f32 0.0, %v2457
        %2459 = vmatmul.f32.gmra.mxu0 %v1116
        %v2460 = vpop.f32.mrf.mxu0
        %2461 = vmatmul.f32.gmra.mxu0 %v1118
        %v2462 = vpop.f32.mrf.mxu0
        %2463 = vmatmul.f32.gmra.mxu0 %v2366
        %v2464 = vpop.f32.mrf.mxu0
        %v2465 = vadd.f32 0.0, %v2464
        %2466 = vmatmul.f32.gmra.mxu0 %v2368
        %v2467 = vpop.f32.mrf.mxu0
        %v2468 = vadd.f32 0.0, %v2467
        %2469 = vmatmul.f32.gmra.mxu0 %v2370
        %v2470 = vpop.f32.mrf.mxu0
        %2471 = vmatmul.f32.gmra.mxu0 %v2372
        %v2472 = vpop.f32.mrf.mxu0
        %2473 = vdwg.mxu0
        %v2474 = vadd.f32 %v2348, %v2395
        %v2475 = vadd.f32 %v2349, %v2398
        %v2476 = vadd.f32 %v2350, %v2405
        %v2477 = vadd.f32 %v2351, %v2408
        %v2478 = vadd.f32 %v2352, %v2415
        %v2479 = vadd.f32 %v2353, %v2418
        %v2480 = vadd.f32 %v2354, %v2425
        %v2481 = vadd.f32 %v2355, %v2428
        %v2482 = vadd.f32 %v2356, %v2435
        %v2483 = vadd.f32 %v2357, %v2438
        %v2484 = vadd.f32 %v2358, %v2445
        %v2485 = vadd.f32 %v2359, %v2448
        %v2486 = vadd.f32 %v2360, %v2455
        %v2487 = vadd.f32 %v2361, %v2458
        %v2488 = vadd.f32 %v2362, %v2465
        %v2489 = vadd.f32 %v2363, %v2468
        %v2490 = vmul.f32 %v2474, %v1237
        %v2491 = vmul.f32 %v2475, %v1237
        %v2492 = vmul.f32 %v2476, %v1237
        %v2493 = vmul.f32 %v2477, %v1237
        %v2494 = vmul.f32 %v2478, %v1237
        %v2495 = vmul.f32 %v2479, %v1237
        %v2496 = vmul.f32 %v2480, %v1237
        %v2497 = vmul.f32 %v2481, %v1237
        %v2498 = vmul.f32 %v2482, %v1237
        %v2499 = vmul.f32 %v2483, %v1237
        %v2500 = vmul.f32 %v2484, %v1237
        %v2501 = vmul.f32 %v2485, %v1237
        %v2502 = vmul.f32 %v2486, %v1237
        %v2503 = vmul.f32 %v2487, %v1237
        %v2504 = vmul.f32 %v2488, %v1237
        %v2505 = vmul.f32 %v2489, %v1237
        %v2506 = vadd.f32 %v2490, %v1256
        %v2507 = vadd.f32 %v2491, %v1256
        %v2508 = vadd.f32 %v2492, %v1256
        %v2509 = vadd.f32 %v2493, %v1256
        %v2510 = vadd.f32 %v2494, %v1256
        %v2511 = vadd.f32 %v2495, %v1256
        %v2512 = vadd.f32 %v2496, %v1256
        %v2513 = vadd.f32 %v2497, %v1256
        %v2514 = vadd.f32 %v2498, %v1256
        %v2515 = vadd.f32 %v2499, %v1256
        %v2516 = vadd.f32 %v2500, %v1256
        %v2517 = vadd.f32 %v2501, %v1256
        %v2518 = vadd.f32 %v2502, %v1256
        %v2519 = vadd.f32 %v2503, %v1256
        %v2520 = vadd.f32 %v2504, %v1256
        %v2521 = vadd.f32 %v2505, %v1256
        %v2522 = vmax.f32 %v2506, 0.0
        %v2523 = vmax.f32 %v2507, 0.0
        %v2524 = vmax.f32 %v2508, 0.0
        %v2525 = vmax.f32 %v2509, 0.0
        %v2526 = vmax.f32 %v2510, 0.0
        %v2527 = vmax.f32 %v2511, 0.0
        %v2528 = vmax.f32 %v2512, 0.0
        %v2529 = vmax.f32 %v2513, 0.0
        %v2530 = vmax.f32 %v2514, 0.0
        %v2531 = vmax.f32 %v2515, 0.0
        %v2532 = vmax.f32 %v2516, 0.0
        %v2533 = vmax.f32 %v2517, 0.0
        %v2534 = vmax.f32 %v2518, 0.0
        %v2535 = vmax.f32 %v2519, 0.0
        %v2536 = vmax.f32 %v2520, 0.0
        %v2537 = vmax.f32 %v2521, 0.0
        %s2538 = scalar_lea.vmem %s3, 48
        %v2539 = vld [vmem:[%s2538] sm:$0xf]
        %s2540 = scalar_lea.vmem %s3, 52
        %v2541 = vld [vmem:[%s2540] sm:$0xf]
        %v2543 = vsel %vm640, %v2541, 0
        %2545 = vmatpush.msra.mxu0 0.0
        %2546 = vmatpush.msra.mxu0 0.0
        %2547 = vmatpush.msra.mxu0 0.0
        %2548 = vmatpush.msra.mxu0 0.0
        %2549 = vmatpush.msra.mxu0 0.0
        %2550 = vmatpush.msra.mxu0 0.0
        %2551 = vmatpush.msra.mxu0 0.0
        %2552 = vmatpush.msra.mxu0 0.0
        %2553 = vmatpush.msra.mxu0 0.0
        %2554 = vmatpush.msra.mxu0 0.0
        %2555 = vmatpush.msra.mxu0 0.0
        %2556 = vmatpush.msra.mxu0 0.0
        %2557 = vmatpush.msra.mxu0 0.0
        %2558 = vmatpush.msra.mxu0 0.0
        %2559 = vmatpush.msra.mxu0 0.0
        %2560 = vmatpush.msra.mxu0 %v2543
        %2561 = vmatmul.f32.gmra.mxu0 %v1368
        %v2562 = vpop.f32.mrf.mxu0
        %v2563 = vadd.f32 0.0, %v2562
        %2564 = vmatmul.f32.gmra.mxu0 %v1370
        %v2565 = vpop.f32.mrf.mxu0
        %v2566 = vadd.f32 0.0, %v2565
        %2567 = vmatmul.f32.gmra.mxu0 %v1372
        %v2568 = vpop.f32.mrf.mxu0
        %2569 = vmatmul.f32.gmra.mxu0 %v1374
        %v2570 = vpop.f32.mrf.mxu0
        %2571 = vmatmul.f32.gmra.mxu0 %v1376
        %v2572 = vpop.f32.mrf.mxu0
        %v2573 = vadd.f32 0.0, %v2572
        %2574 = vmatmul.f32.gmra.mxu0 %v1378
        %v2575 = vpop.f32.mrf.mxu0
        %v2576 = vadd.f32 0.0, %v2575
        %2577 = vmatmul.f32.gmra.mxu0 %v1380
        %v2578 = vpop.f32.mrf.mxu0
        %2579 = vmatmul.f32.gmra.mxu0 %v1382
        %v2580 = vpop.f32.mrf.mxu0
        %2581 = vmatmul.f32.gmra.mxu0 %v1384
        %v2582 = vpop.f32.mrf.mxu0
        %v2583 = vadd.f32 0.0, %v2582
        %2584 = vmatmul.f32.gmra.mxu0 %v1386
        %v2585 = vpop.f32.mrf.mxu0
        %v2586 = vadd.f32 0.0, %v2585
        %2587 = vmatmul.f32.gmra.mxu0 %v1388
        %v2588 = vpop.f32.mrf.mxu0
        %2589 = vmatmul.f32.gmra.mxu0 %v1390
        %v2590 = vpop.f32.mrf.mxu0
        %2591 = vmatmul.f32.gmra.mxu0 %v1392
        %v2592 = vpop.f32.mrf.mxu0
        %v2593 = vadd.f32 0.0, %v2592
        %2594 = vmatmul.f32.gmra.mxu0 %v1394
        %v2595 = vpop.f32.mrf.mxu0
        %v2596 = vadd.f32 0.0, %v2595
        %2597 = vmatmul.f32.gmra.mxu0 %v1396
        %v2598 = vpop.f32.mrf.mxu0
        %2599 = vmatmul.f32.gmra.mxu0 %v1398
        %v2600 = vpop.f32.mrf.mxu0
        %2601 = vmatmul.f32.gmra.mxu0 %v1400
        %v2602 = vpop.f32.mrf.mxu0
        %v2603 = vadd.f32 0.0, %v2602
        %2604 = vmatmul.f32.gmra.mxu0 %v1402
        %v2605 = vpop.f32.mrf.mxu0
        %v2606 = vadd.f32 0.0, %v2605
        %2607 = vmatmul.f32.gmra.mxu0 %v1404
        %v2608 = vpop.f32.mrf.mxu0
        %2609 = vmatmul.f32.gmra.mxu0 %v1406
        %v2610 = vpop.f32.mrf.mxu0
        %2611 = vmatmul.f32.gmra.mxu0 %v1408
        %v2612 = vpop.f32.mrf.mxu0
        %v2613 = vadd.f32 0.0, %v2612
        %2614 = vmatmul.f32.gmra.mxu0 %v1410
        %v2615 = vpop.f32.mrf.mxu0
        %v2616 = vadd.f32 0.0, %v2615
        %2617 = vmatmul.f32.gmra.mxu0 %v1412
        %v2618 = vpop.f32.mrf.mxu0
        %2619 = vmatmul.f32.gmra.mxu0 %v1414
        %v2620 = vpop.f32.mrf.mxu0
        %2621 = vmatmul.f32.gmra.mxu0 %v1416
        %v2622 = vpop.f32.mrf.mxu0
        %v2623 = vadd.f32 0.0, %v2622
        %2624 = vmatmul.f32.gmra.mxu0 %v1418
        %v2625 = vpop.f32.mrf.mxu0
        %v2626 = vadd.f32 0.0, %v2625
        %2627 = vmatmul.f32.gmra.mxu0 %v1420
        %v2628 = vpop.f32.mrf.mxu0
        %2629 = vmatmul.f32.gmra.mxu0 %v1422
        %v2630 = vpop.f32.mrf.mxu0
        %2631 = vmatmul.f32.gmra.mxu0 %v1753
        %v2632 = vpop.f32.mrf.mxu0
        %v2633 = vadd.f32 0.0, %v2632
        %2634 = vmatmul.f32.gmra.mxu0 %v1755
        %v2635 = vpop.f32.mrf.mxu0
        %v2636 = vadd.f32 0.0, %v2635
        %2637 = vmatmul.f32.gmra.mxu0 %v1757
        %v2638 = vpop.f32.mrf.mxu0
        %2639 = vmatmul.f32.gmra.mxu0 %v1759
        %v2640 = vpop.f32.mrf.mxu0
        %2641 = vdwg.mxu0
        %v2643 = vsel %vm640, %v2539, 0
        %2645 = vmatpush.msra.mxu0 0.0
        %2646 = vmatpush.msra.mxu0 0.0
        %2647 = vmatpush.msra.mxu0 0.0
        %2648 = vmatpush.msra.mxu0 0.0
        %2649 = vmatpush.msra.mxu0 0.0
        %2650 = vmatpush.msra.mxu0 0.0
        %2651 = vmatpush.msra.mxu0 0.0
        %2652 = vmatpush.msra.mxu0 0.0
        %2653 = vmatpush.msra.mxu0 0.0
        %2654 = vmatpush.msra.mxu0 0.0
        %2655 = vmatpush.msra.mxu0 0.0
        %2656 = vmatpush.msra.mxu0 0.0
        %2657 = vmatpush.msra.mxu0 0.0
        %2658 = vmatpush.msra.mxu0 0.0
        %2659 = vmatpush.msra.mxu0 0.0
        %2660 = vmatpush.msra.mxu0 %v2643
        %2661 = vmatmul.f32.gmra.mxu0 %v557
        %v2662 = vpop.f32.mrf.mxu0
        %v2663 = vadd.f32 %v2563, %v2662
        %2664 = vmatmul.f32.gmra.mxu0 %v560
        %v2665 = vpop.f32.mrf.mxu0
        %v2666 = vadd.f32 %v2566, %v2665
        %2667 = vmatmul.f32.gmra.mxu0 %v563
        %v2668 = vpop.f32.mrf.mxu0
        %2669 = vmatmul.f32.gmra.mxu0 %v566
        %v2670 = vpop.f32.mrf.mxu0
        %2671 = vmatmul.f32.gmra.mxu0 %v569
        %v2672 = vpop.f32.mrf.mxu0
        %v2673 = vadd.f32 %v2573, %v2672
        %2674 = vmatmul.f32.gmra.mxu0 %v572
        %v2675 = vpop.f32.mrf.mxu0
        %v2676 = vadd.f32 %v2576, %v2675
        %2677 = vmatmul.f32.gmra.mxu0 %v575
        %v2678 = vpop.f32.mrf.mxu0
        %2679 = vmatmul.f32.gmra.mxu0 %v578
        %v2680 = vpop.f32.mrf.mxu0
        %2681 = vmatmul.f32.gmra.mxu0 %v581
        %v2682 = vpop.f32.mrf.mxu0
        %v2683 = vadd.f32 %v2583, %v2682
        %2684 = vmatmul.f32.gmra.mxu0 %v584
        %v2685 = vpop.f32.mrf.mxu0
        %v2686 = vadd.f32 %v2586, %v2685
        %2687 = vmatmul.f32.gmra.mxu0 %v587
        %v2688 = vpop.f32.mrf.mxu0
        %2689 = vmatmul.f32.gmra.mxu0 %v590
        %v2690 = vpop.f32.mrf.mxu0
        %2691 = vmatmul.f32.gmra.mxu0 %v593
        %v2692 = vpop.f32.mrf.mxu0
        %v2693 = vadd.f32 %v2593, %v2692
        %2694 = vmatmul.f32.gmra.mxu0 %v596
        %v2695 = vpop.f32.mrf.mxu0
        %v2696 = vadd.f32 %v2596, %v2695
        %2697 = vmatmul.f32.gmra.mxu0 %v599
        %v2698 = vpop.f32.mrf.mxu0
        %2699 = vmatmul.f32.gmra.mxu0 %v602
        %v2700 = vpop.f32.mrf.mxu0
        %2701 = vmatmul.f32.gmra.mxu0 %v605
        %v2702 = vpop.f32.mrf.mxu0
        %v2703 = vadd.f32 %v2603, %v2702
        %2704 = vmatmul.f32.gmra.mxu0 %v608
        %v2705 = vpop.f32.mrf.mxu0
        %v2706 = vadd.f32 %v2606, %v2705
        %2707 = vmatmul.f32.gmra.mxu0 %v611
        %v2708 = vpop.f32.mrf.mxu0
        %2709 = vmatmul.f32.gmra.mxu0 %v614
        %v2710 = vpop.f32.mrf.mxu0
        %2711 = vmatmul.f32.gmra.mxu0 %v617
        %v2712 = vpop.f32.mrf.mxu0
        %v2713 = vadd.f32 %v2613, %v2712
        %2714 = vmatmul.f32.gmra.mxu0 %v620
        %v2715 = vpop.f32.mrf.mxu0
        %v2716 = vadd.f32 %v2616, %v2715
        %2717 = vmatmul.f32.gmra.mxu0 %v623
        %v2718 = vpop.f32.mrf.mxu0
        %2719 = vmatmul.f32.gmra.mxu0 %v626
        %v2720 = vpop.f32.mrf.mxu0
        %2721 = vmatmul.f32.gmra.mxu0 %v629
        %v2722 = vpop.f32.mrf.mxu0
        %v2723 = vadd.f32 %v2623, %v2722
        %2724 = vmatmul.f32.gmra.mxu0 %v632
        %v2725 = vpop.f32.mrf.mxu0
        %v2726 = vadd.f32 %v2626, %v2725
        %2727 = vmatmul.f32.gmra.mxu0 %v635
        %v2728 = vpop.f32.mrf.mxu0
        %2729 = vmatmul.f32.gmra.mxu0 %v638
        %v2730 = vpop.f32.mrf.mxu0
        %2731 = vmatmul.f32.gmra.mxu0 %v1112
        %v2732 = vpop.f32.mrf.mxu0
        %v2733 = vadd.f32 %v2633, %v2732
        %2734 = vmatmul.f32.gmra.mxu0 %v1114
        %v2735 = vpop.f32.mrf.mxu0
        %v2736 = vadd.f32 %v2636, %v2735
        %2737 = vmatmul.f32.gmra.mxu0 %v1116
        %v2738 = vpop.f32.mrf.mxu0
        %2739 = vmatmul.f32.gmra.mxu0 %v1118
        %v2740 = vpop.f32.mrf.mxu0
        %2741 = vdwg.mxu0
        %s2742 = scalar_lea.vmem %s3, 56
        %v2743 = vld [vmem:[%s2742] sm:$0xf]
        %v2745 = vsel %vm640, %v2743, 0
        %2747 = vmatpush.msra.mxu0 0.0
        %2748 = vmatpush.msra.mxu0 0.0
        %2749 = vmatpush.msra.mxu0 0.0
        %2750 = vmatpush.msra.mxu0 0.0
        %2751 = vmatpush.msra.mxu0 0.0
        %2752 = vmatpush.msra.mxu0 0.0
        %2753 = vmatpush.msra.mxu0 0.0
        %2754 = vmatpush.msra.mxu0 0.0
        %2755 = vmatpush.msra.mxu0 0.0
        %2756 = vmatpush.msra.mxu0 0.0
        %2757 = vmatpush.msra.mxu0 0.0
        %2758 = vmatpush.msra.mxu0 0.0
        %2759 = vmatpush.msra.mxu0 0.0
        %2760 = vmatpush.msra.mxu0 0.0
        %2761 = vmatpush.msra.mxu0 0.0
        %2762 = vmatpush.msra.mxu0 %v2745
        %2763 = vmatmul.f32.gmra.mxu0 %v569
        %v2764 = vpop.f32.mrf.mxu0
        %v2765 = vadd.f32 0.0, %v2764
        %2766 = vmatmul.f32.gmra.mxu0 %v572
        %v2767 = vpop.f32.mrf.mxu0
        %v2768 = vadd.f32 0.0, %v2767
        %2769 = vmatmul.f32.gmra.mxu0 %v575
        %v2770 = vpop.f32.mrf.mxu0
        %2771 = vmatmul.f32.gmra.mxu0 %v578
        %v2772 = vpop.f32.mrf.mxu0
        %2773 = vmatmul.f32.gmra.mxu0 %v581
        %v2774 = vpop.f32.mrf.mxu0
        %v2775 = vadd.f32 0.0, %v2774
        %2776 = vmatmul.f32.gmra.mxu0 %v584
        %v2777 = vpop.f32.mrf.mxu0
        %v2778 = vadd.f32 0.0, %v2777
        %2779 = vmatmul.f32.gmra.mxu0 %v587
        %v2780 = vpop.f32.mrf.mxu0
        %2781 = vmatmul.f32.gmra.mxu0 %v590
        %v2782 = vpop.f32.mrf.mxu0
        %2783 = vmatmul.f32.gmra.mxu0 %v593
        %v2784 = vpop.f32.mrf.mxu0
        %v2785 = vadd.f32 0.0, %v2784
        %2786 = vmatmul.f32.gmra.mxu0 %v596
        %v2787 = vpop.f32.mrf.mxu0
        %v2788 = vadd.f32 0.0, %v2787
        %2789 = vmatmul.f32.gmra.mxu0 %v599
        %v2790 = vpop.f32.mrf.mxu0
        %2791 = vmatmul.f32.gmra.mxu0 %v602
        %v2792 = vpop.f32.mrf.mxu0
        %2793 = vmatmul.f32.gmra.mxu0 %v605
        %v2794 = vpop.f32.mrf.mxu0
        %v2795 = vadd.f32 0.0, %v2794
        %2796 = vmatmul.f32.gmra.mxu0 %v608
        %v2797 = vpop.f32.mrf.mxu0
        %v2798 = vadd.f32 0.0, %v2797
        %2799 = vmatmul.f32.gmra.mxu0 %v611
        %v2800 = vpop.f32.mrf.mxu0
        %2801 = vmatmul.f32.gmra.mxu0 %v614
        %v2802 = vpop.f32.mrf.mxu0
        %2803 = vmatmul.f32.gmra.mxu0 %v617
        %v2804 = vpop.f32.mrf.mxu0
        %v2805 = vadd.f32 0.0, %v2804
        %2806 = vmatmul.f32.gmra.mxu0 %v620
        %v2807 = vpop.f32.mrf.mxu0
        %v2808 = vadd.f32 0.0, %v2807
        %2809 = vmatmul.f32.gmra.mxu0 %v623
        %v2810 = vpop.f32.mrf.mxu0
        %2811 = vmatmul.f32.gmra.mxu0 %v626
        %v2812 = vpop.f32.mrf.mxu0
        %2813 = vmatmul.f32.gmra.mxu0 %v629
        %v2814 = vpop.f32.mrf.mxu0
        %v2815 = vadd.f32 0.0, %v2814
        %2816 = vmatmul.f32.gmra.mxu0 %v632
        %v2817 = vpop.f32.mrf.mxu0
        %v2818 = vadd.f32 0.0, %v2817
        %2819 = vmatmul.f32.gmra.mxu0 %v635
        %v2820 = vpop.f32.mrf.mxu0
        %2821 = vmatmul.f32.gmra.mxu0 %v638
        %v2822 = vpop.f32.mrf.mxu0
        %2823 = vmatmul.f32.gmra.mxu0 %v1112
        %v2824 = vpop.f32.mrf.mxu0
        %v2825 = vadd.f32 0.0, %v2824
        %2826 = vmatmul.f32.gmra.mxu0 %v1114
        %v2827 = vpop.f32.mrf.mxu0
        %v2828 = vadd.f32 0.0, %v2827
        %2829 = vmatmul.f32.gmra.mxu0 %v1116
        %v2830 = vpop.f32.mrf.mxu0
        %2831 = vmatmul.f32.gmra.mxu0 %v1118
        %v2832 = vpop.f32.mrf.mxu0
        %2833 = vmatmul.f32.gmra.mxu0 %v2366
        %v2834 = vpop.f32.mrf.mxu0
        %v2835 = vadd.f32 0.0, %v2834
        %2836 = vmatmul.f32.gmra.mxu0 %v2368
        %v2837 = vpop.f32.mrf.mxu0
        %v2838 = vadd.f32 0.0, %v2837
        %2839 = vmatmul.f32.gmra.mxu0 %v2370
        %v2840 = vpop.f32.mrf.mxu0
        %2841 = vmatmul.f32.gmra.mxu0 %v2372
        %v2842 = vpop.f32.mrf.mxu0
        %2843 = vdwg.mxu0
        %v2844 = vadd.f32 %v2663, %v2765
        %v2845 = vadd.f32 %v2666, %v2768
        %v2846 = vadd.f32 %v2673, %v2775
        %v2847 = vadd.f32 %v2676, %v2778
        %v2848 = vadd.f32 %v2683, %v2785
        %v2849 = vadd.f32 %v2686, %v2788
        %v2850 = vadd.f32 %v2693, %v2795
        %v2851 = vadd.f32 %v2696, %v2798
        %v2852 = vadd.f32 %v2703, %v2805
        %v2853 = vadd.f32 %v2706, %v2808
        %v2854 = vadd.f32 %v2713, %v2815
        %v2855 = vadd.f32 %v2716, %v2818
        %v2856 = vadd.f32 %v2723, %v2825
        %v2857 = vadd.f32 %v2726, %v2828
        %v2858 = vadd.f32 %v2733, %v2835
        %v2859 = vadd.f32 %v2736, %v2838
        %s2860 = scalar_lea.vmem %s3, 60
        %v2861 = vld [vmem:[%s2860] sm:$0xf]
        %v2863 = vrot.slane %v535, 1
        %v2864 = vsel %vm1294, %v1751, %v2863
        %v2865 = vrot.slane %v536, 1
        %v2866 = vsel %vm1294, %v2863, %v2865
        %v2867 = vrot.slane %v537, 1
        %v2868 = vsel %vm1294, %v2865, %v2867
        %v2869 = vrot.slane %v538, 1
        %v2870 = vsel %vm1294, %v2867, %v2869
        %v2871 = vsel %vm408, %v2864, 0
        %v2873 = vsel %vm408, %v2866, 0
        %v2875 = vsel %vm408, %v2868, 0
        %v2877 = vsel %vm408, %v2870, 0
        %v2880 = vsel %vm640, %v2861, 0
        %2882 = vmatpush.msra.mxu0 0.0
        %2883 = vmatpush.msra.mxu0 0.0
        %2884 = vmatpush.msra.mxu0 0.0
        %2885 = vmatpush.msra.mxu0 0.0
        %2886 = vmatpush.msra.mxu0 0.0
        %2887 = vmatpush.msra.mxu0 0.0
        %2888 = vmatpush.msra.mxu0 0.0
        %2889 = vmatpush.msra.mxu0 0.0
        %2890 = vmatpush.msra.mxu0 0.0
        %2891 = vmatpush.msra.mxu0 0.0
        %2892 = vmatpush.msra.mxu0 0.0
        %2893 = vmatpush.msra.mxu0 0.0
        %2894 = vmatpush.msra.mxu0 0.0
        %2895 = vmatpush.msra.mxu0 0.0
        %2896 = vmatpush.msra.mxu0 0.0
        %2897 = vmatpush.msra.mxu0 %v2880
        %2898 = vmatmul.f32.gmra.mxu0 %v1376
        %v2899 = vpop.f32.mrf.mxu0
        %v2900 = vadd.f32 0.0, %v2899
        %2901 = vmatmul.f32.gmra.mxu0 %v1378
        %v2902 = vpop.f32.mrf.mxu0
        %v2903 = vadd.f32 0.0, %v2902
        %2904 = vmatmul.f32.gmra.mxu0 %v1380
        %v2905 = vpop.f32.mrf.mxu0
        %2906 = vmatmul.f32.gmra.mxu0 %v1382
        %v2907 = vpop.f32.mrf.mxu0
        %2908 = vmatmul.f32.gmra.mxu0 %v1384
        %v2909 = vpop.f32.mrf.mxu0
        %v2910 = vadd.f32 0.0, %v2909
        %2911 = vmatmul.f32.gmra.mxu0 %v1386
        %v2912 = vpop.f32.mrf.mxu0
        %v2913 = vadd.f32 0.0, %v2912
        %2914 = vmatmul.f32.gmra.mxu0 %v1388
        %v2915 = vpop.f32.mrf.mxu0
        %2916 = vmatmul.f32.gmra.mxu0 %v1390
        %v2917 = vpop.f32.mrf.mxu0
        %2918 = vmatmul.f32.gmra.mxu0 %v1392
        %v2919 = vpop.f32.mrf.mxu0
        %v2920 = vadd.f32 0.0, %v2919
        %2921 = vmatmul.f32.gmra.mxu0 %v1394
        %v2922 = vpop.f32.mrf.mxu0
        %v2923 = vadd.f32 0.0, %v2922
        %2924 = vmatmul.f32.gmra.mxu0 %v1396
        %v2925 = vpop.f32.mrf.mxu0
        %2926 = vmatmul.f32.gmra.mxu0 %v1398
        %v2927 = vpop.f32.mrf.mxu0
        %2928 = vmatmul.f32.gmra.mxu0 %v1400
        %v2929 = vpop.f32.mrf.mxu0
        %v2930 = vadd.f32 0.0, %v2929
        %2931 = vmatmul.f32.gmra.mxu0 %v1402
        %v2932 = vpop.f32.mrf.mxu0
        %v2933 = vadd.f32 0.0, %v2932
        %2934 = vmatmul.f32.gmra.mxu0 %v1404
        %v2935 = vpop.f32.mrf.mxu0
        %2936 = vmatmul.f32.gmra.mxu0 %v1406
        %v2937 = vpop.f32.mrf.mxu0
        %2938 = vmatmul.f32.gmra.mxu0 %v1408
        %v2939 = vpop.f32.mrf.mxu0
        %v2940 = vadd.f32 0.0, %v2939
        %2941 = vmatmul.f32.gmra.mxu0 %v1410
        %v2942 = vpop.f32.mrf.mxu0
        %v2943 = vadd.f32 0.0, %v2942
        %2944 = vmatmul.f32.gmra.mxu0 %v1412
        %v2945 = vpop.f32.mrf.mxu0
        %2946 = vmatmul.f32.gmra.mxu0 %v1414
        %v2947 = vpop.f32.mrf.mxu0
        %2948 = vmatmul.f32.gmra.mxu0 %v1416
        %v2949 = vpop.f32.mrf.mxu0
        %v2950 = vadd.f32 0.0, %v2949
        %2951 = vmatmul.f32.gmra.mxu0 %v1418
        %v2952 = vpop.f32.mrf.mxu0
        %v2953 = vadd.f32 0.0, %v2952
        %2954 = vmatmul.f32.gmra.mxu0 %v1420
        %v2955 = vpop.f32.mrf.mxu0
        %2956 = vmatmul.f32.gmra.mxu0 %v1422
        %v2957 = vpop.f32.mrf.mxu0
        %2958 = vmatmul.f32.gmra.mxu0 %v1753
        %v2959 = vpop.f32.mrf.mxu0
        %v2960 = vadd.f32 0.0, %v2959
        %2961 = vmatmul.f32.gmra.mxu0 %v1755
        %v2962 = vpop.f32.mrf.mxu0
        %v2963 = vadd.f32 0.0, %v2962
        %2964 = vmatmul.f32.gmra.mxu0 %v1757
        %v2965 = vpop.f32.mrf.mxu0
        %2966 = vmatmul.f32.gmra.mxu0 %v1759
        %v2967 = vpop.f32.mrf.mxu0
        %2968 = vmatmul.f32.gmra.mxu0 %v2871
        %v2969 = vpop.f32.mrf.mxu0
        %v2970 = vadd.f32 0.0, %v2969
        %2971 = vmatmul.f32.gmra.mxu0 %v2873
        %v2972 = vpop.f32.mrf.mxu0
        %v2973 = vadd.f32 0.0, %v2972
        %2974 = vmatmul.f32.gmra.mxu0 %v2875
        %v2975 = vpop.f32.mrf.mxu0
        %2976 = vmatmul.f32.gmra.mxu0 %v2877
        %v2977 = vpop.f32.mrf.mxu0
        %2978 = vdwg.mxu0
        %v2979 = vadd.f32 %v2844, %v2900
        %v2980 = vadd.f32 %v2845, %v2903
        %v2981 = vadd.f32 %v2846, %v2910
        %v2982 = vadd.f32 %v2847, %v2913
        %v2983 = vadd.f32 %v2848, %v2920
        %v2984 = vadd.f32 %v2849, %v2923
        %v2985 = vadd.f32 %v2850, %v2930
        %v2986 = vadd.f32 %v2851, %v2933
        %v2987 = vadd.f32 %v2852, %v2940
        %v2988 = vadd.f32 %v2853, %v2943
        %v2989 = vadd.f32 %v2854, %v2950
        %v2990 = vadd.f32 %v2855, %v2953
        %v2991 = vadd.f32 %v2856, %v2960
        %v2992 = vadd.f32 %v2857, %v2963
        %v2993 = vadd.f32 %v2858, %v2970
        %v2994 = vadd.f32 %v2859, %v2973
        %v2995 = vmul.f32 %v2979, %v1237
        %v2996 = vmul.f32 %v2980, %v1237
        %v2997 = vmul.f32 %v2981, %v1237
        %v2998 = vmul.f32 %v2982, %v1237
        %v2999 = vmul.f32 %v2983, %v1237
        %v3000 = vmul.f32 %v2984, %v1237
        %v3001 = vmul.f32 %v2985, %v1237
        %v3002 = vmul.f32 %v2986, %v1237
        %v3003 = vmul.f32 %v2987, %v1237
        %v3004 = vmul.f32 %v2988, %v1237
        %v3005 = vmul.f32 %v2989, %v1237
        %v3006 = vmul.f32 %v2990, %v1237
        %v3007 = vmul.f32 %v2991, %v1237
        %v3008 = vmul.f32 %v2992, %v1237
        %v3009 = vmul.f32 %v2993, %v1237
        %v3010 = vmul.f32 %v2994, %v1237
        %v3011 = vadd.f32 %v2995, %v1256
        %v3012 = vadd.f32 %v2996, %v1256
        %v3013 = vadd.f32 %v2997, %v1256
        %v3014 = vadd.f32 %v2998, %v1256
        %v3015 = vadd.f32 %v2999, %v1256
        %v3016 = vadd.f32 %v3000, %v1256
        %v3017 = vadd.f32 %v3001, %v1256
        %v3018 = vadd.f32 %v3002, %v1256
        %v3019 = vadd.f32 %v3003, %v1256
        %v3020 = vadd.f32 %v3004, %v1256
        %v3021 = vadd.f32 %v3005, %v1256
        %v3022 = vadd.f32 %v3006, %v1256
        %v3023 = vadd.f32 %v3007, %v1256
        %v3024 = vadd.f32 %v3008, %v1256
        %v3025 = vadd.f32 %v3009, %v1256
        %v3026 = vadd.f32 %v3010, %v1256
        %v3027 = vmax.f32 %v3011, 0.0
        %v3028 = vmax.f32 %v3012, 0.0
        %v3029 = vmax.f32 %v3013, 0.0
        %v3030 = vmax.f32 %v3014, 0.0
        %v3031 = vmax.f32 %v3015, 0.0
        %v3032 = vmax.f32 %v3016, 0.0
        %v3033 = vmax.f32 %v3017, 0.0
        %v3034 = vmax.f32 %v3018, 0.0
        %v3035 = vmax.f32 %v3019, 0.0
        %v3036 = vmax.f32 %v3020, 0.0
        %v3037 = vmax.f32 %v3021, 0.0
        %v3038 = vmax.f32 %v3022, 0.0
        %v3039 = vmax.f32 %v3023, 0.0
        %v3040 = vmax.f32 %v3024, 0.0
        %v3041 = vmax.f32 %v3025, 0.0
        %v3042 = vmax.f32 %v3026, 0.0
        %3059 = vrot.lane.b32.xlu0 %v3027, 8
        %v3060 = vpop.permute.xlu0 %3059
        %3061 = vrot.lane.b32.xlu0 %v3028, 8
        %v3062 = vpop.permute.xlu0 %3061
        %3063 = vrot.lane.b32.xlu0 %v3029, 8
        %v3064 = vpop.permute.xlu0 %3063
        %3065 = vrot.lane.b32.xlu0 %v3030, 8
        %v3066 = vpop.permute.xlu0 %3065
        %3067 = vrot.lane.b32.xlu0 %v3031, 8
        %v3068 = vpop.permute.xlu0 %3067
        %3069 = vrot.lane.b32.xlu0 %v3032, 8
        %v3070 = vpop.permute.xlu0 %3069
        %3071 = vrot.lane.b32.xlu0 %v3033, 8
        %v3072 = vpop.permute.xlu0 %3071
        %3073 = vrot.lane.b32.xlu0 %v3034, 8
        %v3074 = vpop.permute.xlu0 %3073
        %3075 = vrot.lane.b32.xlu0 %v3035, 8
        %v3076 = vpop.permute.xlu0 %3075
        %3077 = vrot.lane.b32.xlu0 %v3036, 8
        %v3078 = vpop.permute.xlu0 %3077
        %3079 = vrot.lane.b32.xlu0 %v3037, 8
        %v3080 = vpop.permute.xlu0 %3079
        %3081 = vrot.lane.b32.xlu0 %v3038, 8
        %v3082 = vpop.permute.xlu0 %3081
        %3083 = vrot.lane.b32.xlu0 %v3039, 8
        %v3084 = vpop.permute.xlu0 %3083
        %3085 = vrot.lane.b32.xlu0 %v3040, 8
        %v3086 = vpop.permute.xlu0 %3085
        %3087 = vrot.lane.b32.xlu0 %v3041, 8
        %v3088 = vpop.permute.xlu0 %3087
        %3089 = vrot.lane.b32.xlu0 %v3042, 8
        %v3090 = vpop.permute.xlu0 %3089
        %v3107 = vsel %vm1989, %v2522, %v3060
        %v3108 = vsel %vm1989, %v2523, %v3062
        %v3109 = vsel %vm1989, %v2524, %v3064
        %v3110 = vsel %vm1989, %v2525, %v3066
        %v3111 = vsel %vm1989, %v2526, %v3068
        %v3112 = vsel %vm1989, %v2527, %v3070
        %v3113 = vsel %vm1989, %v2528, %v3072
        %v3114 = vsel %vm1989, %v2529, %v3074
        %v3115 = vsel %vm1989, %v2530, %v3076
        %v3116 = vsel %vm1989, %v2531, %v3078
        %v3117 = vsel %vm1989, %v2532, %v3080
        %v3118 = vsel %vm1989, %v2533, %v3082
        %v3119 = vsel %vm1989, %v2534, %v3084
        %v3120 = vsel %vm1989, %v2535, %v3086
        %v3121 = vsel %vm1989, %v2536, %v3088
        %v3122 = vsel %vm1989, %v2537, %v3090
        %s3123 = scalar_lea.vmem %s361, 16 [#allocation3]
        %3124 = vst.msk [vmem:[%s3123] sm:$0xff] %vm2006, %v3107
        %3125 = vst.msk [vmem:[%s3123 + $0x8] sm:$0xff] %vm2006, %v3108
        %3126 = vst.msk [vmem:[%s3123 + $0x20] sm:$0xff] %vm2006, %v3109
        %3127 = vst.msk [vmem:[%s3123 + $0x28] sm:$0xff] %vm2006, %v3110
        %3128 = vst.msk [vmem:[%s3123 + $0x40] sm:$0xff] %vm2006, %v3111
        %3129 = vst.msk [vmem:[%s3123 + $0x48] sm:$0xff] %vm2006, %v3112
        %3130 = vst.msk [vmem:[%s3123 + $0x60] sm:$0xff] %vm2006, %v3113
        %3131 = vst.msk [vmem:[%s3123 + $0x68] sm:$0xff] %vm2006, %v3114
        %3132 = vst.msk [vmem:[%s3123 + $0x80] sm:$0xff] %vm2006, %v3115
        %3133 = vst.msk [vmem:[%s3123 + $0x88] sm:$0xff] %vm2006, %v3116
        %3134 = vst.msk [vmem:[%s3123 + $0xa0] sm:$0xff] %vm2006, %v3117
        %3135 = vst.msk [vmem:[%s3123 + $0xa8] sm:$0xff] %vm2006, %v3118
        %3136 = vst.msk [vmem:[%s3123 + $0xc0] sm:$0xff] %vm2006, %v3119
        %3137 = vst.msk [vmem:[%s3123 + $0xc8] sm:$0xff] %vm2006, %v3120
        %3138 = vst.msk [vmem:[%s3123 + $0xe0] sm:$0xff] %vm2006, %v3121
        %3139 = vst.msk [vmem:[%s3123 + $0xe8] sm:$0xff] %vm2006, %v3122
        %s3140 = sand.u32 %s205, 1
        %s3141 = scalar_lea.sflag [#allocation4], %s3140
        %s3142 = sand.u32 %s205, 1
        %s3143 = smul.addr %s3142, 256
        %s3144 = scalar_lea.vmem [#allocation3], %s3143
        // Predicated region
        $region61: #{tpu_custom_call.1} parent=43 // pred_check
          %p3145 = pneg %p215
        $region62: #{tpu_custom_call.1} parent=43 // pred_check_branch
          %3147 = sbr.rel (%p3145) target = $region64
        $region63: #{tpu_custom_call.1} parent=43 // pred_region
          %s3148 = smul.u32 8, %s24
          %3150 = vsyncadd %s3141, 0
          %s3151 = smul.addr %s3148, 4
          %s3152 = smul.addr %s25, 64
          %s3153 = sadd.s32 %s3151, %s3152
          %s3154 = smul.addr %s3153, 8
          %s3155 = scalar_lea.hbm %s6, %s3154
          %s3156 = sshll.u32 %s3144, 4
          %s3157 = int_to_ptr.vmem [resolvable:$true] %s3156
          %s3158 = sshll.u32 %s3155, 4
          %s3159 = int_to_ptr.hbm [resolvable:$true] %s3158
          %3164 = dma.vmem_to_hbm [thread:$0]  %s3157, 4096, %s3159, %s3141, 128, 128, 8
        $region64: #{tpu_custom_call.1} parent=43 // pred_fallthru
          _
      $region44: #{tpu_custom_call.1} parent=5 // pred_fallthru
        _
      %p3165 = scmp.le.s32.totalorder 2, %s15
      // Predicated region
      $region65: #{tpu_custom_call.1} parent=5 // pred_check
        %p3166 = pneg %p3165
      $region66: #{tpu_custom_call.1} parent=5 // pred_check_branch
        %3168 = sbr.rel (%p3166) target = $region68
      $region67: #{tpu_custom_call.1} parent=5 // pred_region
        %s3169 = ssub.s32 %s15, 2
        // Predicated region
        $region69: #{tpu_custom_call.1} parent=67 // pred_check
          %p3170 = pneg %p221
        $region70: #{tpu_custom_call.1} parent=67 // pred_check_branch
          %3172 = sbr.rel (%p3170) target = $region72
        $region71: #{tpu_custom_call.1} parent=67 // pred_region
          %s3173 = sand.u32 %s206, 1
          %s3174 = scalar_lea.sflag [#allocation4], %s3173
          %s3175 = sand.u32 %s206, 1
          %s3176 = smul.addr %s3175, 256
          %s3177 = scalar_lea.vmem [#allocation3], %s3176
          %3179 = dma.done %s3174, 4096
        $region72: #{tpu_custom_call.1} parent=67 // pred_fallthru
          _
      $region68: #{tpu_custom_call.1} parent=5 // pred_fallthru
        _
    $region6: #{tpu_custom_call.1} parent=1 // loop_footer
      %s19 = sadd.s32 1, %s15
    $region7: #{tpu_custom_call.1} parent=1 // loop_footer_branch
      %14 = sbr.rel target = $region3
    $region8: #{tpu_custom_call.1} parent=1 // loop_exit
      _
    %3180 = vsyncpa [#allocation4], 1
    %s3181 = scalar_lea.sflag [#allocation4], 1
    %3182 = vsyncpa %s3181, 1

</llo_original>
